<compile_context>
chip_gen: v7x
topology: tpu7x:2x2x1
jax: 0.10.0
libtpu: 0.0.40
codegen_flags: <defaults>
</compile_context>

<pallas_src>
import math
import functools

import jax
import jax.numpy as jnp
from jax.experimental import pallas as pl
from jax.experimental.pallas import tpu as pltpu

OUT_CHANNELS = (32, 64, 64)
FEATURE_SIZE = 512
VMEM_LIMIT = 48 * 1024 * 1024          # <= v7x 64 MiB/TC, fine on v5e/v6e (128 MiB)
SINGLE_K_MAX = 2048                    # collapse K grid axis up to this K


# ---------------------------------------------------------------------------
# small helpers
# ---------------------------------------------------------------------------
def _round_up(x, m):
    return -(-x // m) * m


def _pick_tile(dim_padded, cap, step):
    """Largest multiple of `step` <= cap that divides dim_padded (dim_padded % step == 0)."""
    t = min(dim_padded, cap)
    while dim_padded % t:
        t -= step
    return t


def _apply_act(r, act):
    if act == "leaky_relu":
        return jnp.where(r >= 0.0, r, 0.01 * r)     # PyTorch default slope
    if act == "relu":
        return jnp.maximum(r, 0.0)
    return r


# ---------------------------------------------------------------------------
# Pallas kernels
# ---------------------------------------------------------------------------
def _norm_kernel(x_ref, mean_ref, inv_ref, o_ref):
    """o = clamp((x - mean) * inv_std, -5, 5), computed in f32, stored bf16."""
    z = (x_ref[...] - mean_ref[...]) * inv_ref[...]
    o_ref[...] = jnp.clip(z, -5.0, 5.0).astype(o_ref.dtype)


def _mm_bias_act_kernel(x_ref, w_ref, b_ref, o_ref, *, act):
    """Single-K-block matmul: o = act(x @ w + b); no scratch, direct epilogue."""
    r = jnp.dot(x_ref[...], w_ref[...], preferred_element_type=jnp.float32) + b_ref[...]
    o_ref[...] = _apply_act(r, act).astype(o_ref.dtype)


def _mm_bias_act_acc_kernel(x_ref, w_ref, b_ref, o_ref, acc_ref, *, act):
    """Multi-K-block fallback with f32 VMEM accumulator (only used for K > SINGLE_K_MAX)."""
    kk = pl.program_id(2)

    @pl.when(kk == 0)
    def _():
        acc_ref[...] = jnp.zeros_like(acc_ref)

    acc_ref[...] += jnp.dot(x_ref[...], w_ref[...], preferred_element_type=jnp.float32)

    @pl.when(kk == pl.num_programs(2) - 1)
    def _():
        o_ref[...] = _apply_act(acc_ref[...] + b_ref[...], act).astype(o_ref.dtype)


def _mlp_kernel(x_ref, *refs, acts):
    """Chained matmuls with all weights VMEM-resident; refs = (w0,b0,w1,b1,...,o)."""
    o_ref = refs[-1]
    h = x_ref[...]                                   # (tm, K0) bf16
    n_layers = len(acts)
    for li in range(n_layers):
        w = refs[2 * li][0]
        b = refs[2 * li + 1][0]
        r = jnp.dot(h, w, preferred_element_type=jnp.float32) + b
        r = _apply_act(r, acts[li])
        h = r.astype(jnp.bfloat16) if li + 1 < n_layers else r
    o_ref[0] = h.astype(o_ref.dtype)


# ---------------------------------------------------------------------------
# Pallas wrappers
# ---------------------------------------------------------------------------
def normalize_clamp(x, mean_p, inv_p):
    """x:(R,D) f32, mean/inv pre-padded (1,Dp) f32 (Dp % 512 == 0) -> (R,D) bf16."""
    r, d = x.shape
    dp = mean_p.shape[-1]
    tr = min(_round_up(r, 8), 256)
    rp = _round_up(r, tr)
    td = dp if dp <= 2048 else _pick_tile(dp, 2048, 512)
    xp = jnp.pad(x, ((0, rp - r), (0, dp - d)))
    out = pl.pallas_call(
        _norm_kernel,
        out_shape=jax.ShapeDtypeStruct((rp, dp), jnp.bfloat16),
        grid=(rp // tr, dp // td),
        in_specs=[
            pl.BlockSpec((tr, td), lambda i, j: (i, j)),
            pl.BlockSpec((1, td), lambda i, j: (0, j)),
            pl.BlockSpec((1, td), lambda i, j: (0, j)),
        ],
        out_specs=pl.BlockSpec((tr, td), lambda i, j: (i, j)),
        compiler_params=pltpu.CompilerParams(
            dimension_semantics=("parallel", "parallel"),
            vmem_limit_bytes=VMEM_LIMIT),
    )(xp, mean_p, inv_p)
    return out[:r, :d]


def matmul_bias_act(x, w, b, *, act, out_dtype=jnp.bfloat16):
    """x:(M,K); w:(Kp,Np) bf16 pre-padded (Kp,Np % 128 == 0); b:(1,Np) f32."""
    m, k = x.shape
    kp, np_ = w.shape
    tm = min(_round_up(m, 8), 512)
    mp = _round_up(m, tm)
    tn = _pick_tile(np_, 256, 128)
    xp = jnp.pad(x, ((0, mp - m), (0, kp - k))).astype(jnp.bfloat16)
    out_isz = 2 if out_dtype == jnp.bfloat16 else 4
    cost = pl.CostEstimate(
        flops=2 * mp * kp * np_,
        transcendentals=0,
        bytes_accessed=int(xp.size * 2 + w.size * 2 + b.size * 4 + mp * np_ * out_isz))
    if kp <= SINGLE_K_MAX:
        out = pl.pallas_call(
            functools.partial(_mm_bias_act_kernel, act=act),
            out_shape=jax.ShapeDtypeStruct((mp, np_), out_dtype),
            grid=(mp // tm, np_ // tn),
            in_specs=[
                pl.BlockSpec((tm, kp), lambda i, j: (i, 0)),
                pl.BlockSpec((kp, tn), lambda i, j: (0, j)),
                pl.BlockSpec((1, tn), lambda i, j: (0, j)),
            ],
            out_specs=pl.BlockSpec((tm, tn), lambda i, j: (i, j)),
            compiler_params=pltpu.CompilerParams(
                dimension_semantics=("parallel", "parallel"),
                vmem_limit_bytes=VMEM_LIMIT),
            cost_estimate=cost,
        )(xp, w, b)
    else:
        tk = _pick_tile(kp, 1024, 128)
        out = pl.pallas_call(
            functools.partial(_mm_bias_act_acc_kernel, act=act),
            out_shape=jax.ShapeDtypeStruct((mp, np_), out_dtype),
            grid=(mp // tm, np_ // tn, kp // tk),
            in_specs=[
                pl.BlockSpec((tm, tk), lambda i, j, kk: (i, kk)),
                pl.BlockSpec((tk, tn), lambda i, j, kk: (kk, j)),
                pl.BlockSpec((1, tn), lambda i, j, kk: (0, j)),
            ],
            out_specs=pl.BlockSpec((tm, tn), lambda i, j, kk: (i, j)),
            scratch_shapes=[pltpu.VMEM((tm, tn), jnp.float32)],
            compiler_params=pltpu.CompilerParams(
                dimension_semantics=("parallel", "parallel", "arbitrary"),
                vmem_limit_bytes=VMEM_LIMIT),
            cost_estimate=cost,
        )(xp, w, b)
    return out[:m, :]


def mlp_fused(x, ws, bs, acts, *, out_dtype=jnp.float32):
    """Fused per-model head: x:(M,K0) shared; ws[i]:(G,Ki,Ni) bf16; bs[i]:(G,1,Ni) f32."""
    m, k0 = x.shape
    g, k0p, _ = ws[0].shape
    tm = min(_round_up(m, 8), 256)           # cap to bound chained f32 intermediates
    mp = _round_up(m, tm)
    xp = jnp.pad(x, ((0, mp - m), (0, k0p - k0))).astype(jnp.bfloat16)
    n_last = ws[-1].shape[-1]

    in_specs = [pl.BlockSpec((tm, k0p), lambda gi, i: (i, 0))]
    args = [xp]
    flops = 0
    out_isz = 2 if out_dtype == jnp.bfloat16 else 4
    bytes_acc = xp.size * 2 + g * mp * n_last * out_isz
    for w_l, b_l in zip(ws, bs):
        _, ki, ni = w_l.shape
        in_specs.append(pl.BlockSpec((1, ki, ni), lambda gi, i: (gi, 0, 0)))
        in_specs.append(pl.BlockSpec((1, 1, ni), lambda gi, i: (gi, 0, 0)))
        args += [w_l, b_l]
        flops += 2 * g * mp * ki * ni
        bytes_acc += w_l.size * 2 + b_l.size * 4

    out = pl.pallas_call(
        functools.partial(_mlp_kernel, acts=tuple(acts)),
        out_shape=jax.ShapeDtypeStruct((g, mp, n_last), out_dtype),
        grid=(g, mp // tm),
        in_specs=in_specs,
        out_specs=pl.BlockSpec((1, tm, n_last), lambda gi, i: (gi, i, 0)),
        compiler_params=pltpu.CompilerParams(
            dimension_semantics=("parallel", "parallel"),   # G: one model / TC on v7x
            vmem_limit_bytes=VMEM_LIMIT),
        cost_estimate=pl.CostEstimate(flops=int(flops), transcendentals=0,
                                      bytes_accessed=int(bytes_acc)),
    )(*args)
    return out[:, :m, :]


# ---------------------------------------------------------------------------
# glue: im2col, init
# ---------------------------------------------------------------------------
def im2col_nchw(x, k, s):
    """(N,C,H,W) -> ((N*OH*OW), C*k*k) with column order (c, kh, kw) = torch weight order."""
    n, c, h, w = x.shape
    oh = (h - k) // s + 1
    ow = (w - k) // s + 1
    cols = []
    for i in range(k):
        for j in range(k):
            cols.append(x[:, :, i:i + s * oh:s, j:j + s * ow:s])     # (n,c,oh,ow)
    p = jnp.stack(cols, axis=2)                                      # (n,c,k*k,oh,ow)
    p = p.transpose(0, 3, 4, 1, 2)                                   # (n,oh,ow,c,k*k)
    return p.reshape(n * oh * ow, c * k * k), oh, ow


def im2col_nhwc(x, k, s):
    """(N,H,W,C) -> ((N*OH*OW), k*k*C) with column order (kh, kw, c)."""
    n, h, w, c = x.shape
    oh = (h - k) // s + 1
    ow = (w - k) // s + 1
    cols = []
    for i in range(k):
        for j in range(k):
            cols.append(x[:, i:i + s * oh:s, j:j + s * ow:s, :])
    p = jnp.concatenate(cols, axis=-1)
    return p.reshape(n * oh * ow, k * k * c), oh, ow


def orthogonal(key, rows, cols, gain):
    """Orthogonal init (gain-scaled), same semantics as nn.init.orthogonal_."""
    big, small = max(rows, cols), min(rows, cols)
    a = jax.random.normal(key, (big, small), dtype=jnp.float32)
    q, r = jnp.linalg.qr(a)
    q = q * jnp.sign(jnp.diag(r))
    if rows < cols:
        q = q.T
    return (gain * q[:rows, :cols]).astype(jnp.float32)


def _init_single_model(key, c, h, w, kernel_sizes, strides, feature_size):
    """Raw per-model weights. convs: (w_ock (oc, c*k*k), w_khwc (k,k,ci,oc), b)."""
    hs, ws = h, w
    in_c = c
    keys = jax.random.split(key, 6)
    convs = []
    for i, (k, s, oc) in enumerate(zip(kernel_sizes, strides, OUT_CHANNELS)):
        fan_in = in_c * k * k
        w_ock = orthogonal(keys[i], oc, fan_in, gain=math.sqrt(2.0))     # torch (oc, ci*k*k)
        w_khwc = w_ock.reshape(oc, in_c, k, k).transpose(2, 3, 1, 0)     # (k,k,ci,oc)
        convs.append((w_ock, w_khwc, jnp.zeros((oc,), jnp.float32)))
        in_c = oc
        hs, ws = (hs - k) // s + 1, (ws - k) // s + 1
    conv_feature_size = OUT_CHANNELS[-1] * hs * ws
    dims = [(conv_feature_size, feature_size),
            (feature_size, feature_size),
            (feature_size, feature_size)]
    fcs = []
    for i, (din, dout) in enumerate(dims):
        w_mat = orthogonal(keys[3 + i], dout, din, gain=math.sqrt(2.0)).T   # (din, dout)
        fcs.append((w_mat, jnp.zeros((dout,), jnp.float32)))
    return convs, fcs, hs, ws


def init_rnd_params(key, c, h, w, kernel_sizes, strides, feature_size=FEATURE_SIZE,
                    obs_mean=None, obs_var=None):
    """Pre-padded, block-diagonally merged parameters. target = lanes/index 0, forward = 1."""
    k_t, k_f = jax.random.split(key)
    t_convs, t_fcs, hs, ws = _init_single_model(k_t, c, h, w, kernel_sizes, strides, feature_size)
    f_convs, f_fcs, _, _ = _init_single_model(k_f, c, h, w, kernel_sizes, strides, feature_size)
    k1, k2, k3 = kernel_sizes
    oc1, oc2, oc3 = OUT_CHANNELS
    params = {}

    # conv1: merged along output channels; rows in torch (c,kh,kw) order (matches im2col_nchw)
    wt1, _, bt1 = t_convs[0]
    wf1, _, bf1 = f_convs[0]
    fan_in = c * k1 * k1
    kp1 = _round_up(fan_in, 128)
    n1 = _round_up(2 * oc1, 128)                                     # 128: [t32|f32|pad]
    w1 = jnp.concatenate([wt1.T, wf1.T], axis=1)                     # (fan_in, 64)
    params["conv1_w"] = jnp.pad(w1, ((0, kp1 - fan_in), (0, n1 - 2 * oc1))).astype(jnp.bfloat16)
    params["conv1_b"] = jnp.pad(jnp.concatenate([bt1, bf1]),
                                (0, n1 - 2 * oc1)).reshape(1, n1).astype(jnp.float32)

    # conv2: block-diagonal merge over the carried n1-channel conv1 output
    _, wt2, bt2 = t_convs[1]
    _, wf2, bf2 = f_convs[1]
    n2 = 2 * oc2                                                     # 128: [t64|f64]
    w2 = jnp.zeros((k2, k2, n1, n2), jnp.float32)
    w2 = w2.at[:, :, 0:oc1, 0:oc2].set(wt2)
    w2 = w2.at[:, :, oc1:2 * oc1, oc2:2 * oc2].set(wf2)
    params["conv2_w"] = w2.reshape(k2 * k2 * n1, n2).astype(jnp.bfloat16)
    params["conv2_b"] = jnp.concatenate([bt2, bf2]).reshape(1, n2).astype(jnp.float32)

    # conv3 weights in (k,k,128,·) form
    _, wt3, bt3 = t_convs[2]
    _, wf3, bf3 = f_convs[2]
    c3p = _round_up(oc3, 128)                                        # 128
    fold_conv3 = (hs * ws == 1)                                      # standard RND config

    if fold_conv3:
        # per-model conv3 (own output in lanes 0:oc3) folded into the fused head
        wc3_t = jnp.zeros((k3, k3, n2, c3p), jnp.float32).at[:, :, 0:oc2, 0:oc3].set(wt3)
        wc3_f = jnp.zeros((k3, k3, n2, c3p), jnp.float32).at[:, :, oc2:2 * oc2, 0:oc3].set(wf3)
        bc3_t = jnp.pad(bt3, (0, c3p - oc3))
        bc3_f = jnp.pad(bf3, (0, c3p - oc3))
        fc1_t = jnp.zeros((c3p, feature_size), jnp.float32).at[0:oc3, :].set(t_fcs[0][0])
        fc1_f = jnp.zeros((c3p, feature_size), jnp.float32).at[0:oc3, :].set(f_fcs[0][0])
        head_w = [jnp.stack([wc3_t.reshape(k3 * k3 * n2, c3p),
                             wc3_f.reshape(k3 * k3 * n2, c3p)]),
                  jnp.stack([fc1_t, fc1_f])]
        head_b = [jnp.stack([bc3_t, bc3_f])[:, None, :],
                  jnp.stack([t_fcs[0][1], f_fcs[0][1]])[:, None, :]]
    else:
        # general (e.g. maze) path: merged block-diagonal conv3 + per-model FC1 over the
        # NHWC (h, w, 128ch) flatten with zero rows on the other model's channels.
        n3 = 2 * oc3
        w3m = jnp.zeros((k3, k3, n2, n3), jnp.float32)
        w3m = w3m.at[:, :, 0:oc2, 0:oc3].set(wt3)
        w3m = w3m.at[:, :, oc2:2 * oc2, oc3:2 * oc3].set(wf3)
        params["conv3_w"] = w3m.reshape(k3 * k3 * n2, n3).astype(jnp.bfloat16)
        params["conv3_b"] = jnp.concatenate([bt3, bf3]).reshape(1, n3).astype(jnp.float32)

        def fc1_fold(w_mat, ch_lo):
            w4 = w_mat.reshape(oc3, hs, ws, feature_size).transpose(1, 2, 0, 3)  # (h,w,oc3,F)
            out = jnp.zeros((hs, ws, n3, feature_size), jnp.float32)
            out = out.at[:, :, ch_lo:ch_lo + oc3, :].set(w4)
            return out.reshape(hs * ws * n3, feature_size)

        head_w = [jnp.stack([fc1_fold(t_fcs[0][0], 0), fc1_fold(f_fcs[0][0], oc3)])]
        head_b = [jnp.stack([t_fcs[0][1], f_fcs[0][1]])[:, None, :]]

    for li in (1, 2):
        head_w.append(jnp.stack([t_fcs[li][0], f_fcs[li][0]]))
        head_b.append(jnp.stack([t_fcs[li][1], f_fcs[li][1]])[:, None, :])

    params["head_w"] = tuple(wv.astype(jnp.bfloat16) for wv in head_w)
    params["head_b"] = tuple(bv.astype(jnp.float32) for bv in head_b)

    # normalization stats (fresh RunningMeanStd: mean=0, var=1); padded to a 512 multiple
    chw = c * h * w
    dp = _round_up(chw, 512)
    mean = (jnp.zeros((chw,), jnp.float32) if obs_mean is None
            else jnp.asarray(obs_mean, jnp.float32).reshape(-1))
    var = (jnp.ones((chw,), jnp.float32) if obs_var is None
           else jnp.asarray(obs_var, jnp.float32).reshape(-1))
    inv_std = 1.0 / jnp.sqrt(var)
    params["mean"] = jnp.pad(mean, (0, dp - chw)).reshape(1, dp)
    params["inv_std"] = jnp.pad(inv_std, (0, dp - chw)).reshape(1, dp)
    return params


# ---------------------------------------------------------------------------
# forward
# ---------------------------------------------------------------------------
@functools.partial(jax.jit, static_argnames=("kernel_sizes", "strides"))
def rnd_forward(obs, params, kernel_sizes, strides):
    """obs: (T, B, C, H, W) f32 -> (phi, predicted_phi, T, B)."""
    t, b, c, h, w = obs.shape
    tb = t * b
    ks, st = kernel_sizes, strides
    n1 = params["conv1_w"].shape[1]
    n2 = params["conv2_w"].shape[1]

    # normalize + clamp (shared by both models); stays in NCHW layout
    x = obs.reshape(tb, c * h * w).astype(jnp.float32)
    xn = normalize_clamp(x, params["mean"], params["inv_std"])            # (tb, chw) bf16
    xn = xn.reshape(tb, c, h, w)

    # conv1: both models merged along output channels; im2col straight from NCHW
    p1, oh1, ow1 = im2col_nchw(xn, ks[0], st[0])
    o1 = matmul_bias_act(p1, params["conv1_w"], params["conv1_b"], act="leaky_relu")
    a1 = o1.reshape(tb, oh1, ow1, n1)                                     # ch: [t32|f32|0]

    # conv2: block-diagonal merged weights consume the padded 128-channel activation
    p2, oh2, ow2 = im2col_nhwc(a1, ks[1], st[1])
    o2 = matmul_bias_act(p2, params["conv2_w"], params["conv2_b"], act="leaky_relu")
    a2 = o2.reshape(tb, oh2, ow2, n2)                                     # ch: [t64|f64]

    # conv3 (+ FC head)
    p3, oh3, ow3 = im2col_nhwc(a2, ks[2], st[2])
    if len(params["head_w"]) == 4:
        # conv3 output is 1x1 -> conv3 folded into the fused head (4 resident matmuls)
        feats = p3                                                        # (tb, k3*k3*128)
        acts = ("leaky_relu", "relu", "relu", "none")
    else:
        o3 = matmul_bias_act(p3, params["conv3_w"], params["conv3_b"], act="leaky_relu")
        feats = o3.reshape(tb, oh3 * ow3 * o3.shape[-1])
        acts = ("relu", "relu", "none")

    out = mlp_fused(feats, params["head_w"], params["head_b"], acts)      # (2, tb, 512) f32
    phi = out[0].reshape(t, b, -1)
    predicted_phi = out[1].reshape(t, b, -1)
    return phi, predicted_phi, t, b


# ---------------------------------------------------------------------------
# pure-jnp f32 reference (for correctness checking only)
# ---------------------------------------------------------------------------
def _ref_forward(obs, key, c, h, w, ks, st, feature_size=FEATURE_SIZE):
    t, b_, _, _, _ = obs.shape
    tb = t * b_
    hi = jax.lax.Precision.HIGHEST
    xn = jnp.clip(obs.reshape(tb, c, h, w).astype(jnp.float32), -5.0, 5.0)  # mean=0, var=1
    k_t, k_f = jax.random.split(key)
    outs = []
    for km in (k_t, k_f):
        convs, fcs, _, _ = _init_single_model(km, c, h, w, ks, st, feature_size)
        xh = xn.transpose(0, 2, 3, 1)                                     # NHWC
        for (_, w_khwc, bias), k, s in zip(convs, ks, st):
            p, oh, ow = im2col_nhwc(xh, k, s)
            co = w_khwc.shape[-1]
            o = jnp.dot(p, w_khwc.reshape(-1, co), precision=hi) + bias
            o = jnp.where(o >= 0, o, 0.01 * o)
            xh = o.reshape(tb, oh, ow, co)
        feat = xh.transpose(0, 3, 1, 2).reshape(tb, -1)                   # NCHW flatten
        a = jnp.maximum(jnp.dot(feat, fcs[0][0], precision=hi) + fcs[0][1], 0.0)
        a = jnp.maximum(jnp.dot(a, fcs[1][0], precision=hi) + fcs[1][1], 0.0)
        a = jnp.dot(a, fcs[2][0], precision=hi) + fcs[2][1]
        outs.append(a.reshape(t, b_, -1))
    return outs[0], outs[1]


# ---------------------------------------------------------------------------
if __name__ == "__main__":
    # Small shapes: T=2, B=2, image_shape=(4, 36, 36); kernels/strides = [8,4,3]/[4,2,1]
    # -> conv output 1x1x64 -> conv_feature_size = 64, feature_size = 512.
    T, B, C, H, W = 2, 2, 4, 36, 36
    KS = (8, 4, 3)
    ST = (4, 2, 1)

    key = jax.random.PRNGKey(0)
    k_obs, k_par = jax.random.split(key)

    obs = jax.random.normal(k_obs, (T, B, C, H, W), dtype=jnp.float32)
    params = init_rnd_params(k_par, C, H, W, KS, ST)

    phi, predicted_phi, t_out, b_out = rnd_forward(obs, params, kernel_sizes=KS, strides=ST)
    jax.block_until_ready(phi)
    jax.block_until_ready(predicted_phi)

    assert phi.shape == (T, B, 512), phi.shape
    assert predicted_phi.shape == (T, B, 512), predicted_phi.shape
    assert bool(jnp.all(jnp.isfinite(phi))), "phi has non-finite values"
    assert bool(jnp.all(jnp.isfinite(predicted_phi))), "predicted_phi has non-finite values"

    # loose-tolerance check against a pure-jnp f32 reference (kernel path runs in bf16)
    phi_ref, pphi_ref = _ref_forward(obs, k_par, C, H, W, KS, ST)
    scale = max(float(jnp.max(jnp.abs(phi_ref))), float(jnp.max(jnp.abs(pphi_ref))))
    tol = 0.08 * scale + 0.15
    err_phi = float(jnp.max(jnp.abs(phi - phi_ref)))
    err_pphi = float(jnp.max(jnp.abs(predicted_phi - pphi_ref)))
    assert err_phi < tol, (err_phi, tol)
    assert err_pphi < tol, (err_pphi, tol)

    print("KERNEL_OK")
</pallas_src>

<mosaic_0001>
module attributes {stable_mosaic.version = 11 : i64} {
  func.func @_norm_kernel(%arg0: i32, %arg1: i32, %arg2: memref<8x512xf32, #tpu.memory_space<vmem>>, %arg3: memref<1x512xf32, #tpu.memory_space<vmem>>, %arg4: memref<1x512xf32, #tpu.memory_space<vmem>>, %arg5: memref<8x512xbf16, #tpu.memory_space<vmem>>) attributes {dimension_semantics = [#tpu.dimension_semantics<parallel>, #tpu.dimension_semantics<parallel>], iteration_bounds = array<i64: 1, 11>, scalar_prefetch = 0 : i64, scratch_operands = 0 : i64, tpu.core_type = #tpu.core_type<tc>, window_params = [{transform_indices = @transform_0, window_bounds = array<i64: 8, 512>}, {transform_indices = @transform_1, window_bounds = array<i64: 1, 512>}, {transform_indices = @transform_2, window_bounds = array<i64: 1, 512>}, {transform_indices = @transform_3, window_bounds = array<i64: 8, 512>}]} {
    %c0 = arith.constant 0 : index
    %c0_0 = arith.constant 0 : index
    %0 = vector.load %arg2[%c0, %c0_0] : memref<8x512xf32, #tpu.memory_space<vmem>>, vector<8x512xf32>
    %c0_1 = arith.constant 0 : index
    %c0_2 = arith.constant 0 : index
    %1 = vector.load %arg3[%c0_1, %c0_2] : memref<1x512xf32, #tpu.memory_space<vmem>>, vector<1x512xf32>
    %2 = vector.broadcast %1 : vector<1x512xf32> to vector<8x512xf32>
    %3 = arith.subf %0, %2 : vector<8x512xf32>
    %c0_3 = arith.constant 0 : index
    %c0_4 = arith.constant 0 : index
    %4 = vector.load %arg4[%c0_3, %c0_4] : memref<1x512xf32, #tpu.memory_space<vmem>>, vector<1x512xf32>
    %5 = vector.broadcast %4 : vector<1x512xf32> to vector<8x512xf32>
    %6 = arith.mulf %3, %5 : vector<8x512xf32>
    %cst = arith.constant -5.000000e+00 : f32
    %cst_5 = arith.constant 5.000000e+00 : f32
    %7 = vector.broadcast %cst : f32 to vector<8x512xf32>
    %8 = arith.maximumf %7, %6 : vector<8x512xf32>
    %9 = vector.broadcast %cst_5 : f32 to vector<8x512xf32>
    %10 = arith.minimumf %9, %8 : vector<8x512xf32>
    %11 = arith.truncf %10 : vector<8x512xf32> to vector<8x512xbf16>
    %c0_6 = arith.constant 0 : index
    %c0_7 = arith.constant 0 : index
    %12 = vector.load %arg5[%c0_6, %c0_7] : memref<8x512xbf16, #tpu.memory_space<vmem>>, vector<8x512xbf16>
    tpu.vector_store %arg5[%c0_6, %c0_7], %11 {strides = array<i32>} : memref<8x512xbf16, #tpu.memory_space<vmem>>, vector<8x512xbf16>,
    return
  }
  func.func @transform_0(%arg0: i32, %arg1: i32) -> (i32, i32) {
    %c0_i32 = arith.constant 0 : i32
    return %arg0, %arg1 : i32, i32
  }
  func.func @transform_1(%arg0: i32, %arg1: i32) -> (i32, i32) {
    %c0_i32 = arith.constant 0 : i32
    %c0_i32_0 = arith.constant 0 : i32
    return %c0_i32, %arg1 : i32, i32
  }
  func.func @transform_2(%arg0: i32, %arg1: i32) -> (i32, i32) {
    %c0_i32 = arith.constant 0 : i32
    %c0_i32_0 = arith.constant 0 : i32
    return %c0_i32, %arg1 : i32, i32
  }
  func.func @transform_3(%arg0: i32, %arg1: i32) -> (i32, i32) {
    %c0_i32 = arith.constant 0 : i32
    return %arg0, %arg1 : i32, i32
  }
}

module attributes {stable_mosaic.version = 11 : i64} {
  func.func @_mm_bias_act_kernel(%arg0: i32, %arg1: i32, %arg2: memref<256x256xbf16, #tpu.memory_space<vmem>>, %arg3: memref<256x128xbf16, #tpu.memory_space<vmem>>, %arg4: memref<1x128xf32, #tpu.memory_space<vmem>>, %arg5: memref<256x128xbf16, #tpu.memory_space<vmem>>) attributes {dimension_semantics = [#tpu.dimension_semantics<parallel>, #tpu.dimension_semantics<parallel>], iteration_bounds = array<i64: 1, 1>, scalar_prefetch = 0 : i64, scratch_operands = 0 : i64, tpu.core_type = #tpu.core_type<tc>, window_params = [{transform_indices = @transform_0, window_bounds = array<i64: 256, 256>}, {transform_indices = @transform_1, window_bounds = array<i64: 256, 128>}, {transform_indices = @transform_2, window_bounds = array<i64: 1, 128>}, {transform_indices = @transform_3, window_bounds = array<i64: 256, 128>}]} {
    %c0 = arith.constant 0 : index
    %c0_0 = arith.constant 0 : index
    %0 = vector.load %arg2[%c0, %c0_0] : memref<256x256xbf16, #tpu.memory_space<vmem>>, vector<256x256xbf16>
    %c0_1 = arith.constant 0 : index
    %c0_2 = arith.constant 0 : index
    %1 = vector.load %arg3[%c0_1, %c0_2] : memref<256x128xbf16, #tpu.memory_space<vmem>>, vector<256x128xbf16>
    %cst = arith.constant dense<0.000000e+00> : vector<256x128xf32>
    %2 = tpu.matmul %0, %1, %cst {dimension_numbers = #tpu.dot_dimension_numbers<[1], [0], [0], [1], [0, 0, 1, 1], [], []>} : vector<256x256xbf16>, vector<256x128xbf16>, vector<256x128xf32> -> vector<256x128xf32>
    %c0_3 = arith.constant 0 : index
    %c0_4 = arith.constant 0 : index
    %3 = vector.load %arg4[%c0_3, %c0_4] : memref<1x128xf32, #tpu.memory_space<vmem>>, vector<1x128xf32>
    %4 = vector.broadcast %3 : vector<1x128xf32> to vector<256x128xf32>
    %5 = arith.addf %2, %4 : vector<256x128xf32>
    %cst_5 = arith.constant 0.000000e+00 : f32
    %6 = vector.broadcast %cst_5 : f32 to vector<256x128xf32>
    %7 = arith.cmpf oge, %5, %6 : vector<256x128xf32>
    %cst_6 = arith.constant 0.00999999977 : f32
    %8 = vector.broadcast %cst_6 : f32 to vector<256x128xf32>
    %9 = arith.mulf %8, %5 : vector<256x128xf32>
    %10 = arith.select %7, %5, %9 : vector<256x128xi1>, vector<256x128xf32>
    %11 = arith.truncf %10 : vector<256x128xf32> to vector<256x128xbf16>
    %c0_7 = arith.constant 0 : index
    %c0_8 = arith.constant 0 : index
    %12 = vector.load %arg5[%c0_7, %c0_8] : memref<256x128xbf16, #tpu.memory_space<vmem>>, vector<256x128xbf16>
    tpu.vector_store %arg5[%c0_7, %c0_8], %11 {strides = array<i32>} : memref<256x128xbf16, #tpu.memory_space<vmem>>, vector<256x128xbf16>,
    return
  }
  func.func @transform_0(%arg0: i32, %arg1: i32) -> (i32, i32) {
    %c0_i32 = arith.constant 0 : i32
    %c0_i32_0 = arith.constant 0 : i32
    return %arg0, %c0_i32 : i32, i32
  }
  func.func @transform_1(%arg0: i32, %arg1: i32) -> (i32, i32) {
    %c0_i32 = arith.constant 0 : i32
    %c0_i32_0 = arith.constant 0 : i32
    return %c0_i32, %arg1 : i32, i32
  }
  func.func @transform_2(%arg0: i32, %arg1: i32) -> (i32, i32) {
    %c0_i32 = arith.constant 0 : i32
    %c0_i32_0 = arith.constant 0 : i32
    return %c0_i32, %arg1 : i32, i32
  }
  func.func @transform_3(%arg0: i32, %arg1: i32) -> (i32, i32) {
    %c0_i32 = arith.constant 0 : i32
    return %arg0, %arg1 : i32, i32
  }
}

module attributes {stable_mosaic.version = 11 : i64} {
  func.func @_mm_bias_act_kernel(%arg0: i32, %arg1: i32, %arg2: memref<40x2048xbf16, #tpu.memory_space<vmem>>, %arg3: memref<2048x128xbf16, #tpu.memory_space<vmem>>, %arg4: memref<1x128xf32, #tpu.memory_space<vmem>>, %arg5: memref<40x128xbf16, #tpu.memory_space<vmem>>) attributes {dimension_semantics = [#tpu.dimension_semantics<parallel>, #tpu.dimension_semantics<parallel>], iteration_bounds = array<i64: 1, 1>, scalar_prefetch = 0 : i64, scratch_operands = 0 : i64, tpu.core_type = #tpu.core_type<tc>, window_params = [{transform_indices = @transform_0, window_bounds = array<i64: 40, 2048>}, {transform_indices = @transform_1, window_bounds = array<i64: 2048, 128>}, {transform_indices = @transform_2, window_bounds = array<i64: 1, 128>}, {transform_indices = @transform_3, window_bounds = array<i64: 40, 128>}]} {
    %c0 = arith.constant 0 : index
    %c0_0 = arith.constant 0 : index
    %0 = vector.load %arg2[%c0, %c0_0] : memref<40x2048xbf16, #tpu.memory_space<vmem>>, vector<40x2048xbf16>
    %c0_1 = arith.constant 0 : index
    %c0_2 = arith.constant 0 : index
    %1 = vector.load %arg3[%c0_1, %c0_2] : memref<2048x128xbf16, #tpu.memory_space<vmem>>, vector<2048x128xbf16>
    %cst = arith.constant dense<0.000000e+00> : vector<40x128xf32>
    %2 = tpu.matmul %0, %1, %cst {dimension_numbers = #tpu.dot_dimension_numbers<[1], [0], [0], [1], [0, 0, 1, 1], [], []>} : vector<40x2048xbf16>, vector<2048x128xbf16>, vector<40x128xf32> -> vector<40x128xf32>
    %c0_3 = arith.constant 0 : index
    %c0_4 = arith.constant 0 : index
    %3 = vector.load %arg4[%c0_3, %c0_4] : memref<1x128xf32, #tpu.memory_space<vmem>>, vector<1x128xf32>
    %4 = vector.broadcast %3 : vector<1x128xf32> to vector<40x128xf32>
    %5 = arith.addf %2, %4 : vector<40x128xf32>
    %cst_5 = arith.constant 0.000000e+00 : f32
    %6 = vector.broadcast %cst_5 : f32 to vector<40x128xf32>
    %7 = arith.cmpf oge, %5, %6 : vector<40x128xf32>
    %cst_6 = arith.constant 0.00999999977 : f32
    %8 = vector.broadcast %cst_6 : f32 to vector<40x128xf32>
    %9 = arith.mulf %8, %5 : vector<40x128xf32>
    %10 = arith.select %7, %5, %9 : vector<40x128xi1>, vector<40x128xf32>
    %11 = arith.truncf %10 : vector<40x128xf32> to vector<40x128xbf16>
    %c0_7 = arith.constant 0 : index
    %c0_8 = arith.constant 0 : index
    %12 = vector.load %arg5[%c0_7, %c0_8] : memref<40x128xbf16, #tpu.memory_space<vmem>>, vector<40x128xbf16>
    tpu.vector_store %arg5[%c0_7, %c0_8], %11 {strides = array<i32>} : memref<40x128xbf16, #tpu.memory_space<vmem>>, vector<40x128xbf16>,
    return
  }
  func.func @transform_0(%arg0: i32, %arg1: i32) -> (i32, i32) {
    %c0_i32 = arith.constant 0 : i32
    %c0_i32_0 = arith.constant 0 : i32
    return %arg0, %c0_i32 : i32, i32
  }
  func.func @transform_1(%arg0: i32, %arg1: i32) -> (i32, i32) {
    %c0_i32 = arith.constant 0 : i32
    %c0_i32_0 = arith.constant 0 : i32
    return %c0_i32, %arg1 : i32, i32
  }
  func.func @transform_2(%arg0: i32, %arg1: i32) -> (i32, i32) {
    %c0_i32 = arith.constant 0 : i32
    %c0_i32_0 = arith.constant 0 : i32
    return %c0_i32, %arg1 : i32, i32
  }
  func.func @transform_3(%arg0: i32, %arg1: i32) -> (i32, i32) {
    %c0_i32 = arith.constant 0 : i32
    return %arg0, %arg1 : i32, i32
  }
}

module attributes {stable_mosaic.version = 11 : i64} {
  func.func @_mlp_kernel(%arg0: i32, %arg1: i32, %arg2: memref<8x1152xbf16, #tpu.memory_space<vmem>>, %arg3: memref<1x1152x128xbf16, #tpu.memory_space<vmem>>, %arg4: memref<1x1x128xf32, #tpu.memory_space<vmem>>, %arg5: memref<1x128x512xbf16, #tpu.memory_space<vmem>>, %arg6: memref<1x1x512xf32, #tpu.memory_space<vmem>>, %arg7: memref<1x512x512xbf16, #tpu.memory_space<vmem>>, %arg8: memref<1x1x512xf32, #tpu.memory_space<vmem>>, %arg9: memref<1x512x512xbf16, #tpu.memory_space<vmem>>, %arg10: memref<1x1x512xf32, #tpu.memory_space<vmem>>, %arg11: memref<1x8x512xf32, #tpu.memory_space<vmem>>) attributes {dimension_semantics = [#tpu.dimension_semantics<parallel>, #tpu.dimension_semantics<parallel>], iteration_bounds = array<i64: 2, 1>, scalar_prefetch = 0 : i64, scratch_operands = 0 : i64, tpu.core_type = #tpu.core_type<tc>, window_params = [{transform_indices = @transform_0, window_bounds = array<i64: 8, 1152>}, {transform_indices = @transform_1, window_bounds = array<i64: 1, 1152, 128>}, {transform_indices = @transform_2, window_bounds = array<i64: 1, 1, 128>}, {transform_indices = @transform_3, window_bounds = array<i64: 1, 128, 512>}, {transform_indices = @transform_4, window_bounds = array<i64: 1, 1, 512>}, {transform_indices = @transform_5, window_bounds = array<i64: 1, 512, 512>}, {transform_indices = @transform_6, window_bounds = array<i64: 1, 1, 512>}, {transform_indices = @transform_7, window_bounds = array<i64: 1, 512, 512>}, {transform_indices = @transform_8, window_bounds = array<i64: 1, 1, 512>}, {transform_indices = @transform_9, window_bounds = array<i64: 1, 8, 512>}]} {
    %c0 = arith.constant 0 : index
    %c0_0 = arith.constant 0 : index
    %0 = vector.load %arg2[%c0, %c0_0] : memref<8x1152xbf16, #tpu.memory_space<vmem>>, vector<8x1152xbf16>
    %c0_1 = arith.constant 0 : index
    %c0_2 = arith.constant 0 : index
    %c0_3 = arith.constant 0 : index
    %1 = vector.load %arg3[%c0_1, %c0_2, %c0_3] : memref<1x1152x128xbf16, #tpu.memory_space<vmem>>, vector<1x1152x128xbf16>
    %2 = vector.shape_cast %1 : vector<1x1152x128xbf16> to vector<1152x128xbf16>
    %c0_4 = arith.constant 0 : index
    %c0_5 = arith.constant 0 : index
    %c0_6 = arith.constant 0 : index
    %3 = vector.load %arg4[%c0_4, %c0_5, %c0_6] : memref<1x1x128xf32, #tpu.memory_space<vmem>>, vector<1x1x128xf32>
    %4 = vector.shape_cast %3 : vector<1x1x128xf32> to vector<1x128xf32>
    %cst = arith.constant dense<0.000000e+00> : vector<8x128xf32>
    %5 = tpu.matmul %0, %2, %cst {dimension_numbers = #tpu.dot_dimension_numbers<[1], [0], [0], [1], [0, 0, 1, 1], [], []>} : vector<8x1152xbf16>, vector<1152x128xbf16>, vector<8x128xf32> -> vector<8x128xf32>
    %6 = vector.broadcast %4 : vector<1x128xf32> to vector<8x128xf32>
    %7 = arith.addf %5, %6 : vector<8x128xf32>
    %cst_7 = arith.constant 0.000000e+00 : f32
    %8 = vector.broadcast %cst_7 : f32 to vector<8x128xf32>
    %9 = arith.cmpf oge, %7, %8 : vector<8x128xf32>
    %cst_8 = arith.constant 0.00999999977 : f32
    %10 = vector.broadcast %cst_8 : f32 to vector<8x128xf32>
    %11 = arith.mulf %10, %7 : vector<8x128xf32>
    %12 = arith.select %9, %7, %11 : vector<8x128xi1>, vector<8x128xf32>
    %13 = arith.truncf %12 : vector<8x128xf32> to vector<8x128xbf16>
    %c0_9 = arith.constant 0 : index
    %c0_10 = arith.constant 0 : index
    %c0_11 = arith.constant 0 : index
    %14 = vector.load %arg5[%c0_9, %c0_10, %c0_11] : memref<1x128x512xbf16, #tpu.memory_space<vmem>>, vector<1x128x512xbf16>
    %15 = vector.shape_cast %14 : vector<1x128x512xbf16> to vector<128x512xbf16>
    %c0_12 = arith.constant 0 : index
    %c0_13 = arith.constant 0 : index
    %c0_14 = arith.constant 0 : index
    %16 = vector.load %arg6[%c0_12, %c0_13, %c0_14] : memref<1x1x512xf32, #tpu.memory_space<vmem>>, vector<1x1x512xf32>
    %17 = vector.shape_cast %16 : vector<1x1x512xf32> to vector<1x512xf32>
    %cst_15 = arith.constant dense<0.000000e+00> : vector<8x512xf32>
    %18 = tpu.matmul %13, %15, %cst_15 {dimension_numbers = #tpu.dot_dimension_numbers<[1], [0], [0], [1], [0, 0, 1, 1], [], []>} : vector<8x128xbf16>, vector<128x512xbf16>, vector<8x512xf32> -> vector<8x512xf32>
    %19 = vector.broadcast %17 : vector<1x512xf32> to vector<8x512xf32>
    %20 = arith.addf %18, %19 : vector<8x512xf32>
    %cst_16 = arith.constant 0.000000e+00 : f32
    %21 = vector.broadcast %cst_16 : f32 to vector<8x512xf32>
    %22 = arith.maximumf %20, %21 : vector<8x512xf32>
    %23 = arith.truncf %22 : vector<8x512xf32> to vector<8x512xbf16>
    %c0_17 = arith.constant 0 : index
    %c0_18 = arith.constant 0 : index
    %c0_19 = arith.constant 0 : index
    %24 = vector.load %arg7[%c0_17, %c0_18, %c0_19] : memref<1x512x512xbf16, #tpu.memory_space<vmem>>, vector<1x512x512xbf16>
    %25 = vector.shape_cast %24 : vector<1x512x512xbf16> to vector<512x512xbf16>
    %c0_20 = arith.constant 0 : index
    %c0_21 = arith.constant 0 : index
    %c0_22 = arith.constant 0 : index
    %26 = vector.load %arg8[%c0_20, %c0_21, %c0_22] : memref<1x1x512xf32, #tpu.memory_space<vmem>>, vector<1x1x512xf32>
    %27 = vector.shape_cast %26 : vector<1x1x512xf32> to vector<1x512xf32>
    %cst_23 = arith.constant dense<0.000000e+00> : vector<8x512xf32>
    %28 = tpu.matmul %23, %25, %cst_23 {dimension_numbers = #tpu.dot_dimension_numbers<[1], [0], [0], [1], [0, 0, 1, 1], [], []>} : vector<8x512xbf16>, vector<512x512xbf16>, vector<8x512xf32> -> vector<8x512xf32>
    %29 = vector.broadcast %27 : vector<1x512xf32> to vector<8x512xf32>
    %30 = arith.addf %28, %29 : vector<8x512xf32>
    %cst_24 = arith.constant 0.000000e+00 : f32
    %31 = vector.broadcast %cst_24 : f32 to vector<8x512xf32>
    %32 = arith.maximumf %30, %31 : vector<8x512xf32>
    %33 = arith.truncf %32 : vector<8x512xf32> to vector<8x512xbf16>
    %c0_25 = arith.constant 0 : index
    %c0_26 = arith.constant 0 : index
    %c0_27 = arith.constant 0 : index
    %34 = vector.load %arg9[%c0_25, %c0_26, %c0_27] : memref<1x512x512xbf16, #tpu.memory_space<vmem>>, vector<1x512x512xbf16>
    %35 = vector.shape_cast %34 : vector<1x512x512xbf16> to vector<512x512xbf16>
    %c0_28 = arith.constant 0 : index
    %c0_29 = arith.constant 0 : index
    %c0_30 = arith.constant 0 : index
    %36 = vector.load %arg10[%c0_28, %c0_29, %c0_30] : memref<1x1x512xf32, #tpu.memory_space<vmem>>, vector<1x1x512xf32>
    %37 = vector.shape_cast %36 : vector<1x1x512xf32> to vector<1x512xf32>
    %cst_31 = arith.constant dense<0.000000e+00> : vector<8x512xf32>
    %38 = tpu.matmul %33, %35, %cst_31 {dimension_numbers = #tpu.dot_dimension_numbers<[1], [0], [0], [1], [0, 0, 1, 1], [], []>} : vector<8x512xbf16>, vector<512x512xbf16>, vector<8x512xf32> -> vector<8x512xf32>
    %39 = vector.broadcast %37 : vector<1x512xf32> to vector<8x512xf32>
    %40 = arith.addf %38, %39 : vector<8x512xf32>
    %c0_32 = arith.constant 0 : index
    %c0_33 = arith.constant 0 : index
    %c0_34 = arith.constant 0 : index
    %41 = vector.load %arg11[%c0_32, %c0_33, %c0_34] : memref<1x8x512xf32, #tpu.memory_space<vmem>>, vector<1x8x512xf32>
    %42 = vector.shape_cast %41 : vector<1x8x512xf32> to vector<8x512xf32>
    %43 = vector.shape_cast %40 : vector<8x512xf32> to vector<1x8x512xf32>
    tpu.vector_store %arg11[%c0_32, %c0_33, %c0_34], %43 {strides = array<i32>} : memref<1x8x512xf32, #tpu.memory_space<vmem>>, vector<1x8x512xf32>,
    return
  }
  func.func @transform_0(%arg0: i32, %arg1: i32) -> (i32, i32) {
    %c0_i32 = arith.constant 0 : i32
    %c0_i32_0 = arith.constant 0 : i32
    return %arg1, %c0_i32 : i32, i32
  }
  func.func @transform_1(%arg0: i32, %arg1: i32) -> (i32, i32, i32) {
    %c0_i32 = arith.constant 0 : i32
    %c0_i32_0 = arith.constant 0 : i32
    %c0_i32_1 = arith.constant 0 : i32
    return %arg0, %c0_i32, %c0_i32_0 : i32, i32, i32
  }
  func.func @transform_2(%arg0: i32, %arg1: i32) -> (i32, i32, i32) {
    %c0_i32 = arith.constant 0 : i32
    %c0_i32_0 = arith.constant 0 : i32
    %c0_i32_1 = arith.constant 0 : i32
    return %arg0, %c0_i32, %c0_i32_0 : i32, i32, i32
  }
  func.func @transform_3(%arg0: i32, %arg1: i32) -> (i32, i32, i32) {
    %c0_i32 = arith.constant 0 : i32
    %c0_i32_0 = arith.constant 0 : i32
    %c0_i32_1 = arith.constant 0 : i32
    return %arg0, %c0_i32, %c0_i32_0 : i32, i32, i32
  }
  func.func @transform_4(%arg0: i32, %arg1: i32) -> (i32, i32, i32) {
    %c0_i32 = arith.constant 0 : i32
    %c0_i32_0 = arith.constant 0 : i32
    %c0_i32_1 = arith.constant 0 : i32
    return %arg0, %c0_i32, %c0_i32_0 : i32, i32, i32
  }
  func.func @transform_5(%arg0: i32, %arg1: i32) -> (i32, i32, i32) {
    %c0_i32 = arith.constant 0 : i32
    %c0_i32_0 = arith.constant 0 : i32
    %c0_i32_1 = arith.constant 0 : i32
    return %arg0, %c0_i32, %c0_i32_0 : i32, i32, i32
  }
  func.func @transform_6(%arg0: i32, %arg1: i32) -> (i32, i32, i32) {
    %c0_i32 = arith.constant 0 : i32
    %c0_i32_0 = arith.constant 0 : i32
    %c0_i32_1 = arith.constant 0 : i32
    return %arg0, %c0_i32, %c0_i32_0 : i32, i32, i32
  }
  func.func @transform_7(%arg0: i32, %arg1: i32) -> (i32, i32, i32) {
    %c0_i32 = arith.constant 0 : i32
    %c0_i32_0 = arith.constant 0 : i32
    %c0_i32_1 = arith.constant 0 : i32
    return %arg0, %c0_i32, %c0_i32_0 : i32, i32, i32
  }
  func.func @transform_8(%arg0: i32, %arg1: i32) -> (i32, i32, i32) {
    %c0_i32 = arith.constant 0 : i32
    %c0_i32_0 = arith.constant 0 : i32
    %c0_i32_1 = arith.constant 0 : i32
    return %arg0, %c0_i32, %c0_i32_0 : i32, i32, i32
  }
  func.func @transform_9(%arg0: i32, %arg1: i32) -> (i32, i32, i32) {
    %c0_i32 = arith.constant 0 : i32
    %c0_i32_0 = arith.constant 0 : i32
    return %arg0, %arg1, %c0_i32 : i32, i32, i32
  }
}

</mosaic_0001>

<llo_original>
// kernel: rnd_forward.4
$region0: #{rnd_forward.4}
  #allocation0 [shape = 'u32[]', space=smem, size = 0x4, offset = 0x4, fixed_abs, tag = 'smem constant byte address 0x4 - core index']
  #allocation1 [shape = 'u32[144,128]{1,0:T(1,128)}', space=vmem, size = 0x12000, scoped, tag = 'internal scratch']
  %s0 = inlined_call_operand.vmem [shape: f32[8,5632], index: 0, kind: input, shape index: {}]
  %s1 = inlined_call_operand.vmem [shape: f32[1,5632], index: 1, kind: input, shape index: {}]
  %s2 = inlined_call_operand.vmem [shape: f32[1,5632], index: 2, kind: input, shape index: {}]
  %s3 = inlined_call_operand.vmem [shape: bf16[8,5632], index: 3, kind: output, shape index: {}]
  %s4 = sld [smem:[#allocation0]]
  $region45: #{rnd_forward.4} parent=0
    _
  %s6 = ssub.s32 1, %s4
  %s7 = scalar_select 0, %s6, %s4
  loop: start=0, step=1, limit=13
  $region2: #{rnd_forward.4} parent=0 // loop_pre_header
    _
  $region3: #{rnd_forward.4} parent=0 // loop_header
    %s9 = sphi 0, %s13
    %p10 = scmp.ge.s32.totalorder %s9, 13
    %s16 = sphi 0, %s28
    %s17 = sphi 0, %s24
    %s18 = sphi 0, %s16
    %s19 = sphi 0, %s17
    %s20 = sphi 0, %s18
    %s21 = sphi 0, %s19
    %s33 = sphi 0, %s35
    %s36 = sphi 0, %s33
    %s37 = sphi 0, %s36
    %s53 = sphi 0, %s37
    %s59 = sphi 0, %s61
    %s62 = sphi 0, %s59
    %s63 = sphi 0, %s62
    %s79 = sphi 0, %s63
    %s85 = sphi 0, %s87
    %s88 = sphi 0, %s85
    %s89 = sphi 0, %s88
    %s105 = sphi 0, %s89
    %s113 = sphi 0, %s115
    %s116 = sphi 0, %s113
    %s117 = sphi 0, %s116
    %s133 = sphi 0, %s117
  $region4: #{rnd_forward.4} parent=0 // loop_header_branch
    %12 = sbr.rel (%p10) target = $region8
  $region5: #{rnd_forward.4} parent=0 // loop_body
    %s14 = ssub.s32 %s9, 1
    %s15 = ssub.s32 %s9, 2
    %s22 = sadd.s32 1, %s17
    %p23 = scmp.ge.s32.totalorder %s22, 11
    %s24 = scalar_select %p23, 0, %s22
    %s25 = sadd.s32 1, %s16
    %s26 = scalar_select %p23, %s25, %s16
    %p27 = scmp.ge.s32.totalorder %s26, 1
    %s28 = scalar_select %p27, 0, %s26
    %s29 = ssub.s32 %s16, %s28
    %s30 = ssub.s32 %s17, %s24
    %s31 = sor.u32 %s29, %s30
    %p32 = scmp.eq.s32.totalorder %s31, 0
    %s34 = sadd.s32 %s33, 1
    %s35 = scalar_select %p32, %s33, %s34
    %p38 = pneg %p32
    %p39 = scmp.eq.s32.totalorder %s9, 10
    %p40 = por %p38, %p39
    %p41 = scmp.ne.s32.totalorder %s33, %s36
    %p42 = scmp.eq.s32.totalorder %s9, 0
    %p43 = por %p41, %p42
    %p44 = scmp.ne.s32.totalorder %s33, %s36
    %p45 = scmp.eq.s32.totalorder %s14, 10
    %p46 = por %p44, %p45
    %p47 = scmp.ne.s32.totalorder %s36, %s37
    %p48 = scmp.eq.s32.totalorder %s14, 0
    %p49 = por %p47, %p48
    %p50 = scmp.ne.s32.totalorder %s36, %s37
    %p51 = scmp.eq.s32.totalorder %s15, 10
    %p52 = por %p50, %p51
    %p54 = scmp.ne.s32.totalorder %s37, %s53
    %p55 = scmp.eq.s32.totalorder %s15, 0
    %p56 = por %p54, %p55
    %s57 = ssub.s32 %s17, %s24
    %p58 = scmp.eq.s32.totalorder %s57, 0
    %s60 = sadd.s32 %s59, 1
    %s61 = scalar_select %p58, %s59, %s60
    %p64 = pneg %p58
    %p65 = scmp.eq.s32.totalorder %s9, 10
    %p66 = por %p64, %p65
    %p67 = scmp.ne.s32.totalorder %s59, %s62
    %p68 = scmp.eq.s32.totalorder %s9, 0
    %p69 = por %p67, %p68
    %p70 = scmp.ne.s32.totalorder %s59, %s62
    %p71 = scmp.eq.s32.totalorder %s14, 10
    %p72 = por %p70, %p71
    %p73 = scmp.ne.s32.totalorder %s62, %s63
    %p74 = scmp.eq.s32.totalorder %s14, 0
    %p75 = por %p73, %p74
    %p76 = scmp.ne.s32.totalorder %s62, %s63
    %p77 = scmp.eq.s32.totalorder %s15, 10
    %p78 = por %p76, %p77
    %p80 = scmp.ne.s32.totalorder %s63, %s79
    %p81 = scmp.eq.s32.totalorder %s15, 0
    %p82 = por %p80, %p81
    %s83 = ssub.s32 %s17, %s24
    %p84 = scmp.eq.s32.totalorder %s83, 0
    %s86 = sadd.s32 %s85, 1
    %s87 = scalar_select %p84, %s85, %s86
    %p90 = pneg %p84
    %p91 = scmp.eq.s32.totalorder %s9, 10
    %p92 = por %p90, %p91
    %p93 = scmp.ne.s32.totalorder %s85, %s88
    %p94 = scmp.eq.s32.totalorder %s9, 0
    %p95 = por %p93, %p94
    %p96 = scmp.ne.s32.totalorder %s85, %s88
    %p97 = scmp.eq.s32.totalorder %s14, 10
    %p98 = por %p96, %p97
    %p99 = scmp.ne.s32.totalorder %s88, %s89
    %p100 = scmp.eq.s32.totalorder %s14, 0
    %p101 = por %p99, %p100
    %p102 = scmp.ne.s32.totalorder %s88, %s89
    %p103 = scmp.eq.s32.totalorder %s15, 10
    %p104 = por %p102, %p103
    %p106 = scmp.ne.s32.totalorder %s89, %s105
    %p107 = scmp.eq.s32.totalorder %s15, 0
    %p108 = por %p106, %p107
    %s109 = ssub.s32 %s16, %s28
    %s110 = ssub.s32 %s17, %s24
    %s111 = sor.u32 %s109, %s110
    %p112 = scmp.eq.s32.totalorder %s111, 0
    %s114 = sadd.s32 %s113, 1
    %s115 = scalar_select %p112, %s113, %s114
    %p118 = pneg %p112
    %p119 = scmp.eq.s32.totalorder %s9, 10
    %p120 = por %p118, %p119
    %p121 = scmp.ne.s32.totalorder %s113, %s116
    %p122 = scmp.eq.s32.totalorder %s9, 0
    %p123 = por %p121, %p122
    %p124 = scmp.ne.s32.totalorder %s113, %s116
    %p125 = scmp.eq.s32.totalorder %s14, 10
    %p126 = por %p124, %p125
    %p127 = scmp.ne.s32.totalorder %s116, %s117
    %p128 = scmp.eq.s32.totalorder %s14, 0
    %p129 = por %p127, %p128
    %p130 = scmp.ne.s32.totalorder %s116, %s117
    %p131 = scmp.eq.s32.totalorder %s15, 10
    %p132 = por %p130, %p131
    %p134 = scmp.ne.s32.totalorder %s117, %s133
    %p135 = scmp.eq.s32.totalorder %s15, 0
    %p136 = por %p134, %p135
    %p137 = scmp.le.s32.totalorder 1, %s9
    %p138 = scmp.lt.s32.totalorder %s9, 12
    %p139 = pnand %p137, %p138
    %p140 = pneg %p139
    // Predicated region
    $region9: #{rnd_forward.4} parent=5 // pred_check
      _
    $region10: #{rnd_forward.4} parent=5 // pred_check_branch
      %142 = sbr.rel (%p139) target = $region12
    $region11: #{rnd_forward.4} parent=5 // pred_region
      %s143 = ssub.s32 %s9, 1
    $region12: #{rnd_forward.4} parent=5 // pred_fallthru
      _
    %p144 = scmp.lt.s32.totalorder %s9, 11
    // Predicated region
    $region13: #{rnd_forward.4} parent=5 // pred_check
      %p145 = pneg %p144
    $region14: #{rnd_forward.4} parent=5 // pred_check_branch
      %147 = sbr.rel (%p145) target = $region16
    $region15: #{rnd_forward.4} parent=5 // pred_region
      // Predicated region
      $region17: #{rnd_forward.4} parent=15 // pred_check
        %p148 = pneg %p43
      $region18: #{rnd_forward.4} parent=15 // pred_check_branch
        %150 = sbr.rel (%p148) target = $region20
      $region19: #{rnd_forward.4} parent=15 // pred_region
        %s151 = smul.u32 4, %s17
        %p152 = scmp.lt.s32.totalorder %s16, 0
        %s153 = scalar_select %p152, %s16, 0
        %p154 = scmp.lt.s32.totalorder %s151, 43
        %s155 = scalar_select %p154, %s151, 43
        %s156 = smul.addr %s153, 44
        %s157 = sadd.s32 %s155, %s156
        %s158 = smul.addr %s157, 8
        %s159 = scalar_lea.vmem %s0, %s158
        %s160 = smul.u32 4, %s17
      $region20: #{rnd_forward.4} parent=15 // pred_fallthru
        _
      // Predicated region
      $region21: #{rnd_forward.4} parent=15 // pred_check
        %p161 = pneg %p69
      $region22: #{rnd_forward.4} parent=15 // pred_check_branch
        %163 = sbr.rel (%p161) target = $region24
      $region23: #{rnd_forward.4} parent=15 // pred_region
        %s164 = smul.u32 4, %s17
        %p165 = scmp.lt.s32.totalorder %s164, 43
        %s166 = scalar_select %p165, %s164, 43
        %s167 = scalar_lea.vmem %s1, %s166
        %s168 = smul.u32 4, %s17
      $region24: #{rnd_forward.4} parent=15 // pred_fallthru
        _
      // Predicated region
      $region25: #{rnd_forward.4} parent=15 // pred_check
        %p169 = pneg %p95
      $region26: #{rnd_forward.4} parent=15 // pred_check_branch
        %171 = sbr.rel (%p169) target = $region28
      $region27: #{rnd_forward.4} parent=15 // pred_region
        %s172 = smul.u32 4, %s17
        %p173 = scmp.lt.s32.totalorder %s172, 43
        %s174 = scalar_select %p173, %s172, 43
        %s175 = scalar_lea.vmem %s2, %s174
        %s176 = smul.u32 4, %s17
      $region28: #{rnd_forward.4} parent=15 // pred_fallthru
        _
    $region16: #{rnd_forward.4} parent=5 // pred_fallthru
      _
    %p177 = scmp.le.s32.totalorder 1, %s9
    %p178 = scmp.lt.s32.totalorder %s9, 12
    %p179 = pnand %p177, %p178
    %p180 = pneg %p179
    // Predicated region
    $region29: #{rnd_forward.4} parent=5 // pred_check
      _
    $region30: #{rnd_forward.4} parent=5 // pred_check_branch
      %182 = sbr.rel (%p179) target = $region32
    $region31: #{rnd_forward.4} parent=5 // pred_region
      %s183 = ssub.s32 %s9, 1
      %s184 = smul.u32 4, %s19
      %p185 = scmp.lt.s32.totalorder %s18, 0
      %s186 = scalar_select %p185, %s18, 0
      %p187 = scmp.lt.s32.totalorder %s184, 43
      %s188 = scalar_select %p187, %s184, 43
      %s189 = smul.addr %s186, 44
      %s190 = sadd.s32 %s188, %s189
      %s191 = smul.addr %s190, 8
      %s192 = scalar_lea.vmem %s0, %s191
      %p193 = pneg %p49
      %p194 = pneg %p46
      %s195 = smul.u32 4, %s19
      %p196 = scmp.lt.s32.totalorder %s195, 43
      %s197 = scalar_select %p196, %s195, 43
      %s198 = scalar_lea.vmem %s1, %s197
      %p199 = pneg %p75
      %p200 = pneg %p72
      %s201 = smul.u32 4, %s19
      %p202 = scmp.lt.s32.totalorder %s201, 43
      %s203 = scalar_select %p202, %s201, 43
      %s204 = scalar_lea.vmem %s2, %s203
      %p205 = pneg %p101
      %p206 = pneg %p98
      %p207 = pneg %p129
      %p208 = pneg %p126
      %s209 = smul.u32 4, %s19
      %p210 = scmp.lt.s32.totalorder %s18, 0
      %s211 = scalar_select %p210, %s18, 0
      %p212 = scmp.lt.s32.totalorder %s209, 43
      %s213 = scalar_select %p212, %s209, 43
      %s214 = smul.addr %s211, 44
      %s215 = sadd.s32 %s213, %s214
      %s216 = smul.addr %s215, 4
      %s217 = scalar_lea.vmem %s3, %s216
      %s218 = smul.u32 4, %s19
      %p219 = scmp.lt.s32.totalorder %s18, 0
      %s220 = scalar_select %p219, %s18, 0
      %p221 = scmp.lt.s32.totalorder %s218, 43
      %s222 = scalar_select %p221, %s218, 43
      %s223 = smul.addr %s220, 44
      %s224 = sadd.s32 %s222, %s223
      %s225 = smul.addr %s224, 8
      %s226 = scalar_lea.vmem %s0, %s225
      %s227 = smul.u32 4, %s19
      %s228 = smul.u32 4, %s19
      %p229 = scmp.lt.s32.totalorder %s228, 43
      %s230 = scalar_select %p229, %s228, 43
      %s231 = scalar_lea.vmem %s1, %s230
      %s232 = smul.u32 4, %s19
      %s233 = smul.u32 4, %s19
      %p234 = scmp.lt.s32.totalorder %s233, 43
      %s235 = scalar_select %p234, %s233, 43
      %s236 = scalar_lea.vmem %s2, %s235
      %s237 = smul.u32 4, %s19
      %s238 = smul.u32 4, %s19
      %p239 = scmp.lt.s32.totalorder %s18, 0
      %s240 = scalar_select %p239, %s18, 0
      %p241 = scmp.lt.s32.totalorder %s238, 43
      %s242 = scalar_select %p241, %s238, 43
      %s243 = smul.addr %s240, 44
      %s244 = sadd.s32 %s242, %s243
      %s245 = smul.addr %s244, 4
      %s246 = scalar_lea.vmem %s3, %s245
      %s247 = smul.u32 4, %s19
      %v248 = vld [vmem:[%s226] sm:$0xff]
      %v249 = vld [vmem:[%s226 + $0x8] sm:$0xff]
      %v250 = vld [vmem:[%s226 + $0x10] sm:$0xff]
      %v251 = vld [vmem:[%s226 + $0x18] sm:$0xff]
      %v252 = vld [vmem:[%s231] sm:$0xf]
      %v254 = vlaneseq
      %v255 = vshrl.u32 %v254, 7
      %v256 = vsub.s32 0, %v255
      %v257 = vrot.slane %v252, %v256
      %v258 = vlaneseq
      %v259 = vshrl.u32 %v258, 7
      %v260 = vsub.s32 1, %v259
      %v261 = vrot.slane %v252, %v260
      %v262 = vlaneseq
      %v263 = vshrl.u32 %v262, 7
      %v264 = vsub.s32 2, %v263
      %v265 = vrot.slane %v252, %v264
      %v266 = vlaneseq
      %v267 = vshrl.u32 %v266, 7
      %v268 = vsub.s32 3, %v267
      %v269 = vrot.slane %v252, %v268
      %v274 = vsub.f32 %v248, %v257
      %v275 = vsub.f32 %v249, %v261
      %v276 = vsub.f32 %v250, %v265
      %v277 = vsub.f32 %v251, %v269
      %v278 = vld [vmem:[%s236] sm:$0xf]
      %v280 = vlaneseq
      %v281 = vshrl.u32 %v280, 7
      %v282 = vsub.s32 0, %v281
      %v283 = vrot.slane %v278, %v282
      %v284 = vlaneseq
      %v285 = vshrl.u32 %v284, 7
      %v286 = vsub.s32 1, %v285
      %v287 = vrot.slane %v278, %v286
      %v288 = vlaneseq
      %v289 = vshrl.u32 %v288, 7
      %v290 = vsub.s32 2, %v289
      %v291 = vrot.slane %v278, %v290
      %v292 = vlaneseq
      %v293 = vshrl.u32 %v292, 7
      %v294 = vsub.s32 3, %v293
      %v295 = vrot.slane %v278, %v294
      %v300 = vmul.f32 %v274, %v283
      %v301 = vmul.f32 %v275, %v287
      %v302 = vmul.f32 %v276, %v291
      %v303 = vmul.f32 %v277, %v295
      %v304 = vmax.f32 %v300, -5.0
      %v305 = vmax.f32 %v301, -5.0
      %v306 = vmax.f32 %v302, -5.0
      %v307 = vmax.f32 %v303, -5.0
      %v308 = vmin.f32 %v304, 5.0
      %v309 = vmin.f32 %v305, 5.0
      %v310 = vmin.f32 %v306, 5.0
      %v311 = vmin.f32 %v307, 5.0
      %v312 = vpack.c.bf16 %v308, %v308
      %v313 = vpack.c.bf16 %v309, %v309
      %v314 = vpack.c.bf16 %v310, %v310
      %v315 = vpack.c.bf16 %v311, %v311
      %v320 = vunpack.c.l.b16 %v312
      %v321 = vunpack.c.l.b16 %v313
      %v322 = vunpack.c.l.b16 %v314
      %v323 = vunpack.c.l.b16 %v315
      %v324 = vpack.c.b16 %v321, %v320
      %v325 = vpack.c.b16 %v323, %v322
      %328 = vst [vmem:[%s246] sm:$0xff] %v324
      %329 = vst [vmem:[%s246 + $0x8] sm:$0xff] %v325
      %s330 = smul.u32 4, %s19
      %p331 = scmp.lt.s32.totalorder %s18, 0
      %s332 = scalar_select %p331, %s18, 0
      %p333 = scmp.lt.s32.totalorder %s330, 43
      %s334 = scalar_select %p333, %s330, 43
      %s335 = smul.addr %s332, 44
      %s336 = sadd.s32 %s334, %s335
      %s337 = smul.addr %s336, 4
      %s338 = scalar_lea.vmem %s3, %s337
      // Predicated region
      $region33: #{rnd_forward.4} parent=31 // pred_check
        %p339 = pneg %p126
      $region34: #{rnd_forward.4} parent=31 // pred_check_branch
        %341 = sbr.rel (%p339) target = $region36
      $region35: #{rnd_forward.4} parent=31 // pred_region
        %s342 = smul.u32 4, %s19
      $region36: #{rnd_forward.4} parent=31 // pred_fallthru
        _
    $region32: #{rnd_forward.4} parent=5 // pred_fallthru
      _
    %p343 = scmp.le.s32.totalorder 2, %s9
    // Predicated region
    $region37: #{rnd_forward.4} parent=5 // pred_check
      %p344 = pneg %p343
    $region38: #{rnd_forward.4} parent=5 // pred_check_branch
      %346 = sbr.rel (%p344) target = $region40
    $region39: #{rnd_forward.4} parent=5 // pred_region
      %s347 = ssub.s32 %s9, 2
      // Predicated region
      $region41: #{rnd_forward.4} parent=39 // pred_check
        %p348 = pneg %p132
      $region42: #{rnd_forward.4} parent=39 // pred_check_branch
        %350 = sbr.rel (%p348) target = $region44
      $region43: #{rnd_forward.4} parent=39 // pred_region
        %s351 = smul.u32 4, %s21
        %p352 = scmp.lt.s32.totalorder %s20, 0
        %s353 = scalar_select %p352, %s20, 0
        %p354 = scmp.lt.s32.totalorder %s351, 43
        %s355 = scalar_select %p354, %s351, 43
        %s356 = smul.addr %s353, 44
        %s357 = sadd.s32 %s355, %s356
        %s358 = smul.addr %s357, 4
        %s359 = scalar_lea.vmem %s3, %s358
      $region44: #{rnd_forward.4} parent=39 // pred_fallthru
        _
    $region40: #{rnd_forward.4} parent=5 // pred_fallthru
      _
  $region6: #{rnd_forward.4} parent=0 // loop_footer
    %s13 = sadd.s32 1, %s9
  $region7: #{rnd_forward.4} parent=0 // loop_footer_branch
    %8 = sbr.rel target = $region3
  $region8: #{rnd_forward.4} parent=0 // loop_exit
    _

// kernel: rnd_forward.5
$region0: #{rnd_forward.5}
  #allocation0 [shape = 'u32[]', space=smem, size = 0x4, offset = 0x4, fixed_abs, tag = 'smem constant byte address 0x4 - core index']
  #allocation1 [shape = 'u32[144,128]{1,0:T(1,128)}', space=vmem, size = 0x12000, scoped, tag = 'internal scratch']
  %s0 = inlined_call_operand.vmem [shape: bf16[256,256], index: 0, kind: input, shape index: {}]
  %s1 = inlined_call_operand.vmem [shape: bf16[256,128], index: 1, kind: input, shape index: {}]
  %s2 = inlined_call_operand.vmem [shape: f32[1,128], index: 2, kind: input, shape index: {}]
  %s3 = inlined_call_operand.vmem [shape: bf16[256,128], index: 3, kind: output, shape index: {}]
  %s4 = sld [smem:[#allocation0]]
  $region22: #{rnd_forward.5} parent=0
    _
  %s6 = ssub.s32 1, %s4
  %s7 = scalar_select 0, %s6, %s4
  // Predicated region
  $region2: #{rnd_forward.5} parent=0 // pred_check
    _
  $region3: #{rnd_forward.5} parent=0 // pred_check_branch
    %9 = sbr.rel (0) target = $region5
  $region4: #{rnd_forward.5} parent=0 // pred_region
    _
  $region5: #{rnd_forward.5} parent=0 // pred_fallthru
    _
  // Predicated region
  $region6: #{rnd_forward.5} parent=0 // pred_check
    _
  $region7: #{rnd_forward.5} parent=0 // pred_check_branch
    %11 = sbr.rel (0) target = $region9
  $region8: #{rnd_forward.5} parent=0 // pred_region
    _
  $region9: #{rnd_forward.5} parent=0 // pred_fallthru
    _
  // Predicated region
  $region10: #{rnd_forward.5} parent=0 // pred_check
    _
  $region11: #{rnd_forward.5} parent=0 // pred_check_branch
    %13 = sbr.rel (0) target = $region13
  $region12: #{rnd_forward.5} parent=0 // pred_region
    _
  $region13: #{rnd_forward.5} parent=0 // pred_fallthru
    _
  %v15 = vld [vmem:[%s0] sm:$0xff]
  %v16 = vld [vmem:[%s0 + $0x8] sm:$0xff]
  %v17 = vld [vmem:[%s0 + $0x10] sm:$0xff]
  %v18 = vld [vmem:[%s0 + $0x18] sm:$0xff]
  %v19 = vld [vmem:[%s0 + $0x20] sm:$0xff]
  %v20 = vld [vmem:[%s0 + $0x28] sm:$0xff]
  %v21 = vld [vmem:[%s0 + $0x30] sm:$0xff]
  %v22 = vld [vmem:[%s0 + $0x38] sm:$0xff]
  %v23 = vld [vmem:[%s0 + $0x40] sm:$0xff]
  %v24 = vld [vmem:[%s0 + $0x48] sm:$0xff]
  %v25 = vld [vmem:[%s0 + $0x50] sm:$0xff]
  %v26 = vld [vmem:[%s0 + $0x58] sm:$0xff]
  %v27 = vld [vmem:[%s0 + $0x60] sm:$0xff]
  %v28 = vld [vmem:[%s0 + $0x68] sm:$0xff]
  %v29 = vld [vmem:[%s0 + $0x70] sm:$0xff]
  %v30 = vld [vmem:[%s0 + $0x78] sm:$0xff]
  %v31 = vld [vmem:[%s0 + $0x80] sm:$0xff]
  %v32 = vld [vmem:[%s0 + $0x88] sm:$0xff]
  %v33 = vld [vmem:[%s0 + $0x90] sm:$0xff]
  %v34 = vld [vmem:[%s0 + $0x98] sm:$0xff]
  %v35 = vld [vmem:[%s0 + $0xa0] sm:$0xff]
  %v36 = vld [vmem:[%s0 + $0xa8] sm:$0xff]
  %v37 = vld [vmem:[%s0 + $0xb0] sm:$0xff]
  %v38 = vld [vmem:[%s0 + $0xb8] sm:$0xff]
  %v39 = vld [vmem:[%s0 + $0xc0] sm:$0xff]
  %v40 = vld [vmem:[%s0 + $0xc8] sm:$0xff]
  %v41 = vld [vmem:[%s0 + $0xd0] sm:$0xff]
  %v42 = vld [vmem:[%s0 + $0xd8] sm:$0xff]
  %v43 = vld [vmem:[%s0 + $0xe0] sm:$0xff]
  %v44 = vld [vmem:[%s0 + $0xe8] sm:$0xff]
  %v45 = vld [vmem:[%s0 + $0xf0] sm:$0xff]
  %v46 = vld [vmem:[%s0 + $0xf8] sm:$0xff]
  %v47 = vld [vmem:[%s1] sm:$0xf]
  %v48 = vld [vmem:[%s1 + $0x4] sm:$0xf]
  %v49 = vld [vmem:[%s1 + $0x8] sm:$0xf]
  %v50 = vld [vmem:[%s1 + $0xc] sm:$0xf]
  %v51 = vld [vmem:[%s1 + $0x10] sm:$0xf]
  %v52 = vld [vmem:[%s1 + $0x14] sm:$0xf]
  %v53 = vld [vmem:[%s1 + $0x18] sm:$0xf]
  %v54 = vld [vmem:[%s1 + $0x1c] sm:$0xf]
  %v55 = vld [vmem:[%s1 + $0x20] sm:$0xf]
  %v56 = vld [vmem:[%s1 + $0x24] sm:$0xf]
  %v57 = vld [vmem:[%s1 + $0x28] sm:$0xf]
  %v58 = vld [vmem:[%s1 + $0x2c] sm:$0xf]
  %v59 = vld [vmem:[%s1 + $0x30] sm:$0xf]
  %v60 = vld [vmem:[%s1 + $0x34] sm:$0xf]
  %v61 = vld [vmem:[%s1 + $0x38] sm:$0xf]
  %v62 = vld [vmem:[%s1 + $0x3c] sm:$0xf]
  %v63 = vld [vmem:[%s1 + $0x40] sm:$0xf]
  %v64 = vld [vmem:[%s1 + $0x44] sm:$0xf]
  %v65 = vld [vmem:[%s1 + $0x48] sm:$0xf]
  %v66 = vld [vmem:[%s1 + $0x4c] sm:$0xf]
  %v67 = vld [vmem:[%s1 + $0x50] sm:$0xf]
  %v68 = vld [vmem:[%s1 + $0x54] sm:$0xf]
  %v69 = vld [vmem:[%s1 + $0x58] sm:$0xf]
  %v70 = vld [vmem:[%s1 + $0x5c] sm:$0xf]
  %v71 = vld [vmem:[%s1 + $0x60] sm:$0xf]
  %v72 = vld [vmem:[%s1 + $0x64] sm:$0xf]
  %v73 = vld [vmem:[%s1 + $0x68] sm:$0xf]
  %v74 = vld [vmem:[%s1 + $0x6c] sm:$0xf]
  %v75 = vld [vmem:[%s1 + $0x70] sm:$0xf]
  %v76 = vld [vmem:[%s1 + $0x74] sm:$0xf]
  %v77 = vld [vmem:[%s1 + $0x78] sm:$0xf]
  %v78 = vld [vmem:[%s1 + $0x7c] sm:$0xf]
  %v79 = vld [vmem:[%s2] sm:$0x1]
  %v81 = vlaneseq
  %v82 = vshrl.u32 %v81, 7
  %v83 = vsub.s32 0, %v82
  %v84 = vrot.slane %v79, %v83
  %v118 = vunpack.c.l.b16 %v15
  %v119 = vunpack.c.h.b16 %v15
  %v120 = vunpack.c.l.b16 %v16
  %v121 = vunpack.c.h.b16 %v16
  %v122 = vunpack.c.l.b16 %v17
  %v123 = vunpack.c.h.b16 %v17
  %v124 = vunpack.c.l.b16 %v18
  %v125 = vunpack.c.h.b16 %v18
  %v126 = vunpack.c.l.b16 %v19
  %v127 = vunpack.c.h.b16 %v19
  %v128 = vunpack.c.l.b16 %v20
  %v129 = vunpack.c.h.b16 %v20
  %v130 = vunpack.c.l.b16 %v21
  %v131 = vunpack.c.h.b16 %v21
  %v132 = vunpack.c.l.b16 %v22
  %v133 = vunpack.c.h.b16 %v22
  %v134 = vunpack.c.l.b16 %v23
  %v135 = vunpack.c.h.b16 %v23
  %v136 = vunpack.c.l.b16 %v24
  %v137 = vunpack.c.h.b16 %v24
  %v138 = vunpack.c.l.b16 %v25
  %v139 = vunpack.c.h.b16 %v25
  %v140 = vunpack.c.l.b16 %v26
  %v141 = vunpack.c.h.b16 %v26
  %v142 = vunpack.c.l.b16 %v27
  %v143 = vunpack.c.h.b16 %v27
  %v144 = vunpack.c.l.b16 %v28
  %v145 = vunpack.c.h.b16 %v28
  %v146 = vunpack.c.l.b16 %v29
  %v147 = vunpack.c.h.b16 %v29
  %v148 = vunpack.c.l.b16 %v30
  %v149 = vunpack.c.h.b16 %v30
  %v150 = vunpack.c.l.b16 %v31
  %v151 = vunpack.c.h.b16 %v31
  %v152 = vunpack.c.l.b16 %v32
  %v153 = vunpack.c.h.b16 %v32
  %v154 = vunpack.c.l.b16 %v33
  %v155 = vunpack.c.h.b16 %v33
  %v156 = vunpack.c.l.b16 %v34
  %v157 = vunpack.c.h.b16 %v34
  %v158 = vunpack.c.l.b16 %v35
  %v159 = vunpack.c.h.b16 %v35
  %v160 = vunpack.c.l.b16 %v36
  %v161 = vunpack.c.h.b16 %v36
  %v162 = vunpack.c.l.b16 %v37
  %v163 = vunpack.c.h.b16 %v37
  %v164 = vunpack.c.l.b16 %v38
  %v165 = vunpack.c.h.b16 %v38
  %v166 = vunpack.c.l.b16 %v39
  %v167 = vunpack.c.h.b16 %v39
  %v168 = vunpack.c.l.b16 %v40
  %v169 = vunpack.c.h.b16 %v40
  %v170 = vunpack.c.l.b16 %v41
  %v171 = vunpack.c.h.b16 %v41
  %v172 = vunpack.c.l.b16 %v42
  %v173 = vunpack.c.h.b16 %v42
  %v174 = vunpack.c.l.b16 %v43
  %v175 = vunpack.c.h.b16 %v43
  %v176 = vunpack.c.l.b16 %v44
  %v177 = vunpack.c.h.b16 %v44
  %v178 = vunpack.c.l.b16 %v45
  %v179 = vunpack.c.h.b16 %v45
  %v180 = vunpack.c.l.b16 %v46
  %v181 = vunpack.c.h.b16 %v46
  %v182 = vpack.c.b16 %v120, %v118
  %v183 = vpack.c.b16 %v121, %v119
  %v184 = vpack.c.b16 %v124, %v122
  %v185 = vpack.c.b16 %v125, %v123
  %v186 = vpack.c.b16 %v128, %v126
  %v187 = vpack.c.b16 %v129, %v127
  %v188 = vpack.c.b16 %v132, %v130
  %v189 = vpack.c.b16 %v133, %v131
  %v190 = vpack.c.b16 %v136, %v134
  %v191 = vpack.c.b16 %v137, %v135
  %v192 = vpack.c.b16 %v140, %v138
  %v193 = vpack.c.b16 %v141, %v139
  %v194 = vpack.c.b16 %v144, %v142
  %v195 = vpack.c.b16 %v145, %v143
  %v196 = vpack.c.b16 %v148, %v146
  %v197 = vpack.c.b16 %v149, %v147
  %v198 = vpack.c.b16 %v152, %v150
  %v199 = vpack.c.b16 %v153, %v151
  %v200 = vpack.c.b16 %v156, %v154
  %v201 = vpack.c.b16 %v157, %v155
  %v202 = vpack.c.b16 %v160, %v158
  %v203 = vpack.c.b16 %v161, %v159
  %v204 = vpack.c.b16 %v164, %v162
  %v205 = vpack.c.b16 %v165, %v163
  %v206 = vpack.c.b16 %v168, %v166
  %v207 = vpack.c.b16 %v169, %v167
  %v208 = vpack.c.b16 %v172, %v170
  %v209 = vpack.c.b16 %v173, %v171
  %v210 = vpack.c.b16 %v176, %v174
  %v211 = vpack.c.b16 %v177, %v175
  %v212 = vpack.c.b16 %v180, %v178
  %v213 = vpack.c.b16 %v181, %v179
  %v278 = vunpack.c.l.b16 %v47
  %v279 = vunpack.c.l.b16 %v48
  %v280 = vunpack.c.l.b16 %v49
  %v281 = vunpack.c.l.b16 %v50
  %v282 = vunpack.c.l.b16 %v51
  %v283 = vunpack.c.l.b16 %v52
  %v284 = vunpack.c.l.b16 %v53
  %v285 = vunpack.c.l.b16 %v54
  %v286 = vunpack.c.l.b16 %v55
  %v287 = vunpack.c.l.b16 %v56
  %v288 = vunpack.c.l.b16 %v57
  %v289 = vunpack.c.l.b16 %v58
  %v290 = vunpack.c.l.b16 %v59
  %v291 = vunpack.c.l.b16 %v60
  %v292 = vunpack.c.l.b16 %v61
  %v293 = vunpack.c.l.b16 %v62
  %v294 = vunpack.c.l.b16 %v63
  %v295 = vunpack.c.l.b16 %v64
  %v296 = vunpack.c.l.b16 %v65
  %v297 = vunpack.c.l.b16 %v66
  %v298 = vunpack.c.l.b16 %v67
  %v299 = vunpack.c.l.b16 %v68
  %v300 = vunpack.c.l.b16 %v69
  %v301 = vunpack.c.l.b16 %v70
  %v302 = vunpack.c.l.b16 %v71
  %v303 = vunpack.c.l.b16 %v72
  %v304 = vunpack.c.l.b16 %v73
  %v305 = vunpack.c.l.b16 %v74
  %v306 = vunpack.c.l.b16 %v75
  %v307 = vunpack.c.l.b16 %v76
  %v308 = vunpack.c.l.b16 %v77
  %v309 = vunpack.c.l.b16 %v78
  %v310 = vpack.c.b16 %v279, %v278
  %v311 = vpack.c.b16 %v281, %v280
  %v312 = vpack.c.b16 %v283, %v282
  %v313 = vpack.c.b16 %v285, %v284
  %v314 = vpack.c.b16 %v287, %v286
  %v315 = vpack.c.b16 %v289, %v288
  %v316 = vpack.c.b16 %v291, %v290
  %v317 = vpack.c.b16 %v293, %v292
  %v318 = vpack.c.b16 %v295, %v294
  %v319 = vpack.c.b16 %v297, %v296
  %v320 = vpack.c.b16 %v299, %v298
  %v321 = vpack.c.b16 %v301, %v300
  %v322 = vpack.c.b16 %v303, %v302
  %v323 = vpack.c.b16 %v305, %v304
  %v324 = vpack.c.b16 %v307, %v306
  %v325 = vpack.c.b16 %v309, %v308
  %342 = vmatprep.subr.bf16.mxu0 0
  %343 = vmatpush1.bf16.msra.mxu0 %v310
  %344 = vmatprep.subr.bf16.mxu0 0
  %345 = vmatpush1.bf16.msra.mxu0 %v311
  %346 = vmatprep.subr.bf16.mxu0 0
  %347 = vmatpush1.bf16.msra.mxu0 %v312
  %348 = vmatprep.subr.bf16.mxu0 0
  %349 = vmatpush1.bf16.msra.mxu0 %v313
  %350 = vmatprep.subr.bf16.mxu0 0
  %351 = vmatpush1.bf16.msra.mxu0 %v314
  %352 = vmatprep.subr.bf16.mxu0 0
  %353 = vmatpush1.bf16.msra.mxu0 %v315
  %354 = vmatprep.subr.bf16.mxu0 0
  %355 = vmatpush1.bf16.msra.mxu0 %v316
  %356 = vmatprep.subr.bf16.mxu0 0
  %357 = vmatpush1.bf16.msra.mxu0 %v317
  %358 = vmatprep.subr.bf16.mxu0 0
  %359 = vmatpush1.bf16.msra.mxu0 %v318
  %360 = vmatprep.subr.bf16.mxu0 0
  %361 = vmatpush1.bf16.msra.mxu0 %v319
  %362 = vmatprep.subr.bf16.mxu0 0
  %363 = vmatpush1.bf16.msra.mxu0 %v320
  %364 = vmatprep.subr.bf16.mxu0 0
  %365 = vmatpush1.bf16.msra.mxu0 %v321
  %366 = vmatprep.subr.bf16.mxu0 0
  %367 = vmatpush1.bf16.msra.mxu0 %v322
  %368 = vmatprep.subr.bf16.mxu0 0
  %369 = vmatpush1.bf16.msra.mxu0 %v323
  %370 = vmatprep.subr.bf16.mxu0 0
  %371 = vmatpush1.bf16.msra.mxu0 %v324
  %372 = vmatprep.subr.bf16.mxu0 0
  %373 = vmatpush1.bf16.msra.mxu0 %v325
  %374 = vmatprep.mubr.bf16.mxu0 %v183
  %375 = vmatmul.mubr.bf16.gmra.mrb[0].mxu0 %v182
  %v376 = vpop.f32.mrb[0].mxu0
  %v377 = vadd.f32 %v84, %v376
  %v378 = vpop.f32.mrb[0].mxu0
  %v379 = vpop.f32.mrb[0].mxu0
  %v380 = vadd.f32 %v84, %v379
  %v381 = vpop.f32.mrb[0].mxu0
  %382 = vmatprep.mubr.bf16.mxu0 %v185
  %383 = vmatmul.mubr.bf16.gmra.mrb[0].mxu0 %v184
  %v384 = vpop.f32.mrb[0].mxu0
  %v385 = vadd.f32 %v84, %v384
  %v386 = vpop.f32.mrb[0].mxu0
  %v387 = vpop.f32.mrb[0].mxu0
  %v388 = vadd.f32 %v84, %v387
  %v389 = vpop.f32.mrb[0].mxu0
  %390 = vmatprep.mubr.bf16.mxu0 %v187
  %391 = vmatmul.mubr.bf16.gmra.mrb[0].mxu0 %v186
  %v392 = vpop.f32.mrb[0].mxu0
  %v393 = vadd.f32 %v84, %v392
  %v394 = vpop.f32.mrb[0].mxu0
  %v395 = vpop.f32.mrb[0].mxu0
  %v396 = vadd.f32 %v84, %v395
  %v397 = vpop.f32.mrb[0].mxu0
  %398 = vmatprep.mubr.bf16.mxu0 %v189
  %399 = vmatmul.mubr.bf16.gmra.mrb[0].mxu0 %v188
  %v400 = vpop.f32.mrb[0].mxu0
  %v401 = vadd.f32 %v84, %v400
  %v402 = vpop.f32.mrb[0].mxu0
  %v403 = vpop.f32.mrb[0].mxu0
  %v404 = vadd.f32 %v84, %v403
  %v405 = vpop.f32.mrb[0].mxu0
  %406 = vmatprep.mubr.bf16.mxu0 %v191
  %407 = vmatmul.mubr.bf16.gmra.mrb[0].mxu0 %v190
  %v408 = vpop.f32.mrb[0].mxu0
  %v409 = vadd.f32 %v84, %v408
  %v410 = vpop.f32.mrb[0].mxu0
  %v411 = vpop.f32.mrb[0].mxu0
  %v412 = vadd.f32 %v84, %v411
  %v413 = vpop.f32.mrb[0].mxu0
  %414 = vmatprep.mubr.bf16.mxu0 %v193
  %415 = vmatmul.mubr.bf16.gmra.mrb[0].mxu0 %v192
  %v416 = vpop.f32.mrb[0].mxu0
  %v417 = vadd.f32 %v84, %v416
  %v418 = vpop.f32.mrb[0].mxu0
  %v419 = vpop.f32.mrb[0].mxu0
  %v420 = vadd.f32 %v84, %v419
  %v421 = vpop.f32.mrb[0].mxu0
  %422 = vmatprep.mubr.bf16.mxu0 %v195
  %423 = vmatmul.mubr.bf16.gmra.mrb[0].mxu0 %v194
  %v424 = vpop.f32.mrb[0].mxu0
  %v425 = vadd.f32 %v84, %v424
  %v426 = vpop.f32.mrb[0].mxu0
  %v427 = vpop.f32.mrb[0].mxu0
  %v428 = vadd.f32 %v84, %v427
  %v429 = vpop.f32.mrb[0].mxu0
  %430 = vmatprep.mubr.bf16.mxu0 %v197
  %431 = vmatmul.mubr.bf16.gmra.mrb[0].mxu0 %v196
  %v432 = vpop.f32.mrb[0].mxu0
  %v433 = vadd.f32 %v84, %v432
  %v434 = vpop.f32.mrb[0].mxu0
  %v435 = vpop.f32.mrb[0].mxu0
  %v436 = vadd.f32 %v84, %v435
  %v437 = vpop.f32.mrb[0].mxu0
  %438 = vmatprep.mubr.bf16.mxu0 %v199
  %439 = vmatmul.mubr.bf16.gmra.mrb[0].mxu0 %v198
  %v440 = vpop.f32.mrb[0].mxu0
  %v441 = vadd.f32 %v84, %v440
  %v442 = vpop.f32.mrb[0].mxu0
  %v443 = vpop.f32.mrb[0].mxu0
  %v444 = vadd.f32 %v84, %v443
  %v445 = vpop.f32.mrb[0].mxu0
  %446 = vmatprep.mubr.bf16.mxu0 %v201
  %447 = vmatmul.mubr.bf16.gmra.mrb[0].mxu0 %v200
  %v448 = vpop.f32.mrb[0].mxu0
  %v449 = vadd.f32 %v84, %v448
  %v450 = vpop.f32.mrb[0].mxu0
  %v451 = vpop.f32.mrb[0].mxu0
  %v452 = vadd.f32 %v84, %v451
  %v453 = vpop.f32.mrb[0].mxu0
  %454 = vmatprep.mubr.bf16.mxu0 %v203
  %455 = vmatmul.mubr.bf16.gmra.mrb[0].mxu0 %v202
  %v456 = vpop.f32.mrb[0].mxu0
  %v457 = vadd.f32 %v84, %v456
  %v458 = vpop.f32.mrb[0].mxu0
  %v459 = vpop.f32.mrb[0].mxu0
  %v460 = vadd.f32 %v84, %v459
  %v461 = vpop.f32.mrb[0].mxu0
  %462 = vmatprep.mubr.bf16.mxu0 %v205
  %463 = vmatmul.mubr.bf16.gmra.mrb[0].mxu0 %v204
  %v464 = vpop.f32.mrb[0].mxu0
  %v465 = vadd.f32 %v84, %v464
  %v466 = vpop.f32.mrb[0].mxu0
  %v467 = vpop.f32.mrb[0].mxu0
  %v468 = vadd.f32 %v84, %v467
  %v469 = vpop.f32.mrb[0].mxu0
  %470 = vmatprep.mubr.bf16.mxu0 %v207
  %471 = vmatmul.mubr.bf16.gmra.mrb[0].mxu0 %v206
  %v472 = vpop.f32.mrb[0].mxu0
  %v473 = vadd.f32 %v84, %v472
  %v474 = vpop.f32.mrb[0].mxu0
  %v475 = vpop.f32.mrb[0].mxu0
  %v476 = vadd.f32 %v84, %v475
  %v477 = vpop.f32.mrb[0].mxu0
  %478 = vmatprep.mubr.bf16.mxu0 %v209
  %479 = vmatmul.mubr.bf16.gmra.mrb[0].mxu0 %v208
  %v480 = vpop.f32.mrb[0].mxu0
  %v481 = vadd.f32 %v84, %v480
  %v482 = vpop.f32.mrb[0].mxu0
  %v483 = vpop.f32.mrb[0].mxu0
  %v484 = vadd.f32 %v84, %v483
  %v485 = vpop.f32.mrb[0].mxu0
  %486 = vmatprep.mubr.bf16.mxu0 %v211
  %487 = vmatmul.mubr.bf16.gmra.mrb[0].mxu0 %v210
  %v488 = vpop.f32.mrb[0].mxu0
  %v489 = vadd.f32 %v84, %v488
  %v490 = vpop.f32.mrb[0].mxu0
  %v491 = vpop.f32.mrb[0].mxu0
  %v492 = vadd.f32 %v84, %v491
  %v493 = vpop.f32.mrb[0].mxu0
  %494 = vmatprep.mubr.bf16.mxu0 %v213
  %495 = vmatmul.mubr.bf16.gmra.mrb[0].mxu0 %v212
  %v496 = vpop.f32.mrb[0].mxu0
  %v497 = vadd.f32 %v84, %v496
  %v498 = vpop.f32.mrb[0].mxu0
  %v499 = vpop.f32.mrb[0].mxu0
  %v500 = vadd.f32 %v84, %v499
  %v501 = vpop.f32.mrb[0].mxu0
  %502 = vdwg.mxu0
  %vm503 = vcmp.ge.f32.partialorder %v377, 0.0
  %vm504 = vcmp.ge.f32.partialorder %v380, 0.0
  %vm505 = vcmp.ge.f32.partialorder %v385, 0.0
  %vm506 = vcmp.ge.f32.partialorder %v388, 0.0
  %vm507 = vcmp.ge.f32.partialorder %v393, 0.0
  %vm508 = vcmp.ge.f32.partialorder %v396, 0.0
  %vm509 = vcmp.ge.f32.partialorder %v401, 0.0
  %vm510 = vcmp.ge.f32.partialorder %v404, 0.0
  %vm511 = vcmp.ge.f32.partialorder %v409, 0.0
  %vm512 = vcmp.ge.f32.partialorder %v412, 0.0
  %vm513 = vcmp.ge.f32.partialorder %v417, 0.0
  %vm514 = vcmp.ge.f32.partialorder %v420, 0.0
  %vm515 = vcmp.ge.f32.partialorder %v425, 0.0
  %vm516 = vcmp.ge.f32.partialorder %v428, 0.0
  %vm517 = vcmp.ge.f32.partialorder %v433, 0.0
  %vm518 = vcmp.ge.f32.partialorder %v436, 0.0
  %vm519 = vcmp.ge.f32.partialorder %v441, 0.0
  %vm520 = vcmp.ge.f32.partialorder %v444, 0.0
  %vm521 = vcmp.ge.f32.partialorder %v449, 0.0
  %vm522 = vcmp.ge.f32.partialorder %v452, 0.0
  %vm523 = vcmp.ge.f32.partialorder %v457, 0.0
  %vm524 = vcmp.ge.f32.partialorder %v460, 0.0
  %vm525 = vcmp.ge.f32.partialorder %v465, 0.0
  %vm526 = vcmp.ge.f32.partialorder %v468, 0.0
  %vm527 = vcmp.ge.f32.partialorder %v473, 0.0
  %vm528 = vcmp.ge.f32.partialorder %v476, 0.0
  %vm529 = vcmp.ge.f32.partialorder %v481, 0.0
  %vm530 = vcmp.ge.f32.partialorder %v484, 0.0
  %vm531 = vcmp.ge.f32.partialorder %v489, 0.0
  %vm532 = vcmp.ge.f32.partialorder %v492, 0.0
  %vm533 = vcmp.ge.f32.partialorder %v497, 0.0
  %vm534 = vcmp.ge.f32.partialorder %v500, 0.0
  %v535 = vmul.f32 %v377, 0.01
  %v536 = vmul.f32 %v380, 0.01
  %v537 = vmul.f32 %v385, 0.01
  %v538 = vmul.f32 %v388, 0.01
  %v539 = vmul.f32 %v393, 0.01
  %v540 = vmul.f32 %v396, 0.01
  %v541 = vmul.f32 %v401, 0.01
  %v542 = vmul.f32 %v404, 0.01
  %v543 = vmul.f32 %v409, 0.01
  %v544 = vmul.f32 %v412, 0.01
  %v545 = vmul.f32 %v417, 0.01
  %v546 = vmul.f32 %v420, 0.01
  %v547 = vmul.f32 %v425, 0.01
  %v548 = vmul.f32 %v428, 0.01
  %v549 = vmul.f32 %v433, 0.01
  %v550 = vmul.f32 %v436, 0.01
  %v551 = vmul.f32 %v441, 0.01
  %v552 = vmul.f32 %v444, 0.01
  %v553 = vmul.f32 %v449, 0.01
  %v554 = vmul.f32 %v452, 0.01
  %v555 = vmul.f32 %v457, 0.01
  %v556 = vmul.f32 %v460, 0.01
  %v557 = vmul.f32 %v465, 0.01
  %v558 = vmul.f32 %v468, 0.01
  %v559 = vmul.f32 %v473, 0.01
  %v560 = vmul.f32 %v476, 0.01
  %v561 = vmul.f32 %v481, 0.01
  %v562 = vmul.f32 %v484, 0.01
  %v563 = vmul.f32 %v489, 0.01
  %v564 = vmul.f32 %v492, 0.01
  %v565 = vmul.f32 %v497, 0.01
  %v566 = vmul.f32 %v500, 0.01
  %v567 = vsel %vm503, %v377, %v535
  %v568 = vsel %vm504, %v380, %v536
  %v569 = vsel %vm505, %v385, %v537
  %v570 = vsel %vm506, %v388, %v538
  %v571 = vsel %vm507, %v393, %v539
  %v572 = vsel %vm508, %v396, %v540
  %v573 = vsel %vm509, %v401, %v541
  %v574 = vsel %vm510, %v404, %v542
  %v575 = vsel %vm511, %v409, %v543
  %v576 = vsel %vm512, %v412, %v544
  %v577 = vsel %vm513, %v417, %v545
  %v578 = vsel %vm514, %v420, %v546
  %v579 = vsel %vm515, %v425, %v547
  %v580 = vsel %vm516, %v428, %v548
  %v581 = vsel %vm517, %v433, %v549
  %v582 = vsel %vm518, %v436, %v550
  %v583 = vsel %vm519, %v441, %v551
  %v584 = vsel %vm520, %v444, %v552
  %v585 = vsel %vm521, %v449, %v553
  %v586 = vsel %vm522, %v452, %v554
  %v587 = vsel %vm523, %v457, %v555
  %v588 = vsel %vm524, %v460, %v556
  %v589 = vsel %vm525, %v465, %v557
  %v590 = vsel %vm526, %v468, %v558
  %v591 = vsel %vm527, %v473, %v559
  %v592 = vsel %vm528, %v476, %v560
  %v593 = vsel %vm529, %v481, %v561
  %v594 = vsel %vm530, %v484, %v562
  %v595 = vsel %vm531, %v489, %v563
  %v596 = vsel %vm532, %v492, %v564
  %v597 = vsel %vm533, %v497, %v565
  %v598 = vsel %vm534, %v500, %v566
  %v599 = vpack.c.bf16 %v568, %v567
  %v600 = vpack.c.bf16 %v570, %v569
  %v601 = vpack.c.bf16 %v572, %v571
  %v602 = vpack.c.bf16 %v574, %v573
  %v603 = vpack.c.bf16 %v576, %v575
  %v604 = vpack.c.bf16 %v578, %v577
  %v605 = vpack.c.bf16 %v580, %v579
  %v606 = vpack.c.bf16 %v582, %v581
  %v607 = vpack.c.bf16 %v584, %v583
  %v608 = vpack.c.bf16 %v586, %v585
  %v609 = vpack.c.bf16 %v588, %v587
  %v610 = vpack.c.bf16 %v590, %v589
  %v611 = vpack.c.bf16 %v592, %v591
  %v612 = vpack.c.bf16 %v594, %v593
  %v613 = vpack.c.bf16 %v596, %v595
  %v614 = vpack.c.bf16 %v598, %v597
  %v631 = vunpack.c.l.b16 %v599
  %v632 = vunpack.c.h.b16 %v599
  %v633 = vunpack.c.l.b16 %v600
  %v634 = vunpack.c.h.b16 %v600
  %v635 = vunpack.c.l.b16 %v601
  %v636 = vunpack.c.h.b16 %v601
  %v637 = vunpack.c.l.b16 %v602
  %v638 = vunpack.c.h.b16 %v602
  %v639 = vunpack.c.l.b16 %v603
  %v640 = vunpack.c.h.b16 %v603
  %v641 = vunpack.c.l.b16 %v604
  %v642 = vunpack.c.h.b16 %v604
  %v643 = vunpack.c.l.b16 %v605
  %v644 = vunpack.c.h.b16 %v605
  %v645 = vunpack.c.l.b16 %v606
  %v646 = vunpack.c.h.b16 %v606
  %v647 = vunpack.c.l.b16 %v607
  %v648 = vunpack.c.h.b16 %v607
  %v649 = vunpack.c.l.b16 %v608
  %v650 = vunpack.c.h.b16 %v608
  %v651 = vunpack.c.l.b16 %v609
  %v652 = vunpack.c.h.b16 %v609
  %v653 = vunpack.c.l.b16 %v610
  %v654 = vunpack.c.h.b16 %v610
  %v655 = vunpack.c.l.b16 %v611
  %v656 = vunpack.c.h.b16 %v611
  %v657 = vunpack.c.l.b16 %v612
  %v658 = vunpack.c.h.b16 %v612
  %v659 = vunpack.c.l.b16 %v613
  %v660 = vunpack.c.h.b16 %v613
  %v661 = vunpack.c.l.b16 %v614
  %v662 = vunpack.c.h.b16 %v614
  %v663 = vpack.c.b16 %v631, %v631
  %v664 = vpack.c.b16 %v632, %v632
  %v665 = vpack.c.b16 %v633, %v633
  %v666 = vpack.c.b16 %v634, %v634
  %v667 = vpack.c.b16 %v635, %v635
  %v668 = vpack.c.b16 %v636, %v636
  %v669 = vpack.c.b16 %v637, %v637
  %v670 = vpack.c.b16 %v638, %v638
  %v671 = vpack.c.b16 %v639, %v639
  %v672 = vpack.c.b16 %v640, %v640
  %v673 = vpack.c.b16 %v641, %v641
  %v674 = vpack.c.b16 %v642, %v642
  %v675 = vpack.c.b16 %v643, %v643
  %v676 = vpack.c.b16 %v644, %v644
  %v677 = vpack.c.b16 %v645, %v645
  %v678 = vpack.c.b16 %v646, %v646
  %v679 = vpack.c.b16 %v647, %v647
  %v680 = vpack.c.b16 %v648, %v648
  %v681 = vpack.c.b16 %v649, %v649
  %v682 = vpack.c.b16 %v650, %v650
  %v683 = vpack.c.b16 %v651, %v651
  %v684 = vpack.c.b16 %v652, %v652
  %v685 = vpack.c.b16 %v653, %v653
  %v686 = vpack.c.b16 %v654, %v654
  %v687 = vpack.c.b16 %v655, %v655
  %v688 = vpack.c.b16 %v656, %v656
  %v689 = vpack.c.b16 %v657, %v657
  %v690 = vpack.c.b16 %v658, %v658
  %v691 = vpack.c.b16 %v659, %v659
  %v692 = vpack.c.b16 %v660, %v660
  %v693 = vpack.c.b16 %v661, %v661
  %v694 = vpack.c.b16 %v662, %v662
  %727 = vst [vmem:[%s3] sm:$0xf] %v663
  %728 = vst [vmem:[%s3 + $0x4] sm:$0xf] %v664
  %729 = vst [vmem:[%s3 + $0x8] sm:$0xf] %v665
  %730 = vst [vmem:[%s3 + $0xc] sm:$0xf] %v666
  %731 = vst [vmem:[%s3 + $0x10] sm:$0xf] %v667
  %732 = vst [vmem:[%s3 + $0x14] sm:$0xf] %v668
  %733 = vst [vmem:[%s3 + $0x18] sm:$0xf] %v669
  %734 = vst [vmem:[%s3 + $0x1c] sm:$0xf] %v670
  %735 = vst [vmem:[%s3 + $0x20] sm:$0xf] %v671
  %736 = vst [vmem:[%s3 + $0x24] sm:$0xf] %v672
  %737 = vst [vmem:[%s3 + $0x28] sm:$0xf] %v673
  %738 = vst [vmem:[%s3 + $0x2c] sm:$0xf] %v674
  %739 = vst [vmem:[%s3 + $0x30] sm:$0xf] %v675
  %740 = vst [vmem:[%s3 + $0x34] sm:$0xf] %v676
  %741 = vst [vmem:[%s3 + $0x38] sm:$0xf] %v677
  %742 = vst [vmem:[%s3 + $0x3c] sm:$0xf] %v678
  %743 = vst [vmem:[%s3 + $0x40] sm:$0xf] %v679
  %744 = vst [vmem:[%s3 + $0x44] sm:$0xf] %v680
  %745 = vst [vmem:[%s3 + $0x48] sm:$0xf] %v681
  %746 = vst [vmem:[%s3 + $0x4c] sm:$0xf] %v682
  %747 = vst [vmem:[%s3 + $0x50] sm:$0xf] %v683
  %748 = vst [vmem:[%s3 + $0x54] sm:$0xf] %v684
  %749 = vst [vmem:[%s3 + $0x58] sm:$0xf] %v685
  %750 = vst [vmem:[%s3 + $0x5c] sm:$0xf] %v686
  %751 = vst [vmem:[%s3 + $0x60] sm:$0xf] %v687
  %752 = vst [vmem:[%s3 + $0x64] sm:$0xf] %v688
  %753 = vst [vmem:[%s3 + $0x68] sm:$0xf] %v689
  %754 = vst [vmem:[%s3 + $0x6c] sm:$0xf] %v690
  %755 = vst [vmem:[%s3 + $0x70] sm:$0xf] %v691
  %756 = vst [vmem:[%s3 + $0x74] sm:$0xf] %v692
  %757 = vst [vmem:[%s3 + $0x78] sm:$0xf] %v693
  %758 = vst [vmem:[%s3 + $0x7c] sm:$0xf] %v694
  // Predicated region
  $region14: #{rnd_forward.5} parent=0 // pred_check
    _
  $region15: #{rnd_forward.5} parent=0 // pred_check_branch
    %760 = sbr.rel (0) target = $region17
  $region16: #{rnd_forward.5} parent=0 // pred_region
    _
  $region17: #{rnd_forward.5} parent=0 // pred_fallthru
    _
  // Predicated region
  $region18: #{rnd_forward.5} parent=0 // pred_check
    _
  $region19: #{rnd_forward.5} parent=0 // pred_check_branch
    %762 = sbr.rel (0) target = $region21
  $region20: #{rnd_forward.5} parent=0 // pred_region
    _
  $region21: #{rnd_forward.5} parent=0 // pred_fallthru
    _

// kernel: squeeze.2
$region0: #{squeeze.2}
  %s0 = inlined_call_operand.vmem [shape: f32[1,4,512], index: 0, kind: input, shape index: {}]
  %s1 = inlined_call_operand.hbm [shape: f32[2,2,512], index: 1, kind: output, shape index: {}]
  $region1: #{squeeze.2} parent=0
    #allocation0 [shape = 'u8[8192]{0}', space=vmem, size = 0x2000, scoped, tag = 'operand span for operand 1']
    #allocation1 [shape = 's32[1]{0}', space=sflag, size = 0x4, scoped, tag = 'scoped memory for squeeze.2']
    #allocation2 [shape = 'u8[32768]{0}', space=vmem, size = 0x8000, scoped, tag = 'scoped mem for output reshape']
    #allocation3 [shape = 'u8[16384]{0}', space=vmem, size = 0x4000, scoped, tag = 'scoped mem for input reshape']
    %2 = vsyncpa [#allocation1], 0
    %s4 = sshllo.u32 0, 4
    %s5 = smul.addr 4, 3
    %s6 = scalar_lea.vmem %s0, %s5
    %v7 = vld [vmem:[%s6] sm:%s4]
    %s8 = scalar_lea.vmem [#allocation3], 24
    %9 = vst [vmem:[%s8] sm:%s4] %v7
    %s10 = smul.addr 4, 2
    %s11 = scalar_lea.vmem %s0, %s10
    %v12 = vld [vmem:[%s11] sm:%s4]
    %s13 = scalar_lea.vmem [#allocation3], 16
    %14 = vst [vmem:[%s13] sm:%s4] %v12
    %s15 = scalar_lea.vmem %s0, 4
    %v16 = vld [vmem:[%s15] sm:%s4]
    %s17 = scalar_lea.vmem [#allocation3], 8
    %18 = vst [vmem:[%s17] sm:%s4] %v16
    %v19 = vld [vmem:[%s0] sm:%s4]
    %20 = vst [vmem:[#allocation3] sm:%s4] %v19
    %v21 = vld [vmem:[#allocation3] sm:$0xf]
    %22 = vst [vmem:[#allocation2] sm:$0x3] %v21
    %s23 = scalar_lea.vmem [#allocation2], 30
    %24 = vst [vmem:[%s23] sm:$0xc] %v21
    %s25 = scalar_lea.vmem [#allocation3], 8
    %v26 = vld [vmem:[%s25] sm:$0xf]
    %s27 = scalar_lea.vmem [#allocation2], 8
    %28 = vst [vmem:[%s27] sm:$0x3] %v26
    %s29 = scalar_lea.vmem [#allocation2], 38
    %30 = vst [vmem:[%s29] sm:$0xc] %v26
    %s31 = scalar_lea.vmem [#allocation3], 16
    %v32 = vld [vmem:[%s31] sm:$0xf]
    %s33 = scalar_lea.vmem [#allocation2], 16
    %34 = vst [vmem:[%s33] sm:$0x3] %v32
    %s35 = scalar_lea.vmem [#allocation2], 46
    %36 = vst [vmem:[%s35] sm:$0xc] %v32
    %s37 = scalar_lea.vmem [#allocation3], 24
    %v38 = vld [vmem:[%s37] sm:$0xf]
    %s39 = scalar_lea.vmem [#allocation2], 24
    %40 = vst [vmem:[%s39] sm:$0x3] %v38
    %s41 = scalar_lea.vmem [#allocation2], 54
    %42 = vst [vmem:[%s41] sm:$0xc] %v38
    %s44 = sshllo.u32 0, 2
    %v46 = vld [vmem:[#allocation2] sm:%s44]
    %s47 = sshllo.u32 0, 2
    %48 = vst [vmem:[#allocation0] sm:%s47] %v46
    %s49 = scalar_lea.vmem [#allocation2], 8
    %v50 = vld [vmem:[%s49] sm:%s44]
    %s51 = sshllo.u32 0, 2
    %s52 = scalar_lea.vmem [#allocation0], 2
    %53 = vst [vmem:[%s52] sm:%s51] %v50
    %s54 = scalar_lea.vmem [#allocation2], 16
    %v55 = vld [vmem:[%s54] sm:%s44]
    %s56 = sshllo.u32 0, 2
    %s57 = smul.addr 2, 2
    %s58 = scalar_lea.vmem [#allocation0], %s57
    %59 = vst [vmem:[%s58] sm:%s56] %v55
    %s60 = scalar_lea.vmem [#allocation2], 24
    %v61 = vld [vmem:[%s60] sm:%s44]
    %s62 = sshllo.u32 0, 2
    %s63 = smul.addr 2, 3
    %s64 = scalar_lea.vmem [#allocation0], %s63
    %65 = vst [vmem:[%s64] sm:%s62] %v61
    %s66 = scalar_lea.vmem [#allocation2], 32
    %v67 = vld [vmem:[%s66] sm:%s44]
    %s68 = sshllo.u32 0, 2
    %s69 = smul.addr 2, 4
    %s70 = scalar_lea.vmem [#allocation0], %s69
    %71 = vst [vmem:[%s70] sm:%s68] %v67
    %s72 = scalar_lea.vmem [#allocation2], 40
    %v73 = vld [vmem:[%s72] sm:%s44]
    %s74 = sshllo.u32 0, 2
    %s75 = smul.addr 2, 5
    %s76 = scalar_lea.vmem [#allocation0], %s75
    %77 = vst [vmem:[%s76] sm:%s74] %v73
    %s78 = scalar_lea.vmem [#allocation2], 48
    %v79 = vld [vmem:[%s78] sm:%s44]
    %s80 = sshllo.u32 0, 2
    %s81 = smul.addr 2, 6
    %s82 = scalar_lea.vmem [#allocation0], %s81
    %83 = vst [vmem:[%s82] sm:%s80] %v79
    %s84 = scalar_lea.vmem [#allocation2], 56
    %v85 = vld [vmem:[%s84] sm:%s44]
    %s86 = sshllo.u32 0, 2
    %s87 = smul.addr 2, 7
    %s88 = scalar_lea.vmem [#allocation0], %s87
    %89 = vst [vmem:[%s88] sm:%s86] %v85
    %s91 = ssub.s32 256, 256
    %92 = vsyncadd [#allocation1], %s91
    %s94 = sshll.u32 [#allocation0], 4
    %s95 = int_to_ptr.vmem [resolvable:$true] %s94
    %97 = dma.vmem_to_hbm [thread:$0]  %s95, 256, %s1, [#allocation1]
    %98 = dma.done [#allocation1], 256
    %99 = vsyncpa [#allocation1], 1

// kernel: rnd_forward.6
$region0: #{rnd_forward.6}
  #allocation0 [shape = 'u32[]', space=smem, size = 0x4, offset = 0x4, fixed_abs, tag = 'smem constant byte address 0x4 - core index']
  #allocation1 [shape = 'u32[144,128]{1,0:T(1,128)}', space=vmem, size = 0x12000, scoped, tag = 'internal scratch']
  %s0 = inlined_call_operand.vmem [shape: bf16[40,2048], index: 0, kind: input, shape index: {}]
  %s1 = inlined_call_operand.vmem [shape: bf16[2048,128], index: 1, kind: input, shape index: {}]
  %s2 = inlined_call_operand.vmem [shape: f32[1,128], index: 2, kind: input, shape index: {}]
  %s3 = inlined_call_operand.vmem [shape: bf16[40,128], index: 3, kind: output, shape index: {}]
  %s4 = sld [smem:[#allocation0]]
  $region22: #{rnd_forward.6} parent=0
    _
  %s6 = ssub.s32 1, %s4
  %s7 = scalar_select 0, %s6, %s4
  // Predicated region
  $region2: #{rnd_forward.6} parent=0 // pred_check
    _
  $region3: #{rnd_forward.6} parent=0 // pred_check_branch
    %9 = sbr.rel (0) target = $region5
  $region4: #{rnd_forward.6} parent=0 // pred_region
    _
  $region5: #{rnd_forward.6} parent=0 // pred_fallthru
    _
  // Predicated region
  $region6: #{rnd_forward.6} parent=0 // pred_check
    _
  $region7: #{rnd_forward.6} parent=0 // pred_check_branch
    %11 = sbr.rel (0) target = $region9
  $region8: #{rnd_forward.6} parent=0 // pred_region
    _
  $region9: #{rnd_forward.6} parent=0 // pred_fallthru
    _
  // Predicated region
  $region10: #{rnd_forward.6} parent=0 // pred_check
    _
  $region11: #{rnd_forward.6} parent=0 // pred_check_branch
    %13 = sbr.rel (0) target = $region13
  $region12: #{rnd_forward.6} parent=0 // pred_region
    _
  $region13: #{rnd_forward.6} parent=0 // pred_fallthru
    _
  %v15 = vld [vmem:[%s0] sm:$0xff]
  %v16 = vld [vmem:[%s0 + $0x8] sm:$0xff]
  %v17 = vld [vmem:[%s0 + $0x10] sm:$0xff]
  %v18 = vld [vmem:[%s0 + $0x18] sm:$0xff]
  %v19 = vld [vmem:[%s0 + $0x20] sm:$0xff]
  %v20 = vld [vmem:[%s0 + $0x28] sm:$0xff]
  %v21 = vld [vmem:[%s0 + $0x30] sm:$0xff]
  %v22 = vld [vmem:[%s0 + $0x38] sm:$0xff]
  %v23 = vld [vmem:[%s0 + $0x40] sm:$0xff]
  %v24 = vld [vmem:[%s0 + $0x48] sm:$0xff]
  %v25 = vld [vmem:[%s0 + $0x50] sm:$0xff]
  %v26 = vld [vmem:[%s0 + $0x58] sm:$0xff]
  %v27 = vld [vmem:[%s0 + $0x60] sm:$0xff]
  %v28 = vld [vmem:[%s0 + $0x68] sm:$0xff]
  %v29 = vld [vmem:[%s0 + $0x70] sm:$0xff]
  %v30 = vld [vmem:[%s0 + $0x78] sm:$0xff]
  %v31 = vld [vmem:[%s0 + $0x80] sm:$0xff]
  %v32 = vld [vmem:[%s0 + $0x88] sm:$0xff]
  %v33 = vld [vmem:[%s0 + $0x90] sm:$0xff]
  %v34 = vld [vmem:[%s0 + $0x98] sm:$0xff]
  %v35 = vld [vmem:[%s0 + $0xa0] sm:$0xff]
  %v36 = vld [vmem:[%s0 + $0xa8] sm:$0xff]
  %v37 = vld [vmem:[%s0 + $0xb0] sm:$0xff]
  %v38 = vld [vmem:[%s0 + $0xb8] sm:$0xff]
  %v39 = vld [vmem:[%s0 + $0xc0] sm:$0xff]
  %v40 = vld [vmem:[%s0 + $0xc8] sm:$0xff]
  %v41 = vld [vmem:[%s0 + $0xd0] sm:$0xff]
  %v42 = vld [vmem:[%s0 + $0xd8] sm:$0xff]
  %v43 = vld [vmem:[%s0 + $0xe0] sm:$0xff]
  %v44 = vld [vmem:[%s0 + $0xe8] sm:$0xff]
  %v45 = vld [vmem:[%s0 + $0xf0] sm:$0xff]
  %v46 = vld [vmem:[%s0 + $0xf8] sm:$0xff]
  %v47 = vld [vmem:[%s0 + $0x100] sm:$0xff]
  %v48 = vld [vmem:[%s0 + $0x108] sm:$0xff]
  %v49 = vld [vmem:[%s0 + $0x110] sm:$0xff]
  %v50 = vld [vmem:[%s0 + $0x118] sm:$0xff]
  %v51 = vld [vmem:[%s0 + $0x120] sm:$0xff]
  %v52 = vld [vmem:[%s0 + $0x128] sm:$0xff]
  %v53 = vld [vmem:[%s0 + $0x130] sm:$0xff]
  %v54 = vld [vmem:[%s0 + $0x138] sm:$0xff]
  %v55 = vld [vmem:[%s1] sm:$0xf]
  %v56 = vld [vmem:[%s1 + $0x4] sm:$0xf]
  %v57 = vld [vmem:[%s1 + $0x8] sm:$0xf]
  %v58 = vld [vmem:[%s1 + $0xc] sm:$0xf]
  %v59 = vld [vmem:[%s1 + $0x10] sm:$0xf]
  %v60 = vld [vmem:[%s1 + $0x14] sm:$0xf]
  %v61 = vld [vmem:[%s1 + $0x18] sm:$0xf]
  %v62 = vld [vmem:[%s1 + $0x1c] sm:$0xf]
  %v63 = vld [vmem:[%s1 + $0x20] sm:$0xf]
  %v64 = vld [vmem:[%s1 + $0x24] sm:$0xf]
  %v65 = vld [vmem:[%s1 + $0x28] sm:$0xf]
  %v66 = vld [vmem:[%s1 + $0x2c] sm:$0xf]
  %v67 = vld [vmem:[%s1 + $0x30] sm:$0xf]
  %v68 = vld [vmem:[%s1 + $0x34] sm:$0xf]
  %v69 = vld [vmem:[%s1 + $0x38] sm:$0xf]
  %v70 = vld [vmem:[%s1 + $0x3c] sm:$0xf]
  %v71 = vld [vmem:[%s1 + $0x40] sm:$0xf]
  %v72 = vld [vmem:[%s1 + $0x44] sm:$0xf]
  %v73 = vld [vmem:[%s1 + $0x48] sm:$0xf]
  %v74 = vld [vmem:[%s1 + $0x4c] sm:$0xf]
  %v75 = vld [vmem:[%s1 + $0x50] sm:$0xf]
  %v76 = vld [vmem:[%s1 + $0x54] sm:$0xf]
  %v77 = vld [vmem:[%s1 + $0x58] sm:$0xf]
  %v78 = vld [vmem:[%s1 + $0x5c] sm:$0xf]
  %v79 = vld [vmem:[%s1 + $0x60] sm:$0xf]
  %v80 = vld [vmem:[%s1 + $0x64] sm:$0xf]
  %v81 = vld [vmem:[%s1 + $0x68] sm:$0xf]
  %v82 = vld [vmem:[%s1 + $0x6c] sm:$0xf]
  %v83 = vld [vmem:[%s1 + $0x70] sm:$0xf]
  %v84 = vld [vmem:[%s1 + $0x74] sm:$0xf]
  %v85 = vld [vmem:[%s1 + $0x78] sm:$0xf]
  %v86 = vld [vmem:[%s1 + $0x7c] sm:$0xf]
  %v87 = vld [vmem:[%s1 + $0x80] sm:$0xf]
  %v88 = vld [vmem:[%s1 + $0x84] sm:$0xf]
  %v89 = vld [vmem:[%s1 + $0x88] sm:$0xf]
  %v90 = vld [vmem:[%s1 + $0x8c] sm:$0xf]
  %v91 = vld [vmem:[%s1 + $0x90] sm:$0xf]
  %v92 = vld [vmem:[%s1 + $0x94] sm:$0xf]
  %v93 = vld [vmem:[%s1 + $0x98] sm:$0xf]
  %v94 = vld [vmem:[%s1 + $0x9c] sm:$0xf]
  %v95 = vld [vmem:[%s1 + $0xa0] sm:$0xf]
  %v96 = vld [vmem:[%s1 + $0xa4] sm:$0xf]
  %v97 = vld [vmem:[%s1 + $0xa8] sm:$0xf]
  %v98 = vld [vmem:[%s1 + $0xac] sm:$0xf]
  %v99 = vld [vmem:[%s1 + $0xb0] sm:$0xf]
  %v100 = vld [vmem:[%s1 + $0xb4] sm:$0xf]
  %v101 = vld [vmem:[%s1 + $0xb8] sm:$0xf]
  %v102 = vld [vmem:[%s1 + $0xbc] sm:$0xf]
  %v103 = vld [vmem:[%s1 + $0xc0] sm:$0xf]
  %v104 = vld [vmem:[%s1 + $0xc4] sm:$0xf]
  %v105 = vld [vmem:[%s1 + $0xc8] sm:$0xf]
  %v106 = vld [vmem:[%s1 + $0xcc] sm:$0xf]
  %v107 = vld [vmem:[%s1 + $0xd0] sm:$0xf]
  %v108 = vld [vmem:[%s1 + $0xd4] sm:$0xf]
  %v109 = vld [vmem:[%s1 + $0xd8] sm:$0xf]
  %v110 = vld [vmem:[%s1 + $0xdc] sm:$0xf]
  %v111 = vld [vmem:[%s1 + $0xe0] sm:$0xf]
  %v112 = vld [vmem:[%s1 + $0xe4] sm:$0xf]
  %v113 = vld [vmem:[%s1 + $0xe8] sm:$0xf]
  %v114 = vld [vmem:[%s1 + $0xec] sm:$0xf]
  %v115 = vld [vmem:[%s1 + $0xf0] sm:$0xf]
  %v116 = vld [vmem:[%s1 + $0xf4] sm:$0xf]
  %v117 = vld [vmem:[%s1 + $0xf8] sm:$0xf]
  %v118 = vld [vmem:[%s1 + $0xfc] sm:$0xf]
  %v119 = vld [vmem:[%s1 + $0x100] sm:$0xf]
  %v120 = vld [vmem:[%s1 + $0x104] sm:$0xf]
  %v121 = vld [vmem:[%s1 + $0x108] sm:$0xf]
  %v122 = vld [vmem:[%s1 + $0x10c] sm:$0xf]
  %v123 = vld [vmem:[%s1 + $0x110] sm:$0xf]
  %v124 = vld [vmem:[%s1 + $0x114] sm:$0xf]
  %v125 = vld [vmem:[%s1 + $0x118] sm:$0xf]
  %v126 = vld [vmem:[%s1 + $0x11c] sm:$0xf]
  %v127 = vld [vmem:[%s1 + $0x120] sm:$0xf]
  %v128 = vld [vmem:[%s1 + $0x124] sm:$0xf]
  %v129 = vld [vmem:[%s1 + $0x128] sm:$0xf]
  %v130 = vld [vmem:[%s1 + $0x12c] sm:$0xf]
  %v131 = vld [vmem:[%s1 + $0x130] sm:$0xf]
  %v132 = vld [vmem:[%s1 + $0x134] sm:$0xf]
  %v133 = vld [vmem:[%s1 + $0x138] sm:$0xf]
  %v134 = vld [vmem:[%s1 + $0x13c] sm:$0xf]
  %v135 = vld [vmem:[%s1 + $0x140] sm:$0xf]
  %v136 = vld [vmem:[%s1 + $0x144] sm:$0xf]
  %v137 = vld [vmem:[%s1 + $0x148] sm:$0xf]
  %v138 = vld [vmem:[%s1 + $0x14c] sm:$0xf]
  %v139 = vld [vmem:[%s1 + $0x150] sm:$0xf]
  %v140 = vld [vmem:[%s1 + $0x154] sm:$0xf]
  %v141 = vld [vmem:[%s1 + $0x158] sm:$0xf]
  %v142 = vld [vmem:[%s1 + $0x15c] sm:$0xf]
  %v143 = vld [vmem:[%s1 + $0x160] sm:$0xf]
  %v144 = vld [vmem:[%s1 + $0x164] sm:$0xf]
  %v145 = vld [vmem:[%s1 + $0x168] sm:$0xf]
  %v146 = vld [vmem:[%s1 + $0x16c] sm:$0xf]
  %v147 = vld [vmem:[%s1 + $0x170] sm:$0xf]
  %v148 = vld [vmem:[%s1 + $0x174] sm:$0xf]
  %v149 = vld [vmem:[%s1 + $0x178] sm:$0xf]
  %v150 = vld [vmem:[%s1 + $0x17c] sm:$0xf]
  %v151 = vld [vmem:[%s1 + $0x180] sm:$0xf]
  %v152 = vld [vmem:[%s1 + $0x184] sm:$0xf]
  %v153 = vld [vmem:[%s1 + $0x188] sm:$0xf]
  %v154 = vld [vmem:[%s1 + $0x18c] sm:$0xf]
  %v155 = vld [vmem:[%s1 + $0x190] sm:$0xf]
  %v156 = vld [vmem:[%s1 + $0x194] sm:$0xf]
  %v157 = vld [vmem:[%s1 + $0x198] sm:$0xf]
  %v158 = vld [vmem:[%s1 + $0x19c] sm:$0xf]
  %v159 = vld [vmem:[%s1 + $0x1a0] sm:$0xf]
  %v160 = vld [vmem:[%s1 + $0x1a4] sm:$0xf]
  %v161 = vld [vmem:[%s1 + $0x1a8] sm:$0xf]
  %v162 = vld [vmem:[%s1 + $0x1ac] sm:$0xf]
  %v163 = vld [vmem:[%s1 + $0x1b0] sm:$0xf]
  %v164 = vld [vmem:[%s1 + $0x1b4] sm:$0xf]
  %v165 = vld [vmem:[%s1 + $0x1b8] sm:$0xf]
  %v166 = vld [vmem:[%s1 + $0x1bc] sm:$0xf]
  %v167 = vld [vmem:[%s1 + $0x1c0] sm:$0xf]
  %v168 = vld [vmem:[%s1 + $0x1c4] sm:$0xf]
  %v169 = vld [vmem:[%s1 + $0x1c8] sm:$0xf]
  %v170 = vld [vmem:[%s1 + $0x1cc] sm:$0xf]
  %v171 = vld [vmem:[%s1 + $0x1d0] sm:$0xf]
  %v172 = vld [vmem:[%s1 + $0x1d4] sm:$0xf]
  %v173 = vld [vmem:[%s1 + $0x1d8] sm:$0xf]
  %v174 = vld [vmem:[%s1 + $0x1dc] sm:$0xf]
  %v175 = vld [vmem:[%s1 + $0x1e0] sm:$0xf]
  %v176 = vld [vmem:[%s1 + $0x1e4] sm:$0xf]
  %v177 = vld [vmem:[%s1 + $0x1e8] sm:$0xf]
  %v178 = vld [vmem:[%s1 + $0x1ec] sm:$0xf]
  %v179 = vld [vmem:[%s1 + $0x1f0] sm:$0xf]
  %v180 = vld [vmem:[%s1 + $0x1f4] sm:$0xf]
  %v181 = vld [vmem:[%s1 + $0x1f8] sm:$0xf]
  %v182 = vld [vmem:[%s1 + $0x1fc] sm:$0xf]
  %v183 = vld [vmem:[%s1 + $0x200] sm:$0xf]
  %v184 = vld [vmem:[%s1 + $0x204] sm:$0xf]
  %v185 = vld [vmem:[%s1 + $0x208] sm:$0xf]
  %v186 = vld [vmem:[%s1 + $0x20c] sm:$0xf]
  %v187 = vld [vmem:[%s1 + $0x210] sm:$0xf]
  %v188 = vld [vmem:[%s1 + $0x214] sm:$0xf]
  %v189 = vld [vmem:[%s1 + $0x218] sm:$0xf]
  %v190 = vld [vmem:[%s1 + $0x21c] sm:$0xf]
  %v191 = vld [vmem:[%s1 + $0x220] sm:$0xf]
  %v192 = vld [vmem:[%s1 + $0x224] sm:$0xf]
  %v193 = vld [vmem:[%s1 + $0x228] sm:$0xf]
  %v194 = vld [vmem:[%s1 + $0x22c] sm:$0xf]
  %v195 = vld [vmem:[%s1 + $0x230] sm:$0xf]
  %v196 = vld [vmem:[%s1 + $0x234] sm:$0xf]
  %v197 = vld [vmem:[%s1 + $0x238] sm:$0xf]
  %v198 = vld [vmem:[%s1 + $0x23c] sm:$0xf]
  %v199 = vld [vmem:[%s1 + $0x240] sm:$0xf]
  %v200 = vld [vmem:[%s1 + $0x244] sm:$0xf]
  %v201 = vld [vmem:[%s1 + $0x248] sm:$0xf]
  %v202 = vld [vmem:[%s1 + $0x24c] sm:$0xf]
  %v203 = vld [vmem:[%s1 + $0x250] sm:$0xf]
  %v204 = vld [vmem:[%s1 + $0x254] sm:$0xf]
  %v205 = vld [vmem:[%s1 + $0x258] sm:$0xf]
  %v206 = vld [vmem:[%s1 + $0x25c] sm:$0xf]
  %v207 = vld [vmem:[%s1 + $0x260] sm:$0xf]
  %v208 = vld [vmem:[%s1 + $0x264] sm:$0xf]
  %v209 = vld [vmem:[%s1 + $0x268] sm:$0xf]
  %v210 = vld [vmem:[%s1 + $0x26c] sm:$0xf]
  %v211 = vld [vmem:[%s1 + $0x270] sm:$0xf]
  %v212 = vld [vmem:[%s1 + $0x274] sm:$0xf]
  %v213 = vld [vmem:[%s1 + $0x278] sm:$0xf]
  %v214 = vld [vmem:[%s1 + $0x27c] sm:$0xf]
  %v215 = vld [vmem:[%s1 + $0x280] sm:$0xf]
  %v216 = vld [vmem:[%s1 + $0x284] sm:$0xf]
  %v217 = vld [vmem:[%s1 + $0x288] sm:$0xf]
  %v218 = vld [vmem:[%s1 + $0x28c] sm:$0xf]
  %v219 = vld [vmem:[%s1 + $0x290] sm:$0xf]
  %v220 = vld [vmem:[%s1 + $0x294] sm:$0xf]
  %v221 = vld [vmem:[%s1 + $0x298] sm:$0xf]
  %v222 = vld [vmem:[%s1 + $0x29c] sm:$0xf]
  %v223 = vld [vmem:[%s1 + $0x2a0] sm:$0xf]
  %v224 = vld [vmem:[%s1 + $0x2a4] sm:$0xf]
  %v225 = vld [vmem:[%s1 + $0x2a8] sm:$0xf]
  %v226 = vld [vmem:[%s1 + $0x2ac] sm:$0xf]
  %v227 = vld [vmem:[%s1 + $0x2b0] sm:$0xf]
  %v228 = vld [vmem:[%s1 + $0x2b4] sm:$0xf]
  %v229 = vld [vmem:[%s1 + $0x2b8] sm:$0xf]
  %v230 = vld [vmem:[%s1 + $0x2bc] sm:$0xf]
  %v231 = vld [vmem:[%s1 + $0x2c0] sm:$0xf]
  %v232 = vld [vmem:[%s1 + $0x2c4] sm:$0xf]
  %v233 = vld [vmem:[%s1 + $0x2c8] sm:$0xf]
  %v234 = vld [vmem:[%s1 + $0x2cc] sm:$0xf]
  %v235 = vld [vmem:[%s1 + $0x2d0] sm:$0xf]
  %v236 = vld [vmem:[%s1 + $0x2d4] sm:$0xf]
  %v237 = vld [vmem:[%s1 + $0x2d8] sm:$0xf]
  %v238 = vld [vmem:[%s1 + $0x2dc] sm:$0xf]
  %v239 = vld [vmem:[%s1 + $0x2e0] sm:$0xf]
  %v240 = vld [vmem:[%s1 + $0x2e4] sm:$0xf]
  %v241 = vld [vmem:[%s1 + $0x2e8] sm:$0xf]
  %v242 = vld [vmem:[%s1 + $0x2ec] sm:$0xf]
  %v243 = vld [vmem:[%s1 + $0x2f0] sm:$0xf]
  %v244 = vld [vmem:[%s1 + $0x2f4] sm:$0xf]
  %v245 = vld [vmem:[%s1 + $0x2f8] sm:$0xf]
  %v246 = vld [vmem:[%s1 + $0x2fc] sm:$0xf]
  %v247 = vld [vmem:[%s1 + $0x300] sm:$0xf]
  %v248 = vld [vmem:[%s1 + $0x304] sm:$0xf]
  %v249 = vld [vmem:[%s1 + $0x308] sm:$0xf]
  %v250 = vld [vmem:[%s1 + $0x30c] sm:$0xf]
  %v251 = vld [vmem:[%s1 + $0x310] sm:$0xf]
  %v252 = vld [vmem:[%s1 + $0x314] sm:$0xf]
  %v253 = vld [vmem:[%s1 + $0x318] sm:$0xf]
  %v254 = vld [vmem:[%s1 + $0x31c] sm:$0xf]
  %v255 = vld [vmem:[%s1 + $0x320] sm:$0xf]
  %v256 = vld [vmem:[%s1 + $0x324] sm:$0xf]
  %v257 = vld [vmem:[%s1 + $0x328] sm:$0xf]
  %v258 = vld [vmem:[%s1 + $0x32c] sm:$0xf]
  %v259 = vld [vmem:[%s1 + $0x330] sm:$0xf]
  %v260 = vld [vmem:[%s1 + $0x334] sm:$0xf]
  %v261 = vld [vmem:[%s1 + $0x338] sm:$0xf]
  %v262 = vld [vmem:[%s1 + $0x33c] sm:$0xf]
  %v263 = vld [vmem:[%s1 + $0x340] sm:$0xf]
  %v264 = vld [vmem:[%s1 + $0x344] sm:$0xf]
  %v265 = vld [vmem:[%s1 + $0x348] sm:$0xf]
  %v266 = vld [vmem:[%s1 + $0x34c] sm:$0xf]
  %v267 = vld [vmem:[%s1 + $0x350] sm:$0xf]
  %v268 = vld [vmem:[%s1 + $0x354] sm:$0xf]
  %v269 = vld [vmem:[%s1 + $0x358] sm:$0xf]
  %v270 = vld [vmem:[%s1 + $0x35c] sm:$0xf]
  %v271 = vld [vmem:[%s1 + $0x360] sm:$0xf]
  %v272 = vld [vmem:[%s1 + $0x364] sm:$0xf]
  %v273 = vld [vmem:[%s1 + $0x368] sm:$0xf]
  %v274 = vld [vmem:[%s1 + $0x36c] sm:$0xf]
  %v275 = vld [vmem:[%s1 + $0x370] sm:$0xf]
  %v276 = vld [vmem:[%s1 + $0x374] sm:$0xf]
  %v277 = vld [vmem:[%s1 + $0x378] sm:$0xf]
  %v278 = vld [vmem:[%s1 + $0x37c] sm:$0xf]
  %v279 = vld [vmem:[%s1 + $0x380] sm:$0xf]
  %v280 = vld [vmem:[%s1 + $0x384] sm:$0xf]
  %v281 = vld [vmem:[%s1 + $0x388] sm:$0xf]
  %v282 = vld [vmem:[%s1 + $0x38c] sm:$0xf]
  %v283 = vld [vmem:[%s1 + $0x390] sm:$0xf]
  %v284 = vld [vmem:[%s1 + $0x394] sm:$0xf]
  %v285 = vld [vmem:[%s1 + $0x398] sm:$0xf]
  %v286 = vld [vmem:[%s1 + $0x39c] sm:$0xf]
  %v287 = vld [vmem:[%s1 + $0x3a0] sm:$0xf]
  %v288 = vld [vmem:[%s1 + $0x3a4] sm:$0xf]
  %v289 = vld [vmem:[%s1 + $0x3a8] sm:$0xf]
  %v290 = vld [vmem:[%s1 + $0x3ac] sm:$0xf]
  %v291 = vld [vmem:[%s1 + $0x3b0] sm:$0xf]
  %v292 = vld [vmem:[%s1 + $0x3b4] sm:$0xf]
  %v293 = vld [vmem:[%s1 + $0x3b8] sm:$0xf]
  %v294 = vld [vmem:[%s1 + $0x3bc] sm:$0xf]
  %v295 = vld [vmem:[%s1 + $0x3c0] sm:$0xf]
  %v296 = vld [vmem:[%s1 + $0x3c4] sm:$0xf]
  %v297 = vld [vmem:[%s1 + $0x3c8] sm:$0xf]
  %v298 = vld [vmem:[%s1 + $0x3cc] sm:$0xf]
  %v299 = vld [vmem:[%s1 + $0x3d0] sm:$0xf]
  %v300 = vld [vmem:[%s1 + $0x3d4] sm:$0xf]
  %v301 = vld [vmem:[%s1 + $0x3d8] sm:$0xf]
  %v302 = vld [vmem:[%s1 + $0x3dc] sm:$0xf]
  %v303 = vld [vmem:[%s1 + $0x3e0] sm:$0xf]
  %v304 = vld [vmem:[%s1 + $0x3e4] sm:$0xf]
  %v305 = vld [vmem:[%s1 + $0x3e8] sm:$0xf]
  %v306 = vld [vmem:[%s1 + $0x3ec] sm:$0xf]
  %v307 = vld [vmem:[%s1 + $0x3f0] sm:$0xf]
  %v308 = vld [vmem:[%s1 + $0x3f4] sm:$0xf]
  %v309 = vld [vmem:[%s1 + $0x3f8] sm:$0xf]
  %v310 = vld [vmem:[%s1 + $0x3fc] sm:$0xf]
  %v311 = vld [vmem:[%s2] sm:$0x1]
  %v313 = vlaneseq
  %v314 = vshrl.u32 %v313, 7
  %v315 = vsub.s32 0, %v314
  %v316 = vrot.slane %v311, %v315
  %v358 = vunpack.c.l.b16 %v15
  %v359 = vunpack.c.h.b16 %v15
  %v360 = vunpack.c.l.b16 %v16
  %v361 = vunpack.c.h.b16 %v16
  %v362 = vunpack.c.l.b16 %v17
  %v363 = vunpack.c.h.b16 %v17
  %v364 = vunpack.c.l.b16 %v18
  %v365 = vunpack.c.h.b16 %v18
  %v366 = vunpack.c.l.b16 %v19
  %v367 = vunpack.c.h.b16 %v19
  %v368 = vunpack.c.l.b16 %v20
  %v369 = vunpack.c.h.b16 %v20
  %v370 = vunpack.c.l.b16 %v21
  %v371 = vunpack.c.h.b16 %v21
  %v372 = vunpack.c.l.b16 %v22
  %v373 = vunpack.c.h.b16 %v22
  %v374 = vunpack.c.l.b16 %v23
  %v375 = vunpack.c.h.b16 %v23
  %v376 = vunpack.c.l.b16 %v24
  %v377 = vunpack.c.h.b16 %v24
  %v378 = vunpack.c.l.b16 %v25
  %v379 = vunpack.c.h.b16 %v25
  %v380 = vunpack.c.l.b16 %v26
  %v381 = vunpack.c.h.b16 %v26
  %v382 = vunpack.c.l.b16 %v27
  %v383 = vunpack.c.h.b16 %v27
  %v384 = vunpack.c.l.b16 %v28
  %v385 = vunpack.c.h.b16 %v28
  %v386 = vunpack.c.l.b16 %v29
  %v387 = vunpack.c.h.b16 %v29
  %v388 = vunpack.c.l.b16 %v30
  %v389 = vunpack.c.h.b16 %v30
  %v390 = vunpack.c.l.b16 %v31
  %v391 = vunpack.c.h.b16 %v31
  %v392 = vunpack.c.l.b16 %v32
  %v393 = vunpack.c.h.b16 %v32
  %v394 = vunpack.c.l.b16 %v33
  %v395 = vunpack.c.h.b16 %v33
  %v396 = vunpack.c.l.b16 %v34
  %v397 = vunpack.c.h.b16 %v34
  %v398 = vunpack.c.l.b16 %v35
  %v399 = vunpack.c.h.b16 %v35
  %v400 = vunpack.c.l.b16 %v36
  %v401 = vunpack.c.h.b16 %v36
  %v402 = vunpack.c.l.b16 %v37
  %v403 = vunpack.c.h.b16 %v37
  %v404 = vunpack.c.l.b16 %v38
  %v405 = vunpack.c.h.b16 %v38
  %v406 = vunpack.c.l.b16 %v39
  %v407 = vunpack.c.h.b16 %v39
  %v408 = vunpack.c.l.b16 %v40
  %v409 = vunpack.c.h.b16 %v40
  %v410 = vunpack.c.l.b16 %v41
  %v411 = vunpack.c.h.b16 %v41
  %v412 = vunpack.c.l.b16 %v42
  %v413 = vunpack.c.h.b16 %v42
  %v414 = vunpack.c.l.b16 %v43
  %v415 = vunpack.c.h.b16 %v43
  %v416 = vunpack.c.l.b16 %v44
  %v417 = vunpack.c.h.b16 %v44
  %v418 = vunpack.c.l.b16 %v45
  %v419 = vunpack.c.h.b16 %v45
  %v420 = vunpack.c.l.b16 %v46
  %v421 = vunpack.c.h.b16 %v46
  %v422 = vunpack.c.l.b16 %v47
  %v423 = vunpack.c.h.b16 %v47
  %v424 = vunpack.c.l.b16 %v48
  %v425 = vunpack.c.h.b16 %v48
  %v426 = vunpack.c.l.b16 %v49
  %v427 = vunpack.c.h.b16 %v49
  %v428 = vunpack.c.l.b16 %v50
  %v429 = vunpack.c.h.b16 %v50
  %v430 = vunpack.c.l.b16 %v51
  %v431 = vunpack.c.h.b16 %v51
  %v432 = vunpack.c.l.b16 %v52
  %v433 = vunpack.c.h.b16 %v52
  %v434 = vunpack.c.l.b16 %v53
  %v435 = vunpack.c.h.b16 %v53
  %v436 = vunpack.c.l.b16 %v54
  %v437 = vunpack.c.h.b16 %v54
  %v438 = vpack.c.b16 %v374, %v358
  %v439 = vpack.c.b16 %v375, %v359
  %v440 = vpack.c.b16 %v376, %v360
  %v441 = vpack.c.b16 %v377, %v361
  %v442 = vpack.c.b16 %v378, %v362
  %v443 = vpack.c.b16 %v379, %v363
  %v444 = vpack.c.b16 %v380, %v364
  %v445 = vpack.c.b16 %v381, %v365
  %v446 = vpack.c.b16 %v382, %v366
  %v447 = vpack.c.b16 %v383, %v367
  %v448 = vpack.c.b16 %v384, %v368
  %v449 = vpack.c.b16 %v385, %v369
  %v450 = vpack.c.b16 %v386, %v370
  %v451 = vpack.c.b16 %v387, %v371
  %v452 = vpack.c.b16 %v388, %v372
  %v453 = vpack.c.b16 %v389, %v373
  %v454 = vpack.c.b16 %v406, %v390
  %v455 = vpack.c.b16 %v407, %v391
  %v456 = vpack.c.b16 %v408, %v392
  %v457 = vpack.c.b16 %v409, %v393
  %v458 = vpack.c.b16 %v410, %v394
  %v459 = vpack.c.b16 %v411, %v395
  %v460 = vpack.c.b16 %v412, %v396
  %v461 = vpack.c.b16 %v413, %v397
  %v462 = vpack.c.b16 %v414, %v398
  %v463 = vpack.c.b16 %v415, %v399
  %v464 = vpack.c.b16 %v416, %v400
  %v465 = vpack.c.b16 %v417, %v401
  %v466 = vpack.c.b16 %v418, %v402
  %v467 = vpack.c.b16 %v419, %v403
  %v468 = vpack.c.b16 %v420, %v404
  %v469 = vpack.c.b16 %v421, %v405
  %v470 = vpack.c.b16 %v422, %v422
  %v471 = vpack.c.b16 %v423, %v423
  %v472 = vpack.c.b16 %v424, %v424
  %v473 = vpack.c.b16 %v425, %v425
  %v474 = vpack.c.b16 %v426, %v426
  %v475 = vpack.c.b16 %v427, %v427
  %v476 = vpack.c.b16 %v428, %v428
  %v477 = vpack.c.b16 %v429, %v429
  %v478 = vpack.c.b16 %v430, %v430
  %v479 = vpack.c.b16 %v431, %v431
  %v480 = vpack.c.b16 %v432, %v432
  %v481 = vpack.c.b16 %v433, %v433
  %v482 = vpack.c.b16 %v434, %v434
  %v483 = vpack.c.b16 %v435, %v435
  %v484 = vpack.c.b16 %v436, %v436
  %v485 = vpack.c.b16 %v437, %v437
  %v790 = vunpack.c.l.b16 %v55
  %v791 = vunpack.c.l.b16 %v56
  %v792 = vunpack.c.l.b16 %v57
  %v793 = vunpack.c.l.b16 %v58
  %v794 = vunpack.c.l.b16 %v59
  %v795 = vunpack.c.l.b16 %v60
  %v796 = vunpack.c.l.b16 %v61
  %v797 = vunpack.c.l.b16 %v62
  %v798 = vunpack.c.l.b16 %v63
  %v799 = vunpack.c.l.b16 %v64
  %v800 = vunpack.c.l.b16 %v65
  %v801 = vunpack.c.l.b16 %v66
  %v802 = vunpack.c.l.b16 %v67
  %v803 = vunpack.c.l.b16 %v68
  %v804 = vunpack.c.l.b16 %v69
  %v805 = vunpack.c.l.b16 %v70
  %v806 = vunpack.c.l.b16 %v71
  %v807 = vunpack.c.l.b16 %v72
  %v808 = vunpack.c.l.b16 %v73
  %v809 = vunpack.c.l.b16 %v74
  %v810 = vunpack.c.l.b16 %v75
  %v811 = vunpack.c.l.b16 %v76
  %v812 = vunpack.c.l.b16 %v77
  %v813 = vunpack.c.l.b16 %v78
  %v814 = vunpack.c.l.b16 %v79
  %v815 = vunpack.c.l.b16 %v80
  %v816 = vunpack.c.l.b16 %v81
  %v817 = vunpack.c.l.b16 %v82
  %v818 = vunpack.c.l.b16 %v83
  %v819 = vunpack.c.l.b16 %v84
  %v820 = vunpack.c.l.b16 %v85
  %v821 = vunpack.c.l.b16 %v86
  %v822 = vunpack.c.l.b16 %v87
  %v823 = vunpack.c.l.b16 %v88
  %v824 = vunpack.c.l.b16 %v89
  %v825 = vunpack.c.l.b16 %v90
  %v826 = vunpack.c.l.b16 %v91
  %v827 = vunpack.c.l.b16 %v92
  %v828 = vunpack.c.l.b16 %v93
  %v829 = vunpack.c.l.b16 %v94
  %v830 = vunpack.c.l.b16 %v95
  %v831 = vunpack.c.l.b16 %v96
  %v832 = vunpack.c.l.b16 %v97
  %v833 = vunpack.c.l.b16 %v98
  %v834 = vunpack.c.l.b16 %v99
  %v835 = vunpack.c.l.b16 %v100
  %v836 = vunpack.c.l.b16 %v101
  %v837 = vunpack.c.l.b16 %v102
  %v838 = vunpack.c.l.b16 %v103
  %v839 = vunpack.c.l.b16 %v104
  %v840 = vunpack.c.l.b16 %v105
  %v841 = vunpack.c.l.b16 %v106
  %v842 = vunpack.c.l.b16 %v107
  %v843 = vunpack.c.l.b16 %v108
  %v844 = vunpack.c.l.b16 %v109
  %v845 = vunpack.c.l.b16 %v110
  %v846 = vunpack.c.l.b16 %v111
  %v847 = vunpack.c.l.b16 %v112
  %v848 = vunpack.c.l.b16 %v113
  %v849 = vunpack.c.l.b16 %v114
  %v850 = vunpack.c.l.b16 %v115
  %v851 = vunpack.c.l.b16 %v116
  %v852 = vunpack.c.l.b16 %v117
  %v853 = vunpack.c.l.b16 %v118
  %v854 = vunpack.c.l.b16 %v119
  %v855 = vunpack.c.l.b16 %v120
  %v856 = vunpack.c.l.b16 %v121
  %v857 = vunpack.c.l.b16 %v122
  %v858 = vunpack.c.l.b16 %v123
  %v859 = vunpack.c.l.b16 %v124
  %v860 = vunpack.c.l.b16 %v125
  %v861 = vunpack.c.l.b16 %v126
  %v862 = vunpack.c.l.b16 %v127
  %v863 = vunpack.c.l.b16 %v128
  %v864 = vunpack.c.l.b16 %v129
  %v865 = vunpack.c.l.b16 %v130
  %v866 = vunpack.c.l.b16 %v131
  %v867 = vunpack.c.l.b16 %v132
  %v868 = vunpack.c.l.b16 %v133
  %v869 = vunpack.c.l.b16 %v134
  %v870 = vunpack.c.l.b16 %v135
  %v871 = vunpack.c.l.b16 %v136
  %v872 = vunpack.c.l.b16 %v137
  %v873 = vunpack.c.l.b16 %v138
  %v874 = vunpack.c.l.b16 %v139
  %v875 = vunpack.c.l.b16 %v140
  %v876 = vunpack.c.l.b16 %v141
  %v877 = vunpack.c.l.b16 %v142
  %v878 = vunpack.c.l.b16 %v143
  %v879 = vunpack.c.l.b16 %v144
  %v880 = vunpack.c.l.b16 %v145
  %v881 = vunpack.c.l.b16 %v146
  %v882 = vunpack.c.l.b16 %v147
  %v883 = vunpack.c.l.b16 %v148
  %v884 = vunpack.c.l.b16 %v149
  %v885 = vunpack.c.l.b16 %v150
  %v886 = vunpack.c.l.b16 %v151
  %v887 = vunpack.c.l.b16 %v152
  %v888 = vunpack.c.l.b16 %v153
  %v889 = vunpack.c.l.b16 %v154
  %v890 = vunpack.c.l.b16 %v155
  %v891 = vunpack.c.l.b16 %v156
  %v892 = vunpack.c.l.b16 %v157
  %v893 = vunpack.c.l.b16 %v158
  %v894 = vunpack.c.l.b16 %v159
  %v895 = vunpack.c.l.b16 %v160
  %v896 = vunpack.c.l.b16 %v161
  %v897 = vunpack.c.l.b16 %v162
  %v898 = vunpack.c.l.b16 %v163
  %v899 = vunpack.c.l.b16 %v164
  %v900 = vunpack.c.l.b16 %v165
  %v901 = vunpack.c.l.b16 %v166
  %v902 = vunpack.c.l.b16 %v167
  %v903 = vunpack.c.l.b16 %v168
  %v904 = vunpack.c.l.b16 %v169
  %v905 = vunpack.c.l.b16 %v170
  %v906 = vunpack.c.l.b16 %v171
  %v907 = vunpack.c.l.b16 %v172
  %v908 = vunpack.c.l.b16 %v173
  %v909 = vunpack.c.l.b16 %v174
  %v910 = vunpack.c.l.b16 %v175
  %v911 = vunpack.c.l.b16 %v176
  %v912 = vunpack.c.l.b16 %v177
  %v913 = vunpack.c.l.b16 %v178
  %v914 = vunpack.c.l.b16 %v179
  %v915 = vunpack.c.l.b16 %v180
  %v916 = vunpack.c.l.b16 %v181
  %v917 = vunpack.c.l.b16 %v182
  %v918 = vunpack.c.l.b16 %v183
  %v919 = vunpack.c.l.b16 %v184
  %v920 = vunpack.c.l.b16 %v185
  %v921 = vunpack.c.l.b16 %v186
  %v922 = vunpack.c.l.b16 %v187
  %v923 = vunpack.c.l.b16 %v188
  %v924 = vunpack.c.l.b16 %v189
  %v925 = vunpack.c.l.b16 %v190
  %v926 = vunpack.c.l.b16 %v191
  %v927 = vunpack.c.l.b16 %v192
  %v928 = vunpack.c.l.b16 %v193
  %v929 = vunpack.c.l.b16 %v194
  %v930 = vunpack.c.l.b16 %v195
  %v931 = vunpack.c.l.b16 %v196
  %v932 = vunpack.c.l.b16 %v197
  %v933 = vunpack.c.l.b16 %v198
  %v934 = vunpack.c.l.b16 %v199
  %v935 = vunpack.c.l.b16 %v200
  %v936 = vunpack.c.l.b16 %v201
  %v937 = vunpack.c.l.b16 %v202
  %v938 = vunpack.c.l.b16 %v203
  %v939 = vunpack.c.l.b16 %v204
  %v940 = vunpack.c.l.b16 %v205
  %v941 = vunpack.c.l.b16 %v206
  %v942 = vunpack.c.l.b16 %v207
  %v943 = vunpack.c.l.b16 %v208
  %v944 = vunpack.c.l.b16 %v209
  %v945 = vunpack.c.l.b16 %v210
  %v946 = vunpack.c.l.b16 %v211
  %v947 = vunpack.c.l.b16 %v212
  %v948 = vunpack.c.l.b16 %v213
  %v949 = vunpack.c.l.b16 %v214
  %v950 = vunpack.c.l.b16 %v215
  %v951 = vunpack.c.l.b16 %v216
  %v952 = vunpack.c.l.b16 %v217
  %v953 = vunpack.c.l.b16 %v218
  %v954 = vunpack.c.l.b16 %v219
  %v955 = vunpack.c.l.b16 %v220
  %v956 = vunpack.c.l.b16 %v221
  %v957 = vunpack.c.l.b16 %v222
  %v958 = vunpack.c.l.b16 %v223
  %v959 = vunpack.c.l.b16 %v224
  %v960 = vunpack.c.l.b16 %v225
  %v961 = vunpack.c.l.b16 %v226
  %v962 = vunpack.c.l.b16 %v227
  %v963 = vunpack.c.l.b16 %v228
  %v964 = vunpack.c.l.b16 %v229
  %v965 = vunpack.c.l.b16 %v230
  %v966 = vunpack.c.l.b16 %v231
  %v967 = vunpack.c.l.b16 %v232
  %v968 = vunpack.c.l.b16 %v233
  %v969 = vunpack.c.l.b16 %v234
  %v970 = vunpack.c.l.b16 %v235
  %v971 = vunpack.c.l.b16 %v236
  %v972 = vunpack.c.l.b16 %v237
  %v973 = vunpack.c.l.b16 %v238
  %v974 = vunpack.c.l.b16 %v239
  %v975 = vunpack.c.l.b16 %v240
  %v976 = vunpack.c.l.b16 %v241
  %v977 = vunpack.c.l.b16 %v242
  %v978 = vunpack.c.l.b16 %v243
  %v979 = vunpack.c.l.b16 %v244
  %v980 = vunpack.c.l.b16 %v245
  %v981 = vunpack.c.l.b16 %v246
  %v982 = vunpack.c.l.b16 %v247
  %v983 = vunpack.c.l.b16 %v248
  %v984 = vunpack.c.l.b16 %v249
  %v985 = vunpack.c.l.b16 %v250
  %v986 = vunpack.c.l.b16 %v251
  %v987 = vunpack.c.l.b16 %v252
  %v988 = vunpack.c.l.b16 %v253
  %v989 = vunpack.c.l.b16 %v254
  %v990 = vunpack.c.l.b16 %v255
  %v991 = vunpack.c.l.b16 %v256
  %v992 = vunpack.c.l.b16 %v257
  %v993 = vunpack.c.l.b16 %v258
  %v994 = vunpack.c.l.b16 %v259
  %v995 = vunpack.c.l.b16 %v260
  %v996 = vunpack.c.l.b16 %v261
  %v997 = vunpack.c.l.b16 %v262
  %v998 = vunpack.c.l.b16 %v263
  %v999 = vunpack.c.l.b16 %v264
  %v1000 = vunpack.c.l.b16 %v265
  %v1001 = vunpack.c.l.b16 %v266
  %v1002 = vunpack.c.l.b16 %v267
  %v1003 = vunpack.c.l.b16 %v268
  %v1004 = vunpack.c.l.b16 %v269
  %v1005 = vunpack.c.l.b16 %v270
  %v1006 = vunpack.c.l.b16 %v271
  %v1007 = vunpack.c.l.b16 %v272
  %v1008 = vunpack.c.l.b16 %v273
  %v1009 = vunpack.c.l.b16 %v274
  %v1010 = vunpack.c.l.b16 %v275
  %v1011 = vunpack.c.l.b16 %v276
  %v1012 = vunpack.c.l.b16 %v277
  %v1013 = vunpack.c.l.b16 %v278
  %v1014 = vunpack.c.l.b16 %v279
  %v1015 = vunpack.c.l.b16 %v280
  %v1016 = vunpack.c.l.b16 %v281
  %v1017 = vunpack.c.l.b16 %v282
  %v1018 = vunpack.c.l.b16 %v283
  %v1019 = vunpack.c.l.b16 %v284
  %v1020 = vunpack.c.l.b16 %v285
  %v1021 = vunpack.c.l.b16 %v286
  %v1022 = vunpack.c.l.b16 %v287
  %v1023 = vunpack.c.l.b16 %v288
  %v1024 = vunpack.c.l.b16 %v289
  %v1025 = vunpack.c.l.b16 %v290
  %v1026 = vunpack.c.l.b16 %v291
  %v1027 = vunpack.c.l.b16 %v292
  %v1028 = vunpack.c.l.b16 %v293
  %v1029 = vunpack.c.l.b16 %v294
  %v1030 = vunpack.c.l.b16 %v295
  %v1031 = vunpack.c.l.b16 %v296
  %v1032 = vunpack.c.l.b16 %v297
  %v1033 = vunpack.c.l.b16 %v298
  %v1034 = vunpack.c.l.b16 %v299
  %v1035 = vunpack.c.l.b16 %v300
  %v1036 = vunpack.c.l.b16 %v301
  %v1037 = vunpack.c.l.b16 %v302
  %v1038 = vunpack.c.l.b16 %v303
  %v1039 = vunpack.c.l.b16 %v304
  %v1040 = vunpack.c.l.b16 %v305
  %v1041 = vunpack.c.l.b16 %v306
  %v1042 = vunpack.c.l.b16 %v307
  %v1043 = vunpack.c.l.b16 %v308
  %v1044 = vunpack.c.l.b16 %v309
  %v1045 = vunpack.c.l.b16 %v310
  %v1046 = vpack.c.b16 %v791, %v790
  %v1047 = vpack.c.b16 %v793, %v792
  %v1048 = vpack.c.b16 %v795, %v794
  %v1049 = vpack.c.b16 %v797, %v796
  %v1050 = vpack.c.b16 %v799, %v798
  %v1051 = vpack.c.b16 %v801, %v800
  %v1052 = vpack.c.b16 %v803, %v802
  %v1053 = vpack.c.b16 %v805, %v804
  %v1054 = vpack.c.b16 %v807, %v806
  %v1055 = vpack.c.b16 %v809, %v808
  %v1056 = vpack.c.b16 %v811, %v810
  %v1057 = vpack.c.b16 %v813, %v812
  %v1058 = vpack.c.b16 %v815, %v814
  %v1059 = vpack.c.b16 %v817, %v816
  %v1060 = vpack.c.b16 %v819, %v818
  %v1061 = vpack.c.b16 %v821, %v820
  %v1062 = vpack.c.b16 %v823, %v822
  %v1063 = vpack.c.b16 %v825, %v824
  %v1064 = vpack.c.b16 %v827, %v826
  %v1065 = vpack.c.b16 %v829, %v828
  %v1066 = vpack.c.b16 %v831, %v830
  %v1067 = vpack.c.b16 %v833, %v832
  %v1068 = vpack.c.b16 %v835, %v834
  %v1069 = vpack.c.b16 %v837, %v836
  %v1070 = vpack.c.b16 %v839, %v838
  %v1071 = vpack.c.b16 %v841, %v840
  %v1072 = vpack.c.b16 %v843, %v842
  %v1073 = vpack.c.b16 %v845, %v844
  %v1074 = vpack.c.b16 %v847, %v846
  %v1075 = vpack.c.b16 %v849, %v848
  %v1076 = vpack.c.b16 %v851, %v850
  %v1077 = vpack.c.b16 %v853, %v852
  %v1078 = vpack.c.b16 %v855, %v854
  %v1079 = vpack.c.b16 %v857, %v856
  %v1080 = vpack.c.b16 %v859, %v858
  %v1081 = vpack.c.b16 %v861, %v860
  %v1082 = vpack.c.b16 %v863, %v862
  %v1083 = vpack.c.b16 %v865, %v864
  %v1084 = vpack.c.b16 %v867, %v866
  %v1085 = vpack.c.b16 %v869, %v868
  %v1086 = vpack.c.b16 %v871, %v870
  %v1087 = vpack.c.b16 %v873, %v872
  %v1088 = vpack.c.b16 %v875, %v874
  %v1089 = vpack.c.b16 %v877, %v876
  %v1090 = vpack.c.b16 %v879, %v878
  %v1091 = vpack.c.b16 %v881, %v880
  %v1092 = vpack.c.b16 %v883, %v882
  %v1093 = vpack.c.b16 %v885, %v884
  %v1094 = vpack.c.b16 %v887, %v886
  %v1095 = vpack.c.b16 %v889, %v888
  %v1096 = vpack.c.b16 %v891, %v890
  %v1097 = vpack.c.b16 %v893, %v892
  %v1098 = vpack.c.b16 %v895, %v894
  %v1099 = vpack.c.b16 %v897, %v896
  %v1100 = vpack.c.b16 %v899, %v898
  %v1101 = vpack.c.b16 %v901, %v900
  %v1102 = vpack.c.b16 %v903, %v902
  %v1103 = vpack.c.b16 %v905, %v904
  %v1104 = vpack.c.b16 %v907, %v906
  %v1105 = vpack.c.b16 %v909, %v908
  %v1106 = vpack.c.b16 %v911, %v910
  %v1107 = vpack.c.b16 %v913, %v912
  %v1108 = vpack.c.b16 %v915, %v914
  %v1109 = vpack.c.b16 %v917, %v916
  %v1110 = vpack.c.b16 %v919, %v918
  %v1111 = vpack.c.b16 %v921, %v920
  %v1112 = vpack.c.b16 %v923, %v922
  %v1113 = vpack.c.b16 %v925, %v924
  %v1114 = vpack.c.b16 %v927, %v926
  %v1115 = vpack.c.b16 %v929, %v928
  %v1116 = vpack.c.b16 %v931, %v930
  %v1117 = vpack.c.b16 %v933, %v932
  %v1118 = vpack.c.b16 %v935, %v934
  %v1119 = vpack.c.b16 %v937, %v936
  %v1120 = vpack.c.b16 %v939, %v938
  %v1121 = vpack.c.b16 %v941, %v940
  %v1122 = vpack.c.b16 %v943, %v942
  %v1123 = vpack.c.b16 %v945, %v944
  %v1124 = vpack.c.b16 %v947, %v946
  %v1125 = vpack.c.b16 %v949, %v948
  %v1126 = vpack.c.b16 %v951, %v950
  %v1127 = vpack.c.b16 %v953, %v952
  %v1128 = vpack.c.b16 %v955, %v954
  %v1129 = vpack.c.b16 %v957, %v956
  %v1130 = vpack.c.b16 %v959, %v958
  %v1131 = vpack.c.b16 %v961, %v960
  %v1132 = vpack.c.b16 %v963, %v962
  %v1133 = vpack.c.b16 %v965, %v964
  %v1134 = vpack.c.b16 %v967, %v966
  %v1135 = vpack.c.b16 %v969, %v968
  %v1136 = vpack.c.b16 %v971, %v970
  %v1137 = vpack.c.b16 %v973, %v972
  %v1138 = vpack.c.b16 %v975, %v974
  %v1139 = vpack.c.b16 %v977, %v976
  %v1140 = vpack.c.b16 %v979, %v978
  %v1141 = vpack.c.b16 %v981, %v980
  %v1142 = vpack.c.b16 %v983, %v982
  %v1143 = vpack.c.b16 %v985, %v984
  %v1144 = vpack.c.b16 %v987, %v986
  %v1145 = vpack.c.b16 %v989, %v988
  %v1146 = vpack.c.b16 %v991, %v990
  %v1147 = vpack.c.b16 %v993, %v992
  %v1148 = vpack.c.b16 %v995, %v994
  %v1149 = vpack.c.b16 %v997, %v996
  %v1150 = vpack.c.b16 %v999, %v998
  %v1151 = vpack.c.b16 %v1001, %v1000
  %v1152 = vpack.c.b16 %v1003, %v1002
  %v1153 = vpack.c.b16 %v1005, %v1004
  %v1154 = vpack.c.b16 %v1007, %v1006
  %v1155 = vpack.c.b16 %v1009, %v1008
  %v1156 = vpack.c.b16 %v1011, %v1010
  %v1157 = vpack.c.b16 %v1013, %v1012
  %v1158 = vpack.c.b16 %v1015, %v1014
  %v1159 = vpack.c.b16 %v1017, %v1016
  %v1160 = vpack.c.b16 %v1019, %v1018
  %v1161 = vpack.c.b16 %v1021, %v1020
  %v1162 = vpack.c.b16 %v1023, %v1022
  %v1163 = vpack.c.b16 %v1025, %v1024
  %v1164 = vpack.c.b16 %v1027, %v1026
  %v1165 = vpack.c.b16 %v1029, %v1028
  %v1166 = vpack.c.b16 %v1031, %v1030
  %v1167 = vpack.c.b16 %v1033, %v1032
  %v1168 = vpack.c.b16 %v1035, %v1034
  %v1169 = vpack.c.b16 %v1037, %v1036
  %v1170 = vpack.c.b16 %v1039, %v1038
  %v1171 = vpack.c.b16 %v1041, %v1040
  %v1172 = vpack.c.b16 %v1043, %v1042
  %v1173 = vpack.c.b16 %v1045, %v1044
  %1302 = vmatprep.subr.bf16.mxu0 0
  %1303 = vmatpush1.bf16.msra.mxu0 %v1046
  %1304 = vmatprep.subr.bf16.mxu0 0
  %1305 = vmatpush1.bf16.msra.mxu0 %v1047
  %1306 = vmatprep.subr.bf16.mxu0 0
  %1307 = vmatpush1.bf16.msra.mxu0 %v1048
  %1308 = vmatprep.subr.bf16.mxu0 0
  %1309 = vmatpush1.bf16.msra.mxu0 %v1049
  %1310 = vmatprep.subr.bf16.mxu0 0
  %1311 = vmatpush1.bf16.msra.mxu0 %v1050
  %1312 = vmatprep.subr.bf16.mxu0 0
  %1313 = vmatpush1.bf16.msra.mxu0 %v1051
  %1314 = vmatprep.subr.bf16.mxu0 0
  %1315 = vmatpush1.bf16.msra.mxu0 %v1052
  %1316 = vmatprep.subr.bf16.mxu0 0
  %1317 = vmatpush1.bf16.msra.mxu0 %v1053
  %1318 = vmatprep.subr.bf16.mxu0 0
  %1319 = vmatpush1.bf16.msra.mxu0 %v1054
  %1320 = vmatprep.subr.bf16.mxu0 0
  %1321 = vmatpush1.bf16.msra.mxu0 %v1055
  %1322 = vmatprep.subr.bf16.mxu0 0
  %1323 = vmatpush1.bf16.msra.mxu0 %v1056
  %1324 = vmatprep.subr.bf16.mxu0 0
  %1325 = vmatpush1.bf16.msra.mxu0 %v1057
  %1326 = vmatprep.subr.bf16.mxu0 0
  %1327 = vmatpush1.bf16.msra.mxu0 %v1058
  %1328 = vmatprep.subr.bf16.mxu0 0
  %1329 = vmatpush1.bf16.msra.mxu0 %v1059
  %1330 = vmatprep.subr.bf16.mxu0 0
  %1331 = vmatpush1.bf16.msra.mxu0 %v1060
  %1332 = vmatprep.subr.bf16.mxu0 0
  %1333 = vmatpush1.bf16.msra.mxu0 %v1061
  %1334 = vmatprep.mubr.bf16.mxu0 %v439
  %1335 = vmatmul.mubr.bf16.gmra.mrb[0].mxu0 %v438
  %v1336 = vpop.f32.mrb[0].mxu0
  %v1337 = vadd.f32 %v316, %v1336
  %v1338 = vpop.f32.mrb[0].mxu0
  %v1339 = vpop.f32.mrb[0].mxu0
  %v1340 = vadd.f32 %v316, %v1339
  %v1341 = vpop.f32.mrb[0].mxu0
  %1342 = vmatprep.mubr.bf16.mxu0 %v455
  %1343 = vmatmul.mubr.bf16.gmra.mrb[0].mxu0 %v454
  %v1344 = vpop.f32.mrb[0].mxu0
  %v1345 = vadd.f32 %v316, %v1344
  %v1346 = vpop.f32.mrb[0].mxu0
  %v1347 = vpop.f32.mrb[0].mxu0
  %v1348 = vadd.f32 %v316, %v1347
  %v1349 = vpop.f32.mrb[0].mxu0
  %1350 = vmatprep.mubr.bf16.mxu0 %v471
  %1351 = vmatmul.mubr.bf16.gmra.mrb[0].mxu0 %v470
  %v1352 = vpop.f32.mrb[0].mxu0
  %v1353 = vadd.f32 %v316, %v1352
  %v1354 = vpop.f32.mrb[0].mxu0
  %v1355 = vpop.f32.mrb[0].mxu0
  %v1356 = vpop.f32.mrb[0].mxu0
  %1357 = vdwg.mxu0
  %1358 = vmatprep.subr.bf16.mxu0 0
  %1359 = vmatpush1.bf16.msra.mxu0 %v1062
  %1360 = vmatprep.subr.bf16.mxu0 0
  %1361 = vmatpush1.bf16.msra.mxu0 %v1063
  %1362 = vmatprep.subr.bf16.mxu0 0
  %1363 = vmatpush1.bf16.msra.mxu0 %v1064
  %1364 = vmatprep.subr.bf16.mxu0 0
  %1365 = vmatpush1.bf16.msra.mxu0 %v1065
  %1366 = vmatprep.subr.bf16.mxu0 0
  %1367 = vmatpush1.bf16.msra.mxu0 %v1066
  %1368 = vmatprep.subr.bf16.mxu0 0
  %1369 = vmatpush1.bf16.msra.mxu0 %v1067
  %1370 = vmatprep.subr.bf16.mxu0 0
  %1371 = vmatpush1.bf16.msra.mxu0 %v1068
  %1372 = vmatprep.subr.bf16.mxu0 0
  %1373 = vmatpush1.bf16.msra.mxu0 %v1069
  %1374 = vmatprep.subr.bf16.mxu0 0
  %1375 = vmatpush1.bf16.msra.mxu0 %v1070
  %1376 = vmatprep.subr.bf16.mxu0 0
  %1377 = vmatpush1.bf16.msra.mxu0 %v1071
  %1378 = vmatprep.subr.bf16.mxu0 0
  %1379 = vmatpush1.bf16.msra.mxu0 %v1072
  %1380 = vmatprep.subr.bf16.mxu0 0
  %1381 = vmatpush1.bf16.msra.mxu0 %v1073
  %1382 = vmatprep.subr.bf16.mxu0 0
  %1383 = vmatpush1.bf16.msra.mxu0 %v1074
  %1384 = vmatprep.subr.bf16.mxu0 0
  %1385 = vmatpush1.bf16.msra.mxu0 %v1075
  %1386 = vmatprep.subr.bf16.mxu0 0
  %1387 = vmatpush1.bf16.msra.mxu0 %v1076
  %1388 = vmatprep.subr.bf16.mxu0 0
  %1389 = vmatpush1.bf16.msra.mxu0 %v1077
  %1390 = vmatprep.mubr.bf16.mxu0 %v441
  %1391 = vmatmul.mubr.bf16.gmra.mrb[0].mxu0 %v440
  %v1392 = vpop.f32.mrb[0].mxu0
  %v1393 = vadd.f32 %v1337, %v1392
  %v1394 = vpop.f32.mrb[0].mxu0
  %v1395 = vpop.f32.mrb[0].mxu0
  %v1396 = vadd.f32 %v1340, %v1395
  %v1397 = vpop.f32.mrb[0].mxu0
  %1398 = vmatprep.mubr.bf16.mxu0 %v457
  %1399 = vmatmul.mubr.bf16.gmra.mrb[0].mxu0 %v456
  %v1400 = vpop.f32.mrb[0].mxu0
  %v1401 = vadd.f32 %v1345, %v1400
  %v1402 = vpop.f32.mrb[0].mxu0
  %v1403 = vpop.f32.mrb[0].mxu0
  %v1404 = vadd.f32 %v1348, %v1403
  %v1405 = vpop.f32.mrb[0].mxu0
  %1406 = vmatprep.mubr.bf16.mxu0 %v473
  %1407 = vmatmul.mubr.bf16.gmra.mrb[0].mxu0 %v472
  %v1408 = vpop.f32.mrb[0].mxu0
  %v1409 = vadd.f32 %v1353, %v1408
  %v1410 = vpop.f32.mrb[0].mxu0
  %v1411 = vpop.f32.mrb[0].mxu0
  %v1412 = vpop.f32.mrb[0].mxu0
  %1413 = vdwg.mxu0
  %1414 = vmatprep.subr.bf16.mxu0 0
  %1415 = vmatpush1.bf16.msra.mxu0 %v1078
  %1416 = vmatprep.subr.bf16.mxu0 0
  %1417 = vmatpush1.bf16.msra.mxu0 %v1079
  %1418 = vmatprep.subr.bf16.mxu0 0
  %1419 = vmatpush1.bf16.msra.mxu0 %v1080
  %1420 = vmatprep.subr.bf16.mxu0 0
  %1421 = vmatpush1.bf16.msra.mxu0 %v1081
  %1422 = vmatprep.subr.bf16.mxu0 0
  %1423 = vmatpush1.bf16.msra.mxu0 %v1082
  %1424 = vmatprep.subr.bf16.mxu0 0
  %1425 = vmatpush1.bf16.msra.mxu0 %v1083
  %1426 = vmatprep.subr.bf16.mxu0 0
  %1427 = vmatpush1.bf16.msra.mxu0 %v1084
  %1428 = vmatprep.subr.bf16.mxu0 0
  %1429 = vmatpush1.bf16.msra.mxu0 %v1085
  %1430 = vmatprep.subr.bf16.mxu0 0
  %1431 = vmatpush1.bf16.msra.mxu0 %v1086
  %1432 = vmatprep.subr.bf16.mxu0 0
  %1433 = vmatpush1.bf16.msra.mxu0 %v1087
  %1434 = vmatprep.subr.bf16.mxu0 0
  %1435 = vmatpush1.bf16.msra.mxu0 %v1088
  %1436 = vmatprep.subr.bf16.mxu0 0
  %1437 = vmatpush1.bf16.msra.mxu0 %v1089
  %1438 = vmatprep.subr.bf16.mxu0 0
  %1439 = vmatpush1.bf16.msra.mxu0 %v1090
  %1440 = vmatprep.subr.bf16.mxu0 0
  %1441 = vmatpush1.bf16.msra.mxu0 %v1091
  %1442 = vmatprep.subr.bf16.mxu0 0
  %1443 = vmatpush1.bf16.msra.mxu0 %v1092
  %1444 = vmatprep.subr.bf16.mxu0 0
  %1445 = vmatpush1.bf16.msra.mxu0 %v1093
  %1446 = vmatprep.mubr.bf16.mxu0 %v443
  %1447 = vmatmul.mubr.bf16.gmra.mrb[0].mxu0 %v442
  %v1448 = vpop.f32.mrb[0].mxu0
  %v1449 = vadd.f32 %v1393, %v1448
  %v1450 = vpop.f32.mrb[0].mxu0
  %v1451 = vpop.f32.mrb[0].mxu0
  %v1452 = vadd.f32 %v1396, %v1451
  %v1453 = vpop.f32.mrb[0].mxu0
  %1454 = vmatprep.mubr.bf16.mxu0 %v459
  %1455 = vmatmul.mubr.bf16.gmra.mrb[0].mxu0 %v458
  %v1456 = vpop.f32.mrb[0].mxu0
  %v1457 = vadd.f32 %v1401, %v1456
  %v1458 = vpop.f32.mrb[0].mxu0
  %v1459 = vpop.f32.mrb[0].mxu0
  %v1460 = vadd.f32 %v1404, %v1459
  %v1461 = vpop.f32.mrb[0].mxu0
  %1462 = vmatprep.mubr.bf16.mxu0 %v475
  %1463 = vmatmul.mubr.bf16.gmra.mrb[0].mxu0 %v474
  %v1464 = vpop.f32.mrb[0].mxu0
  %v1465 = vadd.f32 %v1409, %v1464
  %v1466 = vpop.f32.mrb[0].mxu0
  %v1467 = vpop.f32.mrb[0].mxu0
  %v1468 = vpop.f32.mrb[0].mxu0
  %1469 = vdwg.mxu0
  %1470 = vmatprep.subr.bf16.mxu0 0
  %1471 = vmatpush1.bf16.msra.mxu0 %v1094
  %1472 = vmatprep.subr.bf16.mxu0 0
  %1473 = vmatpush1.bf16.msra.mxu0 %v1095
  %1474 = vmatprep.subr.bf16.mxu0 0
  %1475 = vmatpush1.bf16.msra.mxu0 %v1096
  %1476 = vmatprep.subr.bf16.mxu0 0
  %1477 = vmatpush1.bf16.msra.mxu0 %v1097
  %1478 = vmatprep.subr.bf16.mxu0 0
  %1479 = vmatpush1.bf16.msra.mxu0 %v1098
  %1480 = vmatprep.subr.bf16.mxu0 0
  %1481 = vmatpush1.bf16.msra.mxu0 %v1099
  %1482 = vmatprep.subr.bf16.mxu0 0
  %1483 = vmatpush1.bf16.msra.mxu0 %v1100
  %1484 = vmatprep.subr.bf16.mxu0 0
  %1485 = vmatpush1.bf16.msra.mxu0 %v1101
  %1486 = vmatprep.subr.bf16.mxu0 0
  %1487 = vmatpush1.bf16.msra.mxu0 %v1102
  %1488 = vmatprep.subr.bf16.mxu0 0
  %1489 = vmatpush1.bf16.msra.mxu0 %v1103
  %1490 = vmatprep.subr.bf16.mxu0 0
  %1491 = vmatpush1.bf16.msra.mxu0 %v1104
  %1492 = vmatprep.subr.bf16.mxu0 0
  %1493 = vmatpush1.bf16.msra.mxu0 %v1105
  %1494 = vmatprep.subr.bf16.mxu0 0
  %1495 = vmatpush1.bf16.msra.mxu0 %v1106
  %1496 = vmatprep.subr.bf16.mxu0 0
  %1497 = vmatpush1.bf16.msra.mxu0 %v1107
  %1498 = vmatprep.subr.bf16.mxu0 0
  %1499 = vmatpush1.bf16.msra.mxu0 %v1108
  %1500 = vmatprep.subr.bf16.mxu0 0
  %1501 = vmatpush1.bf16.msra.mxu0 %v1109
  %1502 = vmatprep.mubr.bf16.mxu0 %v445
  %1503 = vmatmul.mubr.bf16.gmra.mrb[0].mxu0 %v444
  %v1504 = vpop.f32.mrb[0].mxu0
  %v1505 = vadd.f32 %v1449, %v1504
  %v1506 = vpop.f32.mrb[0].mxu0
  %v1507 = vpop.f32.mrb[0].mxu0
  %v1508 = vadd.f32 %v1452, %v1507
  %v1509 = vpop.f32.mrb[0].mxu0
  %1510 = vmatprep.mubr.bf16.mxu0 %v461
  %1511 = vmatmul.mubr.bf16.gmra.mrb[0].mxu0 %v460
  %v1512 = vpop.f32.mrb[0].mxu0
  %v1513 = vadd.f32 %v1457, %v1512
  %v1514 = vpop.f32.mrb[0].mxu0
  %v1515 = vpop.f32.mrb[0].mxu0
  %v1516 = vadd.f32 %v1460, %v1515
  %v1517 = vpop.f32.mrb[0].mxu0
  %1518 = vmatprep.mubr.bf16.mxu0 %v477
  %1519 = vmatmul.mubr.bf16.gmra.mrb[0].mxu0 %v476
  %v1520 = vpop.f32.mrb[0].mxu0
  %v1521 = vadd.f32 %v1465, %v1520
  %v1522 = vpop.f32.mrb[0].mxu0
  %v1523 = vpop.f32.mrb[0].mxu0
  %v1524 = vpop.f32.mrb[0].mxu0
  %1525 = vdwg.mxu0
  %1526 = vmatprep.subr.bf16.mxu0 0
  %1527 = vmatpush1.bf16.msra.mxu0 %v1110
  %1528 = vmatprep.subr.bf16.mxu0 0
  %1529 = vmatpush1.bf16.msra.mxu0 %v1111
  %1530 = vmatprep.subr.bf16.mxu0 0
  %1531 = vmatpush1.bf16.msra.mxu0 %v1112
  %1532 = vmatprep.subr.bf16.mxu0 0
  %1533 = vmatpush1.bf16.msra.mxu0 %v1113
  %1534 = vmatprep.subr.bf16.mxu0 0
  %1535 = vmatpush1.bf16.msra.mxu0 %v1114
  %1536 = vmatprep.subr.bf16.mxu0 0
  %1537 = vmatpush1.bf16.msra.mxu0 %v1115
  %1538 = vmatprep.subr.bf16.mxu0 0
  %1539 = vmatpush1.bf16.msra.mxu0 %v1116
  %1540 = vmatprep.subr.bf16.mxu0 0
  %1541 = vmatpush1.bf16.msra.mxu0 %v1117
  %1542 = vmatprep.subr.bf16.mxu0 0
  %1543 = vmatpush1.bf16.msra.mxu0 %v1118
  %1544 = vmatprep.subr.bf16.mxu0 0
  %1545 = vmatpush1.bf16.msra.mxu0 %v1119
  %1546 = vmatprep.subr.bf16.mxu0 0
  %1547 = vmatpush1.bf16.msra.mxu0 %v1120
  %1548 = vmatprep.subr.bf16.mxu0 0
  %1549 = vmatpush1.bf16.msra.mxu0 %v1121
  %1550 = vmatprep.subr.bf16.mxu0 0
  %1551 = vmatpush1.bf16.msra.mxu0 %v1122
  %1552 = vmatprep.subr.bf16.mxu0 0
  %1553 = vmatpush1.bf16.msra.mxu0 %v1123
  %1554 = vmatprep.subr.bf16.mxu0 0
  %1555 = vmatpush1.bf16.msra.mxu0 %v1124
  %1556 = vmatprep.subr.bf16.mxu0 0
  %1557 = vmatpush1.bf16.msra.mxu0 %v1125
  %1558 = vmatprep.mubr.bf16.mxu0 %v447
  %1559 = vmatmul.mubr.bf16.gmra.mrb[0].mxu0 %v446
  %v1560 = vpop.f32.mrb[0].mxu0
  %v1561 = vadd.f32 %v1505, %v1560
  %v1562 = vpop.f32.mrb[0].mxu0
  %v1563 = vpop.f32.mrb[0].mxu0
  %v1564 = vadd.f32 %v1508, %v1563
  %v1565 = vpop.f32.mrb[0].mxu0
  %1566 = vmatprep.mubr.bf16.mxu0 %v463
  %1567 = vmatmul.mubr.bf16.gmra.mrb[0].mxu0 %v462
  %v1568 = vpop.f32.mrb[0].mxu0
  %v1569 = vadd.f32 %v1513, %v1568
  %v1570 = vpop.f32.mrb[0].mxu0
  %v1571 = vpop.f32.mrb[0].mxu0
  %v1572 = vadd.f32 %v1516, %v1571
  %v1573 = vpop.f32.mrb[0].mxu0
  %1574 = vmatprep.mubr.bf16.mxu0 %v479
  %1575 = vmatmul.mubr.bf16.gmra.mrb[0].mxu0 %v478
  %v1576 = vpop.f32.mrb[0].mxu0
  %v1577 = vadd.f32 %v1521, %v1576
  %v1578 = vpop.f32.mrb[0].mxu0
  %v1579 = vpop.f32.mrb[0].mxu0
  %v1580 = vpop.f32.mrb[0].mxu0
  %1581 = vdwg.mxu0
  %1582 = vmatprep.subr.bf16.mxu0 0
  %1583 = vmatpush1.bf16.msra.mxu0 %v1126
  %1584 = vmatprep.subr.bf16.mxu0 0
  %1585 = vmatpush1.bf16.msra.mxu0 %v1127
  %1586 = vmatprep.subr.bf16.mxu0 0
  %1587 = vmatpush1.bf16.msra.mxu0 %v1128
  %1588 = vmatprep.subr.bf16.mxu0 0
  %1589 = vmatpush1.bf16.msra.mxu0 %v1129
  %1590 = vmatprep.subr.bf16.mxu0 0
  %1591 = vmatpush1.bf16.msra.mxu0 %v1130
  %1592 = vmatprep.subr.bf16.mxu0 0
  %1593 = vmatpush1.bf16.msra.mxu0 %v1131
  %1594 = vmatprep.subr.bf16.mxu0 0
  %1595 = vmatpush1.bf16.msra.mxu0 %v1132
  %1596 = vmatprep.subr.bf16.mxu0 0
  %1597 = vmatpush1.bf16.msra.mxu0 %v1133
  %1598 = vmatprep.subr.bf16.mxu0 0
  %1599 = vmatpush1.bf16.msra.mxu0 %v1134
  %1600 = vmatprep.subr.bf16.mxu0 0
  %1601 = vmatpush1.bf16.msra.mxu0 %v1135
  %1602 = vmatprep.subr.bf16.mxu0 0
  %1603 = vmatpush1.bf16.msra.mxu0 %v1136
  %1604 = vmatprep.subr.bf16.mxu0 0
  %1605 = vmatpush1.bf16.msra.mxu0 %v1137
  %1606 = vmatprep.subr.bf16.mxu0 0
  %1607 = vmatpush1.bf16.msra.mxu0 %v1138
  %1608 = vmatprep.subr.bf16.mxu0 0
  %1609 = vmatpush1.bf16.msra.mxu0 %v1139
  %1610 = vmatprep.subr.bf16.mxu0 0
  %1611 = vmatpush1.bf16.msra.mxu0 %v1140
  %1612 = vmatprep.subr.bf16.mxu0 0
  %1613 = vmatpush1.bf16.msra.mxu0 %v1141
  %1614 = vmatprep.mubr.bf16.mxu0 %v449
  %1615 = vmatmul.mubr.bf16.gmra.mrb[0].mxu0 %v448
  %v1616 = vpop.f32.mrb[0].mxu0
  %v1617 = vadd.f32 %v1561, %v1616
  %v1618 = vpop.f32.mrb[0].mxu0
  %v1619 = vpop.f32.mrb[0].mxu0
  %v1620 = vadd.f32 %v1564, %v1619
  %v1621 = vpop.f32.mrb[0].mxu0
  %1622 = vmatprep.mubr.bf16.mxu0 %v465
  %1623 = vmatmul.mubr.bf16.gmra.mrb[0].mxu0 %v464
  %v1624 = vpop.f32.mrb[0].mxu0
  %v1625 = vadd.f32 %v1569, %v1624
  %v1626 = vpop.f32.mrb[0].mxu0
  %v1627 = vpop.f32.mrb[0].mxu0
  %v1628 = vadd.f32 %v1572, %v1627
  %v1629 = vpop.f32.mrb[0].mxu0
  %1630 = vmatprep.mubr.bf16.mxu0 %v481
  %1631 = vmatmul.mubr.bf16.gmra.mrb[0].mxu0 %v480
  %v1632 = vpop.f32.mrb[0].mxu0
  %v1633 = vadd.f32 %v1577, %v1632
  %v1634 = vpop.f32.mrb[0].mxu0
  %v1635 = vpop.f32.mrb[0].mxu0
  %v1636 = vpop.f32.mrb[0].mxu0
  %1637 = vdwg.mxu0
  %1638 = vmatprep.subr.bf16.mxu0 0
  %1639 = vmatpush1.bf16.msra.mxu0 %v1142
  %1640 = vmatprep.subr.bf16.mxu0 0
  %1641 = vmatpush1.bf16.msra.mxu0 %v1143
  %1642 = vmatprep.subr.bf16.mxu0 0
  %1643 = vmatpush1.bf16.msra.mxu0 %v1144
  %1644 = vmatprep.subr.bf16.mxu0 0
  %1645 = vmatpush1.bf16.msra.mxu0 %v1145
  %1646 = vmatprep.subr.bf16.mxu0 0
  %1647 = vmatpush1.bf16.msra.mxu0 %v1146
  %1648 = vmatprep.subr.bf16.mxu0 0
  %1649 = vmatpush1.bf16.msra.mxu0 %v1147
  %1650 = vmatprep.subr.bf16.mxu0 0
  %1651 = vmatpush1.bf16.msra.mxu0 %v1148
  %1652 = vmatprep.subr.bf16.mxu0 0
  %1653 = vmatpush1.bf16.msra.mxu0 %v1149
  %1654 = vmatprep.subr.bf16.mxu0 0
  %1655 = vmatpush1.bf16.msra.mxu0 %v1150
  %1656 = vmatprep.subr.bf16.mxu0 0
  %1657 = vmatpush1.bf16.msra.mxu0 %v1151
  %1658 = vmatprep.subr.bf16.mxu0 0
  %1659 = vmatpush1.bf16.msra.mxu0 %v1152
  %1660 = vmatprep.subr.bf16.mxu0 0
  %1661 = vmatpush1.bf16.msra.mxu0 %v1153
  %1662 = vmatprep.subr.bf16.mxu0 0
  %1663 = vmatpush1.bf16.msra.mxu0 %v1154
  %1664 = vmatprep.subr.bf16.mxu0 0
  %1665 = vmatpush1.bf16.msra.mxu0 %v1155
  %1666 = vmatprep.subr.bf16.mxu0 0
  %1667 = vmatpush1.bf16.msra.mxu0 %v1156
  %1668 = vmatprep.subr.bf16.mxu0 0
  %1669 = vmatpush1.bf16.msra.mxu0 %v1157
  %1670 = vmatprep.mubr.bf16.mxu0 %v451
  %1671 = vmatmul.mubr.bf16.gmra.mrb[0].mxu0 %v450
  %v1672 = vpop.f32.mrb[0].mxu0
  %v1673 = vadd.f32 %v1617, %v1672
  %v1674 = vpop.f32.mrb[0].mxu0
  %v1675 = vpop.f32.mrb[0].mxu0
  %v1676 = vadd.f32 %v1620, %v1675
  %v1677 = vpop.f32.mrb[0].mxu0
  %1678 = vmatprep.mubr.bf16.mxu0 %v467
  %1679 = vmatmul.mubr.bf16.gmra.mrb[0].mxu0 %v466
  %v1680 = vpop.f32.mrb[0].mxu0
  %v1681 = vadd.f32 %v1625, %v1680
  %v1682 = vpop.f32.mrb[0].mxu0
  %v1683 = vpop.f32.mrb[0].mxu0
  %v1684 = vadd.f32 %v1628, %v1683
  %v1685 = vpop.f32.mrb[0].mxu0
  %1686 = vmatprep.mubr.bf16.mxu0 %v483
  %1687 = vmatmul.mubr.bf16.gmra.mrb[0].mxu0 %v482
  %v1688 = vpop.f32.mrb[0].mxu0
  %v1689 = vadd.f32 %v1633, %v1688
  %v1690 = vpop.f32.mrb[0].mxu0
  %v1691 = vpop.f32.mrb[0].mxu0
  %v1692 = vpop.f32.mrb[0].mxu0
  %1693 = vdwg.mxu0
  %1694 = vmatprep.subr.bf16.mxu0 0
  %1695 = vmatpush1.bf16.msra.mxu0 %v1158
  %1696 = vmatprep.subr.bf16.mxu0 0
  %1697 = vmatpush1.bf16.msra.mxu0 %v1159
  %1698 = vmatprep.subr.bf16.mxu0 0
  %1699 = vmatpush1.bf16.msra.mxu0 %v1160
  %1700 = vmatprep.subr.bf16.mxu0 0
  %1701 = vmatpush1.bf16.msra.mxu0 %v1161
  %1702 = vmatprep.subr.bf16.mxu0 0
  %1703 = vmatpush1.bf16.msra.mxu0 %v1162
  %1704 = vmatprep.subr.bf16.mxu0 0
  %1705 = vmatpush1.bf16.msra.mxu0 %v1163
  %1706 = vmatprep.subr.bf16.mxu0 0
  %1707 = vmatpush1.bf16.msra.mxu0 %v1164
  %1708 = vmatprep.subr.bf16.mxu0 0
  %1709 = vmatpush1.bf16.msra.mxu0 %v1165
  %1710 = vmatprep.subr.bf16.mxu0 0
  %1711 = vmatpush1.bf16.msra.mxu0 %v1166
  %1712 = vmatprep.subr.bf16.mxu0 0
  %1713 = vmatpush1.bf16.msra.mxu0 %v1167
  %1714 = vmatprep.subr.bf16.mxu0 0
  %1715 = vmatpush1.bf16.msra.mxu0 %v1168
  %1716 = vmatprep.subr.bf16.mxu0 0
  %1717 = vmatpush1.bf16.msra.mxu0 %v1169
  %1718 = vmatprep.subr.bf16.mxu0 0
  %1719 = vmatpush1.bf16.msra.mxu0 %v1170
  %1720 = vmatprep.subr.bf16.mxu0 0
  %1721 = vmatpush1.bf16.msra.mxu0 %v1171
  %1722 = vmatprep.subr.bf16.mxu0 0
  %1723 = vmatpush1.bf16.msra.mxu0 %v1172
  %1724 = vmatprep.subr.bf16.mxu0 0
  %1725 = vmatpush1.bf16.msra.mxu0 %v1173
  %1726 = vmatprep.mubr.bf16.mxu0 %v453
  %1727 = vmatmul.mubr.bf16.gmra.mrb[0].mxu0 %v452
  %v1728 = vpop.f32.mrb[0].mxu0
  %v1729 = vadd.f32 %v1673, %v1728
  %v1730 = vpop.f32.mrb[0].mxu0
  %v1731 = vpop.f32.mrb[0].mxu0
  %v1732 = vadd.f32 %v1676, %v1731
  %v1733 = vpop.f32.mrb[0].mxu0
  %1734 = vmatprep.mubr.bf16.mxu0 %v469
  %1735 = vmatmul.mubr.bf16.gmra.mrb[0].mxu0 %v468
  %v1736 = vpop.f32.mrb[0].mxu0
  %v1737 = vadd.f32 %v1681, %v1736
  %v1738 = vpop.f32.mrb[0].mxu0
  %v1739 = vpop.f32.mrb[0].mxu0
  %v1740 = vadd.f32 %v1684, %v1739
  %v1741 = vpop.f32.mrb[0].mxu0
  %1742 = vmatprep.mubr.bf16.mxu0 %v485
  %1743 = vmatmul.mubr.bf16.gmra.mrb[0].mxu0 %v484
  %v1744 = vpop.f32.mrb[0].mxu0
  %v1745 = vadd.f32 %v1689, %v1744
  %v1746 = vpop.f32.mrb[0].mxu0
  %v1747 = vpop.f32.mrb[0].mxu0
  %v1748 = vpop.f32.mrb[0].mxu0
  %1749 = vdwg.mxu0
  %vm1750 = vcmp.ge.f32.partialorder %v1729, 0.0
  %vm1751 = vcmp.ge.f32.partialorder %v1732, 0.0
  %vm1752 = vcmp.ge.f32.partialorder %v1737, 0.0
  %vm1753 = vcmp.ge.f32.partialorder %v1740, 0.0
  %vm1754 = vcmp.ge.f32.partialorder %v1745, 0.0
  %v1755 = vmul.f32 %v1729, 0.01
  %v1756 = vmul.f32 %v1732, 0.01
  %v1757 = vmul.f32 %v1737, 0.01
  %v1758 = vmul.f32 %v1740, 0.01
  %v1759 = vmul.f32 %v1745, 0.01
  %v1760 = vsel %vm1750, %v1729, %v1755
  %v1761 = vsel %vm1751, %v1732, %v1756
  %v1762 = vsel %vm1752, %v1737, %v1757
  %v1763 = vsel %vm1753, %v1740, %v1758
  %v1764 = vsel %vm1754, %v1745, %v1759
  %v1765 = vpack.c.bf16 %v1761, %v1760
  %v1766 = vpack.c.bf16 %v1763, %v1762
  %v1767 = vpack.c.bf16 %v1764, %v1764
  %v1771 = vunpack.c.l.b16 %v1765
  %v1772 = vunpack.c.h.b16 %v1765
  %v1773 = vunpack.c.l.b16 %v1766
  %v1774 = vunpack.c.h.b16 %v1766
  %v1775 = vunpack.c.l.b16 %v1767
  %v1776 = vpack.c.b16 %v1771, %v1771
  %v1777 = vpack.c.b16 %v1772, %v1772
  %v1778 = vpack.c.b16 %v1773, %v1773
  %v1779 = vpack.c.b16 %v1774, %v1774
  %v1780 = vpack.c.b16 %v1775, %v1775
  %1786 = vst [vmem:[%s3] sm:$0xf] %v1776
  %1787 = vst [vmem:[%s3 + $0x4] sm:$0xf] %v1777
  %1788 = vst [vmem:[%s3 + $0x8] sm:$0xf] %v1778
  %1789 = vst [vmem:[%s3 + $0xc] sm:$0xf] %v1779
  %1790 = vst [vmem:[%s3 + $0x10] sm:$0xf] %v1780
  // Predicated region
  $region14: #{rnd_forward.6} parent=0 // pred_check
    _
  $region15: #{rnd_forward.6} parent=0 // pred_check_branch
    %1792 = sbr.rel (0) target = $region17
  $region16: #{rnd_forward.6} parent=0 // pred_region
    _
  $region17: #{rnd_forward.6} parent=0 // pred_fallthru
    _
  // Predicated region
  $region18: #{rnd_forward.6} parent=0 // pred_check
    _
  $region19: #{rnd_forward.6} parent=0 // pred_check_branch
    %1794 = sbr.rel (0) target = $region21
  $region20: #{rnd_forward.6} parent=0 // pred_region
    _
  $region21: #{rnd_forward.6} parent=0 // pred_fallthru
    _

// kernel: rnd_forward.7
$region0: #{rnd_forward.7}
  #allocation0 [shape = 'u32[]', space=smem, size = 0x4, offset = 0x4, fixed_abs, tag = 'smem constant byte address 0x4 - core index']
  #allocation1 [shape = 'u32[144,128]{1,0:T(1,128)}', space=vmem, size = 0x12000, scoped, tag = 'internal scratch']
  %s0 = inlined_call_operand.vmem [shape: bf16[8,1152], index: 0, kind: input, shape index: {}]
  %s1 = inlined_call_operand.vmem [shape: bf16[2,1152,128], index: 1, kind: input, shape index: {}]
  %s2 = inlined_call_operand.vmem [shape: f32[2,1,128], index: 2, kind: input, shape index: {}]
  %s3 = inlined_call_operand.vmem [shape: bf16[2,128,512], index: 3, kind: input, shape index: {}]
  %s4 = inlined_call_operand.vmem [shape: f32[2,1,512], index: 4, kind: input, shape index: {}]
  %s5 = inlined_call_operand.vmem [shape: bf16[2,512,512], index: 5, kind: input, shape index: {}]
  %s6 = inlined_call_operand.vmem [shape: f32[2,1,512], index: 6, kind: input, shape index: {}]
  %s7 = inlined_call_operand.vmem [shape: bf16[2,512,512], index: 7, kind: input, shape index: {}]
  %s8 = inlined_call_operand.vmem [shape: f32[2,1,512], index: 8, kind: input, shape index: {}]
  %s9 = inlined_call_operand.vmem [shape: f32[2,8,512], index: 9, kind: output, shape index: {}]
  %s10 = sld [smem:[#allocation0]]
  $region69: #{rnd_forward.7} parent=0
    _
  %s12 = ssub.s32 1, %s10
  %s13 = scalar_select 0, %s12, %s10
  loop: start=0, step=1, limit=4
  $region2: #{rnd_forward.7} parent=0 // loop_pre_header
    _
  $region3: #{rnd_forward.7} parent=0 // loop_header
    %s15 = sphi 0, %s19
    %p16 = scmp.ge.s32.totalorder %s15, 4
    %s22 = sphi 0, %s34
    %s23 = sphi 0, %s30
    %s24 = sphi 0, %s22
    %s25 = sphi 0, %s23
    %s26 = sphi 0, %s24
    %s27 = sphi 0, %s25
    %s37 = sphi 0, %s39
    %s40 = sphi 0, %s37
    %s41 = sphi 0, %s40
    %s57 = sphi 0, %s41
    %s63 = sphi 0, %s65
    %s66 = sphi 0, %s63
    %s67 = sphi 0, %s66
    %s83 = sphi 0, %s67
    %s89 = sphi 0, %s91
    %s92 = sphi 0, %s89
    %s93 = sphi 0, %s92
    %s109 = sphi 0, %s93
    %s115 = sphi 0, %s117
    %s118 = sphi 0, %s115
    %s119 = sphi 0, %s118
    %s135 = sphi 0, %s119
    %s141 = sphi 0, %s143
    %s144 = sphi 0, %s141
    %s145 = sphi 0, %s144
    %s161 = sphi 0, %s145
    %s167 = sphi 0, %s169
    %s170 = sphi 0, %s167
    %s171 = sphi 0, %s170
    %s187 = sphi 0, %s171
    %s193 = sphi 0, %s195
    %s196 = sphi 0, %s193
    %s197 = sphi 0, %s196
    %s213 = sphi 0, %s197
    %s219 = sphi 0, %s221
    %s222 = sphi 0, %s219
    %s223 = sphi 0, %s222
    %s239 = sphi 0, %s223
    %s245 = sphi 0, %s247
    %s248 = sphi 0, %s245
    %s249 = sphi 0, %s248
    %s265 = sphi 0, %s249
    %s273 = sphi 0, %s275
    %s276 = sphi 0, %s273
    %s277 = sphi 0, %s276
    %s293 = sphi 0, %s277
  $region4: #{rnd_forward.7} parent=0 // loop_header_branch
    %18 = sbr.rel (%p16) target = $region8
  $region5: #{rnd_forward.7} parent=0 // loop_body
    %s20 = ssub.s32 %s15, 1
    %s21 = ssub.s32 %s15, 2
    %s28 = sadd.s32 1, %s23
    %p29 = scmp.ge.s32.totalorder %s28, 1
    %s30 = scalar_select %p29, 0, %s28
    %s31 = sadd.s32 1, %s22
    %s32 = scalar_select %p29, %s31, %s22
    %p33 = scmp.ge.s32.totalorder %s32, 2
    %s34 = scalar_select %p33, 0, %s32
    %s35 = ssub.s32 %s23, %s30
    %p36 = scmp.eq.s32.totalorder %s35, 0
    %s38 = sadd.s32 %s37, 1
    %s39 = scalar_select %p36, %s37, %s38
    %p42 = pneg %p36
    %p43 = scmp.eq.s32.totalorder %s15, 1
    %p44 = por %p42, %p43
    %p45 = scmp.ne.s32.totalorder %s37, %s40
    %p46 = scmp.eq.s32.totalorder %s15, 0
    %p47 = por %p45, %p46
    %p48 = scmp.ne.s32.totalorder %s37, %s40
    %p49 = scmp.eq.s32.totalorder %s20, 1
    %p50 = por %p48, %p49
    %p51 = scmp.ne.s32.totalorder %s40, %s41
    %p52 = scmp.eq.s32.totalorder %s20, 0
    %p53 = por %p51, %p52
    %p54 = scmp.ne.s32.totalorder %s40, %s41
    %p55 = scmp.eq.s32.totalorder %s21, 1
    %p56 = por %p54, %p55
    %p58 = scmp.ne.s32.totalorder %s41, %s57
    %p59 = scmp.eq.s32.totalorder %s21, 0
    %p60 = por %p58, %p59
    %s61 = ssub.s32 %s22, %s34
    %p62 = scmp.eq.s32.totalorder %s61, 0
    %s64 = sadd.s32 %s63, 1
    %s65 = scalar_select %p62, %s63, %s64
    %p68 = pneg %p62
    %p69 = scmp.eq.s32.totalorder %s15, 1
    %p70 = por %p68, %p69
    %p71 = scmp.ne.s32.totalorder %s63, %s66
    %p72 = scmp.eq.s32.totalorder %s15, 0
    %p73 = por %p71, %p72
    %p74 = scmp.ne.s32.totalorder %s63, %s66
    %p75 = scmp.eq.s32.totalorder %s20, 1
    %p76 = por %p74, %p75
    %p77 = scmp.ne.s32.totalorder %s66, %s67
    %p78 = scmp.eq.s32.totalorder %s20, 0
    %p79 = por %p77, %p78
    %p80 = scmp.ne.s32.totalorder %s66, %s67
    %p81 = scmp.eq.s32.totalorder %s21, 1
    %p82 = por %p80, %p81
    %p84 = scmp.ne.s32.totalorder %s67, %s83
    %p85 = scmp.eq.s32.totalorder %s21, 0
    %p86 = por %p84, %p85
    %s87 = ssub.s32 %s22, %s34
    %p88 = scmp.eq.s32.totalorder %s87, 0
    %s90 = sadd.s32 %s89, 1
    %s91 = scalar_select %p88, %s89, %s90
    %p94 = pneg %p88
    %p95 = scmp.eq.s32.totalorder %s15, 1
    %p96 = por %p94, %p95
    %p97 = scmp.ne.s32.totalorder %s89, %s92
    %p98 = scmp.eq.s32.totalorder %s15, 0
    %p99 = por %p97, %p98
    %p100 = scmp.ne.s32.totalorder %s89, %s92
    %p101 = scmp.eq.s32.totalorder %s20, 1
    %p102 = por %p100, %p101
    %p103 = scmp.ne.s32.totalorder %s92, %s93
    %p104 = scmp.eq.s32.totalorder %s20, 0
    %p105 = por %p103, %p104
    %p106 = scmp.ne.s32.totalorder %s92, %s93
    %p107 = scmp.eq.s32.totalorder %s21, 1
    %p108 = por %p106, %p107
    %p110 = scmp.ne.s32.totalorder %s93, %s109
    %p111 = scmp.eq.s32.totalorder %s21, 0
    %p112 = por %p110, %p111
    %s113 = ssub.s32 %s22, %s34
    %p114 = scmp.eq.s32.totalorder %s113, 0
    %s116 = sadd.s32 %s115, 1
    %s117 = scalar_select %p114, %s115, %s116
    %p120 = pneg %p114
    %p121 = scmp.eq.s32.totalorder %s15, 1
    %p122 = por %p120, %p121
    %p123 = scmp.ne.s32.totalorder %s115, %s118
    %p124 = scmp.eq.s32.totalorder %s15, 0
    %p125 = por %p123, %p124
    %p126 = scmp.ne.s32.totalorder %s115, %s118
    %p127 = scmp.eq.s32.totalorder %s20, 1
    %p128 = por %p126, %p127
    %p129 = scmp.ne.s32.totalorder %s118, %s119
    %p130 = scmp.eq.s32.totalorder %s20, 0
    %p131 = por %p129, %p130
    %p132 = scmp.ne.s32.totalorder %s118, %s119
    %p133 = scmp.eq.s32.totalorder %s21, 1
    %p134 = por %p132, %p133
    %p136 = scmp.ne.s32.totalorder %s119, %s135
    %p137 = scmp.eq.s32.totalorder %s21, 0
    %p138 = por %p136, %p137
    %s139 = ssub.s32 %s22, %s34
    %p140 = scmp.eq.s32.totalorder %s139, 0
    %s142 = sadd.s32 %s141, 1
    %s143 = scalar_select %p140, %s141, %s142
    %p146 = pneg %p140
    %p147 = scmp.eq.s32.totalorder %s15, 1
    %p148 = por %p146, %p147
    %p149 = scmp.ne.s32.totalorder %s141, %s144
    %p150 = scmp.eq.s32.totalorder %s15, 0
    %p151 = por %p149, %p150
    %p152 = scmp.ne.s32.totalorder %s141, %s144
    %p153 = scmp.eq.s32.totalorder %s20, 1
    %p154 = por %p152, %p153
    %p155 = scmp.ne.s32.totalorder %s144, %s145
    %p156 = scmp.eq.s32.totalorder %s20, 0
    %p157 = por %p155, %p156
    %p158 = scmp.ne.s32.totalorder %s144, %s145
    %p159 = scmp.eq.s32.totalorder %s21, 1
    %p160 = por %p158, %p159
    %p162 = scmp.ne.s32.totalorder %s145, %s161
    %p163 = scmp.eq.s32.totalorder %s21, 0
    %p164 = por %p162, %p163
    %s165 = ssub.s32 %s22, %s34
    %p166 = scmp.eq.s32.totalorder %s165, 0
    %s168 = sadd.s32 %s167, 1
    %s169 = scalar_select %p166, %s167, %s168
    %p172 = pneg %p166
    %p173 = scmp.eq.s32.totalorder %s15, 1
    %p174 = por %p172, %p173
    %p175 = scmp.ne.s32.totalorder %s167, %s170
    %p176 = scmp.eq.s32.totalorder %s15, 0
    %p177 = por %p175, %p176
    %p178 = scmp.ne.s32.totalorder %s167, %s170
    %p179 = scmp.eq.s32.totalorder %s20, 1
    %p180 = por %p178, %p179
    %p181 = scmp.ne.s32.totalorder %s170, %s171
    %p182 = scmp.eq.s32.totalorder %s20, 0
    %p183 = por %p181, %p182
    %p184 = scmp.ne.s32.totalorder %s170, %s171
    %p185 = scmp.eq.s32.totalorder %s21, 1
    %p186 = por %p184, %p185
    %p188 = scmp.ne.s32.totalorder %s171, %s187
    %p189 = scmp.eq.s32.totalorder %s21, 0
    %p190 = por %p188, %p189
    %s191 = ssub.s32 %s22, %s34
    %p192 = scmp.eq.s32.totalorder %s191, 0
    %s194 = sadd.s32 %s193, 1
    %s195 = scalar_select %p192, %s193, %s194
    %p198 = pneg %p192
    %p199 = scmp.eq.s32.totalorder %s15, 1
    %p200 = por %p198, %p199
    %p201 = scmp.ne.s32.totalorder %s193, %s196
    %p202 = scmp.eq.s32.totalorder %s15, 0
    %p203 = por %p201, %p202
    %p204 = scmp.ne.s32.totalorder %s193, %s196
    %p205 = scmp.eq.s32.totalorder %s20, 1
    %p206 = por %p204, %p205
    %p207 = scmp.ne.s32.totalorder %s196, %s197
    %p208 = scmp.eq.s32.totalorder %s20, 0
    %p209 = por %p207, %p208
    %p210 = scmp.ne.s32.totalorder %s196, %s197
    %p211 = scmp.eq.s32.totalorder %s21, 1
    %p212 = por %p210, %p211
    %p214 = scmp.ne.s32.totalorder %s197, %s213
    %p215 = scmp.eq.s32.totalorder %s21, 0
    %p216 = por %p214, %p215
    %s217 = ssub.s32 %s22, %s34
    %p218 = scmp.eq.s32.totalorder %s217, 0
    %s220 = sadd.s32 %s219, 1
    %s221 = scalar_select %p218, %s219, %s220
    %p224 = pneg %p218
    %p225 = scmp.eq.s32.totalorder %s15, 1
    %p226 = por %p224, %p225
    %p227 = scmp.ne.s32.totalorder %s219, %s222
    %p228 = scmp.eq.s32.totalorder %s15, 0
    %p229 = por %p227, %p228
    %p230 = scmp.ne.s32.totalorder %s219, %s222
    %p231 = scmp.eq.s32.totalorder %s20, 1
    %p232 = por %p230, %p231
    %p233 = scmp.ne.s32.totalorder %s222, %s223
    %p234 = scmp.eq.s32.totalorder %s20, 0
    %p235 = por %p233, %p234
    %p236 = scmp.ne.s32.totalorder %s222, %s223
    %p237 = scmp.eq.s32.totalorder %s21, 1
    %p238 = por %p236, %p237
    %p240 = scmp.ne.s32.totalorder %s223, %s239
    %p241 = scmp.eq.s32.totalorder %s21, 0
    %p242 = por %p240, %p241
    %s243 = ssub.s32 %s22, %s34
    %p244 = scmp.eq.s32.totalorder %s243, 0
    %s246 = sadd.s32 %s245, 1
    %s247 = scalar_select %p244, %s245, %s246
    %p250 = pneg %p244
    %p251 = scmp.eq.s32.totalorder %s15, 1
    %p252 = por %p250, %p251
    %p253 = scmp.ne.s32.totalorder %s245, %s248
    %p254 = scmp.eq.s32.totalorder %s15, 0
    %p255 = por %p253, %p254
    %p256 = scmp.ne.s32.totalorder %s245, %s248
    %p257 = scmp.eq.s32.totalorder %s20, 1
    %p258 = por %p256, %p257
    %p259 = scmp.ne.s32.totalorder %s248, %s249
    %p260 = scmp.eq.s32.totalorder %s20, 0
    %p261 = por %p259, %p260
    %p262 = scmp.ne.s32.totalorder %s248, %s249
    %p263 = scmp.eq.s32.totalorder %s21, 1
    %p264 = por %p262, %p263
    %p266 = scmp.ne.s32.totalorder %s249, %s265
    %p267 = scmp.eq.s32.totalorder %s21, 0
    %p268 = por %p266, %p267
    %s269 = ssub.s32 %s22, %s34
    %s270 = ssub.s32 %s23, %s30
    %s271 = sor.u32 %s269, %s270
    %p272 = scmp.eq.s32.totalorder %s271, 0
    %s274 = sadd.s32 %s273, 1
    %s275 = scalar_select %p272, %s273, %s274
    %p278 = pneg %p272
    %p279 = scmp.eq.s32.totalorder %s15, 1
    %p280 = por %p278, %p279
    %p281 = scmp.ne.s32.totalorder %s273, %s276
    %p282 = scmp.eq.s32.totalorder %s15, 0
    %p283 = por %p281, %p282
    %p284 = scmp.ne.s32.totalorder %s273, %s276
    %p285 = scmp.eq.s32.totalorder %s20, 1
    %p286 = por %p284, %p285
    %p287 = scmp.ne.s32.totalorder %s276, %s277
    %p288 = scmp.eq.s32.totalorder %s20, 0
    %p289 = por %p287, %p288
    %p290 = scmp.ne.s32.totalorder %s276, %s277
    %p291 = scmp.eq.s32.totalorder %s21, 1
    %p292 = por %p290, %p291
    %p294 = scmp.ne.s32.totalorder %s277, %s293
    %p295 = scmp.eq.s32.totalorder %s21, 0
    %p296 = por %p294, %p295
    %p297 = scmp.le.s32.totalorder 1, %s15
    %p298 = scmp.lt.s32.totalorder %s15, 3
    %p299 = pnand %p297, %p298
    %p300 = pneg %p299
    // Predicated region
    $region9: #{rnd_forward.7} parent=5 // pred_check
      _
    $region10: #{rnd_forward.7} parent=5 // pred_check_branch
      %302 = sbr.rel (%p299) target = $region12
    $region11: #{rnd_forward.7} parent=5 // pred_region
      %s303 = ssub.s32 %s15, 1
      // Predicated region
      $region13: #{rnd_forward.7} parent=11 // pred_check
        %p304 = pneg %p53
      $region14: #{rnd_forward.7} parent=11 // pred_check_branch
        %306 = sbr.rel (%p304) target = $region16
      $region15: #{rnd_forward.7} parent=11 // pred_region
        %p307 = scmp.lt.s32.totalorder %s25, 0
        %s308 = scalar_select %p307, %s25, 0
        %s309 = smul.addr %s308, 9
        %s310 = smul.addr %s309, 4
        %s311 = scalar_lea.vmem %s0, %s310
      $region16: #{rnd_forward.7} parent=11 // pred_fallthru
        _
    $region12: #{rnd_forward.7} parent=5 // pred_fallthru
      _
    %p312 = scmp.lt.s32.totalorder %s15, 2
    // Predicated region
    $region17: #{rnd_forward.7} parent=5 // pred_check
      %p313 = pneg %p312
    $region18: #{rnd_forward.7} parent=5 // pred_check_branch
      %315 = sbr.rel (%p313) target = $region20
    $region19: #{rnd_forward.7} parent=5 // pred_region
      // Predicated region
      $region21: #{rnd_forward.7} parent=19 // pred_check
        %p316 = pneg %p73
      $region22: #{rnd_forward.7} parent=19 // pred_check_branch
        %318 = sbr.rel (%p316) target = $region24
      $region23: #{rnd_forward.7} parent=19 // pred_region
        %p319 = scmp.lt.s32.totalorder %s22, 1
        %s320 = scalar_select %p319, %s22, 1
        %s321 = smul.addr %s320, 144
        %s322 = smul.addr %s321, 4
        %s323 = scalar_lea.vmem %s1, %s322
      $region24: #{rnd_forward.7} parent=19 // pred_fallthru
        _
      // Predicated region
      $region25: #{rnd_forward.7} parent=19 // pred_check
        %p324 = pneg %p99
      $region26: #{rnd_forward.7} parent=19 // pred_check_branch
        %326 = sbr.rel (%p324) target = $region28
      $region27: #{rnd_forward.7} parent=19 // pred_region
        %p327 = scmp.lt.s32.totalorder %s22, 1
        %s328 = scalar_select %p327, %s22, 1
        %s329 = scalar_lea.vmem %s2, %s328
      $region28: #{rnd_forward.7} parent=19 // pred_fallthru
        _
      // Predicated region
      $region29: #{rnd_forward.7} parent=19 // pred_check
        %p330 = pneg %p125
      $region30: #{rnd_forward.7} parent=19 // pred_check_branch
        %332 = sbr.rel (%p330) target = $region32
      $region31: #{rnd_forward.7} parent=19 // pred_region
        %p333 = scmp.lt.s32.totalorder %s22, 1
        %s334 = scalar_select %p333, %s22, 1
        %s335 = smul.addr %s334, 64
        %s336 = smul.addr %s335, 4
        %s337 = scalar_lea.vmem %s3, %s336
      $region32: #{rnd_forward.7} parent=19 // pred_fallthru
        _
      // Predicated region
      $region33: #{rnd_forward.7} parent=19 // pred_check
        %p338 = pneg %p151
      $region34: #{rnd_forward.7} parent=19 // pred_check_branch
        %340 = sbr.rel (%p338) target = $region36
      $region35: #{rnd_forward.7} parent=19 // pred_region
        %p341 = scmp.lt.s32.totalorder %s22, 1
        %s342 = scalar_select %p341, %s22, 1
        %s343 = smul.addr %s342, 4
        %s344 = scalar_lea.vmem %s4, %s343
      $region36: #{rnd_forward.7} parent=19 // pred_fallthru
        _
      // Predicated region
      $region37: #{rnd_forward.7} parent=19 // pred_check
        %p345 = pneg %p177
      $region38: #{rnd_forward.7} parent=19 // pred_check_branch
        %347 = sbr.rel (%p345) target = $region40
      $region39: #{rnd_forward.7} parent=19 // pred_region
        %p348 = scmp.lt.s32.totalorder %s22, 1
        %s349 = scalar_select %p348, %s22, 1
        %s350 = smul.addr %s349, 256
        %s351 = smul.addr %s350, 4
        %s352 = scalar_lea.vmem %s5, %s351
      $region40: #{rnd_forward.7} parent=19 // pred_fallthru
        _
      // Predicated region
      $region41: #{rnd_forward.7} parent=19 // pred_check
        %p353 = pneg %p203
      $region42: #{rnd_forward.7} parent=19 // pred_check_branch
        %355 = sbr.rel (%p353) target = $region44
      $region43: #{rnd_forward.7} parent=19 // pred_region
        %p356 = scmp.lt.s32.totalorder %s22, 1
        %s357 = scalar_select %p356, %s22, 1
        %s358 = smul.addr %s357, 4
        %s359 = scalar_lea.vmem %s6, %s358
      $region44: #{rnd_forward.7} parent=19 // pred_fallthru
        _
      // Predicated region
      $region45: #{rnd_forward.7} parent=19 // pred_check
        %p360 = pneg %p229
      $region46: #{rnd_forward.7} parent=19 // pred_check_branch
        %362 = sbr.rel (%p360) target = $region48
      $region47: #{rnd_forward.7} parent=19 // pred_region
        %p363 = scmp.lt.s32.totalorder %s22, 1
        %s364 = scalar_select %p363, %s22, 1
        %s365 = smul.addr %s364, 256
        %s366 = smul.addr %s365, 4
        %s367 = scalar_lea.vmem %s7, %s366
      $region48: #{rnd_forward.7} parent=19 // pred_fallthru
        _
      // Predicated region
      $region49: #{rnd_forward.7} parent=19 // pred_check
        %p368 = pneg %p255
      $region50: #{rnd_forward.7} parent=19 // pred_check_branch
        %370 = sbr.rel (%p368) target = $region52
      $region51: #{rnd_forward.7} parent=19 // pred_region
        %p371 = scmp.lt.s32.totalorder %s22, 1
        %s372 = scalar_select %p371, %s22, 1
        %s373 = smul.addr %s372, 4
        %s374 = scalar_lea.vmem %s8, %s373
      $region52: #{rnd_forward.7} parent=19 // pred_fallthru
        _
    $region20: #{rnd_forward.7} parent=5 // pred_fallthru
      _
    %p375 = scmp.le.s32.totalorder 1, %s15
    %p376 = scmp.lt.s32.totalorder %s15, 3
    %p377 = pnand %p375, %p376
    %p378 = pneg %p377
    // Predicated region
    $region53: #{rnd_forward.7} parent=5 // pred_check
      _
    $region54: #{rnd_forward.7} parent=5 // pred_check_branch
      %380 = sbr.rel (%p377) target = $region56
    $region55: #{rnd_forward.7} parent=5 // pred_region
      %s381 = ssub.s32 %s15, 1
      %p382 = scmp.lt.s32.totalorder %s25, 0
      %s383 = scalar_select %p382, %s25, 0
      %s384 = smul.addr %s383, 9
      %s385 = smul.addr %s384, 4
      %s386 = scalar_lea.vmem %s0, %s385
      %p387 = pneg %p53
      %p388 = pneg %p50
      %p389 = scmp.lt.s32.totalorder %s24, 1
      %s390 = scalar_select %p389, %s24, 1
      %s391 = smul.addr %s390, 144
      %s392 = smul.addr %s391, 4
      %s393 = scalar_lea.vmem %s1, %s392
      %p394 = pneg %p79
      %p395 = pneg %p76
      %p396 = scmp.lt.s32.totalorder %s24, 1
      %s397 = scalar_select %p396, %s24, 1
      %s398 = scalar_lea.vmem %s2, %s397
      %p399 = pneg %p105
      %p400 = pneg %p102
      %p401 = scmp.lt.s32.totalorder %s24, 1
      %s402 = scalar_select %p401, %s24, 1
      %s403 = smul.addr %s402, 64
      %s404 = smul.addr %s403, 4
      %s405 = scalar_lea.vmem %s3, %s404
      %p406 = pneg %p131
      %p407 = pneg %p128
      %p408 = scmp.lt.s32.totalorder %s24, 1
      %s409 = scalar_select %p408, %s24, 1
      %s410 = smul.addr %s409, 4
      %s411 = scalar_lea.vmem %s4, %s410
      %p412 = pneg %p157
      %p413 = pneg %p154
      %p414 = scmp.lt.s32.totalorder %s24, 1
      %s415 = scalar_select %p414, %s24, 1
      %s416 = smul.addr %s415, 256
      %s417 = smul.addr %s416, 4
      %s418 = scalar_lea.vmem %s5, %s417
      %p419 = pneg %p183
      %p420 = pneg %p180
      %p421 = scmp.lt.s32.totalorder %s24, 1
      %s422 = scalar_select %p421, %s24, 1
      %s423 = smul.addr %s422, 4
      %s424 = scalar_lea.vmem %s6, %s423
      %p425 = pneg %p209
      %p426 = pneg %p206
      %p427 = scmp.lt.s32.totalorder %s24, 1
      %s428 = scalar_select %p427, %s24, 1
      %s429 = smul.addr %s428, 256
      %s430 = smul.addr %s429, 4
      %s431 = scalar_lea.vmem %s7, %s430
      %p432 = pneg %p235
      %p433 = pneg %p232
      %p434 = scmp.lt.s32.totalorder %s24, 1
      %s435 = scalar_select %p434, %s24, 1
      %s436 = smul.addr %s435, 4
      %s437 = scalar_lea.vmem %s8, %s436
      %p438 = pneg %p261
      %p439 = pneg %p258
      %p440 = pneg %p289
      %p441 = pneg %p286
      %p442 = scmp.lt.s32.totalorder %s24, 1
      %s443 = scalar_select %p442, %s24, 1
      %p444 = scmp.lt.s32.totalorder %s25, 0
      %s445 = scalar_select %p444, %s25, 0
      %s446 = smul.addr %s445, 4
      %s447 = smul.addr %s443, 4
      %s448 = sadd.s32 %s446, %s447
      %s449 = smul.addr %s448, 8
      %s450 = scalar_lea.vmem %s9, %s449
      %p451 = scmp.lt.s32.totalorder %s25, 0
      %s452 = scalar_select %p451, %s25, 0
      %s453 = smul.addr %s452, 9
      %s454 = smul.addr %s453, 4
      %s455 = scalar_lea.vmem %s0, %s454
      %p456 = scmp.lt.s32.totalorder %s24, 1
      %s457 = scalar_select %p456, %s24, 1
      %s458 = smul.addr %s457, 144
      %s459 = smul.addr %s458, 4
      %s460 = scalar_lea.vmem %s1, %s459
      %p461 = scmp.lt.s32.totalorder %s24, 1
      %s462 = scalar_select %p461, %s24, 1
      %s463 = scalar_lea.vmem %s2, %s462
      %p464 = scmp.lt.s32.totalorder %s24, 1
      %s465 = scalar_select %p464, %s24, 1
      %s466 = smul.addr %s465, 64
      %s467 = smul.addr %s466, 4
      %s468 = scalar_lea.vmem %s3, %s467
      %p469 = scmp.lt.s32.totalorder %s24, 1
      %s470 = scalar_select %p469, %s24, 1
      %s471 = smul.addr %s470, 4
      %s472 = scalar_lea.vmem %s4, %s471
      %p473 = scmp.lt.s32.totalorder %s24, 1
      %s474 = scalar_select %p473, %s24, 1
      %s475 = smul.addr %s474, 256
      %s476 = smul.addr %s475, 4
      %s477 = scalar_lea.vmem %s5, %s476
      %p478 = scmp.lt.s32.totalorder %s24, 1
      %s479 = scalar_select %p478, %s24, 1
      %s480 = smul.addr %s479, 4
      %s481 = scalar_lea.vmem %s6, %s480
      %p482 = scmp.lt.s32.totalorder %s24, 1
      %s483 = scalar_select %p482, %s24, 1
      %s484 = smul.addr %s483, 256
      %s485 = smul.addr %s484, 4
      %s486 = scalar_lea.vmem %s7, %s485
      %p487 = scmp.lt.s32.totalorder %s24, 1
      %s488 = scalar_select %p487, %s24, 1
      %s489 = smul.addr %s488, 4
      %s490 = scalar_lea.vmem %s8, %s489
      %p491 = scmp.lt.s32.totalorder %s24, 1
      %s492 = scalar_select %p491, %s24, 1
      %p493 = scmp.lt.s32.totalorder %s25, 0
      %s494 = scalar_select %p493, %s25, 0
      %s495 = smul.addr %s494, 4
      %s496 = smul.addr %s492, 4
      %s497 = sadd.s32 %s495, %s496
      %s498 = smul.addr %s497, 8
      %s499 = scalar_lea.vmem %s9, %s498
      %v501 = vld [vmem:[%s455] sm:$0xff]
      %v502 = vld [vmem:[%s455 + $0x8] sm:$0xff]
      %v503 = vld [vmem:[%s455 + $0x10] sm:$0xff]
      %v504 = vld [vmem:[%s455 + $0x18] sm:$0xff]
      %v505 = vld [vmem:[%s455 + $0x20] sm:$0xf]
      %v506 = vld [vmem:[%s460] sm:$0xf]
      %v507 = vld [vmem:[%s460 + $0x4] sm:$0xf]
      %v508 = vld [vmem:[%s460 + $0x8] sm:$0xf]
      %v509 = vld [vmem:[%s460 + $0xc] sm:$0xf]
      %v510 = vld [vmem:[%s460 + $0x10] sm:$0xf]
      %v511 = vld [vmem:[%s460 + $0x14] sm:$0xf]
      %v512 = vld [vmem:[%s460 + $0x18] sm:$0xf]
      %v513 = vld [vmem:[%s460 + $0x1c] sm:$0xf]
      %v514 = vld [vmem:[%s460 + $0x20] sm:$0xf]
      %v515 = vld [vmem:[%s460 + $0x24] sm:$0xf]
      %v516 = vld [vmem:[%s460 + $0x28] sm:$0xf]
      %v517 = vld [vmem:[%s460 + $0x2c] sm:$0xf]
      %v518 = vld [vmem:[%s460 + $0x30] sm:$0xf]
      %v519 = vld [vmem:[%s460 + $0x34] sm:$0xf]
      %v520 = vld [vmem:[%s460 + $0x38] sm:$0xf]
      %v521 = vld [vmem:[%s460 + $0x3c] sm:$0xf]
      %v522 = vld [vmem:[%s460 + $0x40] sm:$0xf]
      %v523 = vld [vmem:[%s460 + $0x44] sm:$0xf]
      %v524 = vld [vmem:[%s460 + $0x48] sm:$0xf]
      %v525 = vld [vmem:[%s460 + $0x4c] sm:$0xf]
      %v526 = vld [vmem:[%s460 + $0x50] sm:$0xf]
      %v527 = vld [vmem:[%s460 + $0x54] sm:$0xf]
      %v528 = vld [vmem:[%s460 + $0x58] sm:$0xf]
      %v529 = vld [vmem:[%s460 + $0x5c] sm:$0xf]
      %v530 = vld [vmem:[%s460 + $0x60] sm:$0xf]
      %v531 = vld [vmem:[%s460 + $0x64] sm:$0xf]
      %v532 = vld [vmem:[%s460 + $0x68] sm:$0xf]
      %v533 = vld [vmem:[%s460 + $0x6c] sm:$0xf]
      %v534 = vld [vmem:[%s460 + $0x70] sm:$0xf]
      %v535 = vld [vmem:[%s460 + $0x74] sm:$0xf]
      %v536 = vld [vmem:[%s460 + $0x78] sm:$0xf]
      %v537 = vld [vmem:[%s460 + $0x7c] sm:$0xf]
      %v538 = vld [vmem:[%s460 + $0x80] sm:$0xf]
      %v539 = vld [vmem:[%s460 + $0x84] sm:$0xf]
      %v540 = vld [vmem:[%s460 + $0x88] sm:$0xf]
      %v541 = vld [vmem:[%s460 + $0x8c] sm:$0xf]
      %v542 = vld [vmem:[%s460 + $0x90] sm:$0xf]
      %v543 = vld [vmem:[%s460 + $0x94] sm:$0xf]
      %v544 = vld [vmem:[%s460 + $0x98] sm:$0xf]
      %v545 = vld [vmem:[%s460 + $0x9c] sm:$0xf]
      %v546 = vld [vmem:[%s460 + $0xa0] sm:$0xf]
      %v547 = vld [vmem:[%s460 + $0xa4] sm:$0xf]
      %v548 = vld [vmem:[%s460 + $0xa8] sm:$0xf]
      %v549 = vld [vmem:[%s460 + $0xac] sm:$0xf]
      %v550 = vld [vmem:[%s460 + $0xb0] sm:$0xf]
      %v551 = vld [vmem:[%s460 + $0xb4] sm:$0xf]
      %v552 = vld [vmem:[%s460 + $0xb8] sm:$0xf]
      %v553 = vld [vmem:[%s460 + $0xbc] sm:$0xf]
      %v554 = vld [vmem:[%s460 + $0xc0] sm:$0xf]
      %v555 = vld [vmem:[%s460 + $0xc4] sm:$0xf]
      %v556 = vld [vmem:[%s460 + $0xc8] sm:$0xf]
      %v557 = vld [vmem:[%s460 + $0xcc] sm:$0xf]
      %v558 = vld [vmem:[%s460 + $0xd0] sm:$0xf]
      %v559 = vld [vmem:[%s460 + $0xd4] sm:$0xf]
      %v560 = vld [vmem:[%s460 + $0xd8] sm:$0xf]
      %v561 = vld [vmem:[%s460 + $0xdc] sm:$0xf]
      %v562 = vld [vmem:[%s460 + $0xe0] sm:$0xf]
      %v563 = vld [vmem:[%s460 + $0xe4] sm:$0xf]
      %v564 = vld [vmem:[%s460 + $0xe8] sm:$0xf]
      %v565 = vld [vmem:[%s460 + $0xec] sm:$0xf]
      %v566 = vld [vmem:[%s460 + $0xf0] sm:$0xf]
      %v567 = vld [vmem:[%s460 + $0xf4] sm:$0xf]
      %v568 = vld [vmem:[%s460 + $0xf8] sm:$0xf]
      %v569 = vld [vmem:[%s460 + $0xfc] sm:$0xf]
      %v570 = vld [vmem:[%s460 + $0x100] sm:$0xf]
      %v571 = vld [vmem:[%s460 + $0x104] sm:$0xf]
      %v572 = vld [vmem:[%s460 + $0x108] sm:$0xf]
      %v573 = vld [vmem:[%s460 + $0x10c] sm:$0xf]
      %v574 = vld [vmem:[%s460 + $0x110] sm:$0xf]
      %v575 = vld [vmem:[%s460 + $0x114] sm:$0xf]
      %v576 = vld [vmem:[%s460 + $0x118] sm:$0xf]
      %v577 = vld [vmem:[%s460 + $0x11c] sm:$0xf]
      %v578 = vld [vmem:[%s460 + $0x120] sm:$0xf]
      %v579 = vld [vmem:[%s460 + $0x124] sm:$0xf]
      %v580 = vld [vmem:[%s460 + $0x128] sm:$0xf]
      %v581 = vld [vmem:[%s460 + $0x12c] sm:$0xf]
      %v582 = vld [vmem:[%s460 + $0x130] sm:$0xf]
      %v583 = vld [vmem:[%s460 + $0x134] sm:$0xf]
      %v584 = vld [vmem:[%s460 + $0x138] sm:$0xf]
      %v585 = vld [vmem:[%s460 + $0x13c] sm:$0xf]
      %v586 = vld [vmem:[%s460 + $0x140] sm:$0xf]
      %v587 = vld [vmem:[%s460 + $0x144] sm:$0xf]
      %v588 = vld [vmem:[%s460 + $0x148] sm:$0xf]
      %v589 = vld [vmem:[%s460 + $0x14c] sm:$0xf]
      %v590 = vld [vmem:[%s460 + $0x150] sm:$0xf]
      %v591 = vld [vmem:[%s460 + $0x154] sm:$0xf]
      %v592 = vld [vmem:[%s460 + $0x158] sm:$0xf]
      %v593 = vld [vmem:[%s460 + $0x15c] sm:$0xf]
      %v594 = vld [vmem:[%s460 + $0x160] sm:$0xf]
      %v595 = vld [vmem:[%s460 + $0x164] sm:$0xf]
      %v596 = vld [vmem:[%s460 + $0x168] sm:$0xf]
      %v597 = vld [vmem:[%s460 + $0x16c] sm:$0xf]
      %v598 = vld [vmem:[%s460 + $0x170] sm:$0xf]
      %v599 = vld [vmem:[%s460 + $0x174] sm:$0xf]
      %v600 = vld [vmem:[%s460 + $0x178] sm:$0xf]
      %v601 = vld [vmem:[%s460 + $0x17c] sm:$0xf]
      %v602 = vld [vmem:[%s460 + $0x180] sm:$0xf]
      %v603 = vld [vmem:[%s460 + $0x184] sm:$0xf]
      %v604 = vld [vmem:[%s460 + $0x188] sm:$0xf]
      %v605 = vld [vmem:[%s460 + $0x18c] sm:$0xf]
      %v606 = vld [vmem:[%s460 + $0x190] sm:$0xf]
      %v607 = vld [vmem:[%s460 + $0x194] sm:$0xf]
      %v608 = vld [vmem:[%s460 + $0x198] sm:$0xf]
      %v609 = vld [vmem:[%s460 + $0x19c] sm:$0xf]
      %v610 = vld [vmem:[%s460 + $0x1a0] sm:$0xf]
      %v611 = vld [vmem:[%s460 + $0x1a4] sm:$0xf]
      %v612 = vld [vmem:[%s460 + $0x1a8] sm:$0xf]
      %v613 = vld [vmem:[%s460 + $0x1ac] sm:$0xf]
      %v614 = vld [vmem:[%s460 + $0x1b0] sm:$0xf]
      %v615 = vld [vmem:[%s460 + $0x1b4] sm:$0xf]
      %v616 = vld [vmem:[%s460 + $0x1b8] sm:$0xf]
      %v617 = vld [vmem:[%s460 + $0x1bc] sm:$0xf]
      %v618 = vld [vmem:[%s460 + $0x1c0] sm:$0xf]
      %v619 = vld [vmem:[%s460 + $0x1c4] sm:$0xf]
      %v620 = vld [vmem:[%s460 + $0x1c8] sm:$0xf]
      %v621 = vld [vmem:[%s460 + $0x1cc] sm:$0xf]
      %v622 = vld [vmem:[%s460 + $0x1d0] sm:$0xf]
      %v623 = vld [vmem:[%s460 + $0x1d4] sm:$0xf]
      %v624 = vld [vmem:[%s460 + $0x1d8] sm:$0xf]
      %v625 = vld [vmem:[%s460 + $0x1dc] sm:$0xf]
      %v626 = vld [vmem:[%s460 + $0x1e0] sm:$0xf]
      %v627 = vld [vmem:[%s460 + $0x1e4] sm:$0xf]
      %v628 = vld [vmem:[%s460 + $0x1e8] sm:$0xf]
      %v629 = vld [vmem:[%s460 + $0x1ec] sm:$0xf]
      %v630 = vld [vmem:[%s460 + $0x1f0] sm:$0xf]
      %v631 = vld [vmem:[%s460 + $0x1f4] sm:$0xf]
      %v632 = vld [vmem:[%s460 + $0x1f8] sm:$0xf]
      %v633 = vld [vmem:[%s460 + $0x1fc] sm:$0xf]
      %v634 = vld [vmem:[%s460 + $0x200] sm:$0xf]
      %v635 = vld [vmem:[%s460 + $0x204] sm:$0xf]
      %v636 = vld [vmem:[%s460 + $0x208] sm:$0xf]
      %v637 = vld [vmem:[%s460 + $0x20c] sm:$0xf]
      %v638 = vld [vmem:[%s460 + $0x210] sm:$0xf]
      %v639 = vld [vmem:[%s460 + $0x214] sm:$0xf]
      %v640 = vld [vmem:[%s460 + $0x218] sm:$0xf]
      %v641 = vld [vmem:[%s460 + $0x21c] sm:$0xf]
      %v642 = vld [vmem:[%s460 + $0x220] sm:$0xf]
      %v643 = vld [vmem:[%s460 + $0x224] sm:$0xf]
      %v644 = vld [vmem:[%s460 + $0x228] sm:$0xf]
      %v645 = vld [vmem:[%s460 + $0x22c] sm:$0xf]
      %v646 = vld [vmem:[%s460 + $0x230] sm:$0xf]
      %v647 = vld [vmem:[%s460 + $0x234] sm:$0xf]
      %v648 = vld [vmem:[%s460 + $0x238] sm:$0xf]
      %v649 = vld [vmem:[%s460 + $0x23c] sm:$0xf]
      %v650 = vld [vmem:[%s463] sm:$0x1]
      %v652 = vlaneseq
      %v653 = vshrl.u32 %v652, 7
      %v654 = vsub.s32 0, %v653
      %v655 = vrot.slane %v650, %v654
      %v662 = vunpack.c.l.b16 %v501
      %v663 = vunpack.c.h.b16 %v501
      %v664 = vunpack.c.l.b16 %v502
      %v665 = vunpack.c.h.b16 %v502
      %v666 = vunpack.c.l.b16 %v503
      %v667 = vunpack.c.h.b16 %v503
      %v668 = vunpack.c.l.b16 %v504
      %v669 = vunpack.c.h.b16 %v504
      %v670 = vunpack.c.l.b16 %v505
      %v671 = vpack.c.b16 %v662, %v662
      %v672 = vpack.c.b16 %v663, %v663
      %v673 = vpack.c.b16 %v664, %v664
      %v674 = vpack.c.b16 %v665, %v665
      %v675 = vpack.c.b16 %v666, %v666
      %v676 = vpack.c.b16 %v667, %v667
      %v677 = vpack.c.b16 %v668, %v668
      %v678 = vpack.c.b16 %v669, %v669
      %v679 = vpack.c.b16 %v670, %v670
      %v833 = vunpack.c.l.b16 %v506
      %v834 = vunpack.c.l.b16 %v507
      %v835 = vunpack.c.l.b16 %v508
      %v836 = vunpack.c.l.b16 %v509
      %v837 = vunpack.c.l.b16 %v510
      %v838 = vunpack.c.l.b16 %v511
      %v839 = vunpack.c.l.b16 %v512
      %v840 = vunpack.c.l.b16 %v513
      %v841 = vunpack.c.l.b16 %v514
      %v842 = vunpack.c.l.b16 %v515
      %v843 = vunpack.c.l.b16 %v516
      %v844 = vunpack.c.l.b16 %v517
      %v845 = vunpack.c.l.b16 %v518
      %v846 = vunpack.c.l.b16 %v519
      %v847 = vunpack.c.l.b16 %v520
      %v848 = vunpack.c.l.b16 %v521
      %v849 = vunpack.c.l.b16 %v522
      %v850 = vunpack.c.l.b16 %v523
      %v851 = vunpack.c.l.b16 %v524
      %v852 = vunpack.c.l.b16 %v525
      %v853 = vunpack.c.l.b16 %v526
      %v854 = vunpack.c.l.b16 %v527
      %v855 = vunpack.c.l.b16 %v528
      %v856 = vunpack.c.l.b16 %v529
      %v857 = vunpack.c.l.b16 %v530
      %v858 = vunpack.c.l.b16 %v531
      %v859 = vunpack.c.l.b16 %v532
      %v860 = vunpack.c.l.b16 %v533
      %v861 = vunpack.c.l.b16 %v534
      %v862 = vunpack.c.l.b16 %v535
      %v863 = vunpack.c.l.b16 %v536
      %v864 = vunpack.c.l.b16 %v537
      %v865 = vunpack.c.l.b16 %v538
      %v866 = vunpack.c.l.b16 %v539
      %v867 = vunpack.c.l.b16 %v540
      %v868 = vunpack.c.l.b16 %v541
      %v869 = vunpack.c.l.b16 %v542
      %v870 = vunpack.c.l.b16 %v543
      %v871 = vunpack.c.l.b16 %v544
      %v872 = vunpack.c.l.b16 %v545
      %v873 = vunpack.c.l.b16 %v546
      %v874 = vunpack.c.l.b16 %v547
      %v875 = vunpack.c.l.b16 %v548
      %v876 = vunpack.c.l.b16 %v549
      %v877 = vunpack.c.l.b16 %v550
      %v878 = vunpack.c.l.b16 %v551
      %v879 = vunpack.c.l.b16 %v552
      %v880 = vunpack.c.l.b16 %v553
      %v881 = vunpack.c.l.b16 %v554
      %v882 = vunpack.c.l.b16 %v555
      %v883 = vunpack.c.l.b16 %v556
      %v884 = vunpack.c.l.b16 %v557
      %v885 = vunpack.c.l.b16 %v558
      %v886 = vunpack.c.l.b16 %v559
      %v887 = vunpack.c.l.b16 %v560
      %v888 = vunpack.c.l.b16 %v561
      %v889 = vunpack.c.l.b16 %v562
      %v890 = vunpack.c.l.b16 %v563
      %v891 = vunpack.c.l.b16 %v564
      %v892 = vunpack.c.l.b16 %v565
      %v893 = vunpack.c.l.b16 %v566
      %v894 = vunpack.c.l.b16 %v567
      %v895 = vunpack.c.l.b16 %v568
      %v896 = vunpack.c.l.b16 %v569
      %v897 = vunpack.c.l.b16 %v570
      %v898 = vunpack.c.l.b16 %v571
      %v899 = vunpack.c.l.b16 %v572
      %v900 = vunpack.c.l.b16 %v573
      %v901 = vunpack.c.l.b16 %v574
      %v902 = vunpack.c.l.b16 %v575
      %v903 = vunpack.c.l.b16 %v576
      %v904 = vunpack.c.l.b16 %v577
      %v905 = vunpack.c.l.b16 %v578
      %v906 = vunpack.c.l.b16 %v579
      %v907 = vunpack.c.l.b16 %v580
      %v908 = vunpack.c.l.b16 %v581
      %v909 = vunpack.c.l.b16 %v582
      %v910 = vunpack.c.l.b16 %v583
      %v911 = vunpack.c.l.b16 %v584
      %v912 = vunpack.c.l.b16 %v585
      %v913 = vunpack.c.l.b16 %v586
      %v914 = vunpack.c.l.b16 %v587
      %v915 = vunpack.c.l.b16 %v588
      %v916 = vunpack.c.l.b16 %v589
      %v917 = vunpack.c.l.b16 %v590
      %v918 = vunpack.c.l.b16 %v591
      %v919 = vunpack.c.l.b16 %v592
      %v920 = vunpack.c.l.b16 %v593
      %v921 = vunpack.c.l.b16 %v594
      %v922 = vunpack.c.l.b16 %v595
      %v923 = vunpack.c.l.b16 %v596
      %v924 = vunpack.c.l.b16 %v597
      %v925 = vunpack.c.l.b16 %v598
      %v926 = vunpack.c.l.b16 %v599
      %v927 = vunpack.c.l.b16 %v600
      %v928 = vunpack.c.l.b16 %v601
      %v929 = vunpack.c.l.b16 %v602
      %v930 = vunpack.c.l.b16 %v603
      %v931 = vunpack.c.l.b16 %v604
      %v932 = vunpack.c.l.b16 %v605
      %v933 = vunpack.c.l.b16 %v606
      %v934 = vunpack.c.l.b16 %v607
      %v935 = vunpack.c.l.b16 %v608
      %v936 = vunpack.c.l.b16 %v609
      %v937 = vunpack.c.l.b16 %v610
      %v938 = vunpack.c.l.b16 %v611
      %v939 = vunpack.c.l.b16 %v612
      %v940 = vunpack.c.l.b16 %v613
      %v941 = vunpack.c.l.b16 %v614
      %v942 = vunpack.c.l.b16 %v615
      %v943 = vunpack.c.l.b16 %v616
      %v944 = vunpack.c.l.b16 %v617
      %v945 = vunpack.c.l.b16 %v618
      %v946 = vunpack.c.l.b16 %v619
      %v947 = vunpack.c.l.b16 %v620
      %v948 = vunpack.c.l.b16 %v621
      %v949 = vunpack.c.l.b16 %v622
      %v950 = vunpack.c.l.b16 %v623
      %v951 = vunpack.c.l.b16 %v624
      %v952 = vunpack.c.l.b16 %v625
      %v953 = vunpack.c.l.b16 %v626
      %v954 = vunpack.c.l.b16 %v627
      %v955 = vunpack.c.l.b16 %v628
      %v956 = vunpack.c.l.b16 %v629
      %v957 = vunpack.c.l.b16 %v630
      %v958 = vunpack.c.l.b16 %v631
      %v959 = vunpack.c.l.b16 %v632
      %v960 = vunpack.c.l.b16 %v633
      %v961 = vunpack.c.l.b16 %v634
      %v962 = vunpack.c.l.b16 %v635
      %v963 = vunpack.c.l.b16 %v636
      %v964 = vunpack.c.l.b16 %v637
      %v965 = vunpack.c.l.b16 %v638
      %v966 = vunpack.c.l.b16 %v639
      %v967 = vunpack.c.l.b16 %v640
      %v968 = vunpack.c.l.b16 %v641
      %v969 = vunpack.c.l.b16 %v642
      %v970 = vunpack.c.l.b16 %v643
      %v971 = vunpack.c.l.b16 %v644
      %v972 = vunpack.c.l.b16 %v645
      %v973 = vunpack.c.l.b16 %v646
      %v974 = vunpack.c.l.b16 %v647
      %v975 = vunpack.c.l.b16 %v648
      %v976 = vunpack.c.l.b16 %v649
      %v977 = vpack.c.b16 %v834, %v833
      %v978 = vpack.c.b16 %v836, %v835
      %v979 = vpack.c.b16 %v838, %v837
      %v980 = vpack.c.b16 %v840, %v839
      %v981 = vpack.c.b16 %v842, %v841
      %v982 = vpack.c.b16 %v844, %v843
      %v983 = vpack.c.b16 %v846, %v845
      %v984 = vpack.c.b16 %v848, %v847
      %v985 = vpack.c.b16 %v850, %v849
      %v986 = vpack.c.b16 %v852, %v851
      %v987 = vpack.c.b16 %v854, %v853
      %v988 = vpack.c.b16 %v856, %v855
      %v989 = vpack.c.b16 %v858, %v857
      %v990 = vpack.c.b16 %v860, %v859
      %v991 = vpack.c.b16 %v862, %v861
      %v992 = vpack.c.b16 %v864, %v863
      %v993 = vpack.c.b16 %v866, %v865
      %v994 = vpack.c.b16 %v868, %v867
      %v995 = vpack.c.b16 %v870, %v869
      %v996 = vpack.c.b16 %v872, %v871
      %v997 = vpack.c.b16 %v874, %v873
      %v998 = vpack.c.b16 %v876, %v875
      %v999 = vpack.c.b16 %v878, %v877
      %v1000 = vpack.c.b16 %v880, %v879
      %v1001 = vpack.c.b16 %v882, %v881
      %v1002 = vpack.c.b16 %v884, %v883
      %v1003 = vpack.c.b16 %v886, %v885
      %v1004 = vpack.c.b16 %v888, %v887
      %v1005 = vpack.c.b16 %v890, %v889
      %v1006 = vpack.c.b16 %v892, %v891
      %v1007 = vpack.c.b16 %v894, %v893
      %v1008 = vpack.c.b16 %v896, %v895
      %v1009 = vpack.c.b16 %v898, %v897
      %v1010 = vpack.c.b16 %v900, %v899
      %v1011 = vpack.c.b16 %v902, %v901
      %v1012 = vpack.c.b16 %v904, %v903
      %v1013 = vpack.c.b16 %v906, %v905
      %v1014 = vpack.c.b16 %v908, %v907
      %v1015 = vpack.c.b16 %v910, %v909
      %v1016 = vpack.c.b16 %v912, %v911
      %v1017 = vpack.c.b16 %v914, %v913
      %v1018 = vpack.c.b16 %v916, %v915
      %v1019 = vpack.c.b16 %v918, %v917
      %v1020 = vpack.c.b16 %v920, %v919
      %v1021 = vpack.c.b16 %v922, %v921
      %v1022 = vpack.c.b16 %v924, %v923
      %v1023 = vpack.c.b16 %v926, %v925
      %v1024 = vpack.c.b16 %v928, %v927
      %v1025 = vpack.c.b16 %v930, %v929
      %v1026 = vpack.c.b16 %v932, %v931
      %v1027 = vpack.c.b16 %v934, %v933
      %v1028 = vpack.c.b16 %v936, %v935
      %v1029 = vpack.c.b16 %v938, %v937
      %v1030 = vpack.c.b16 %v940, %v939
      %v1031 = vpack.c.b16 %v942, %v941
      %v1032 = vpack.c.b16 %v944, %v943
      %v1033 = vpack.c.b16 %v946, %v945
      %v1034 = vpack.c.b16 %v948, %v947
      %v1035 = vpack.c.b16 %v950, %v949
      %v1036 = vpack.c.b16 %v952, %v951
      %v1037 = vpack.c.b16 %v954, %v953
      %v1038 = vpack.c.b16 %v956, %v955
      %v1039 = vpack.c.b16 %v958, %v957
      %v1040 = vpack.c.b16 %v960, %v959
      %v1041 = vpack.c.b16 %v962, %v961
      %v1042 = vpack.c.b16 %v964, %v963
      %v1043 = vpack.c.b16 %v966, %v965
      %v1044 = vpack.c.b16 %v968, %v967
      %v1045 = vpack.c.b16 %v970, %v969
      %v1046 = vpack.c.b16 %v972, %v971
      %v1047 = vpack.c.b16 %v974, %v973
      %v1048 = vpack.c.b16 %v976, %v975
      %1121 = vmatprep.subr.bf16.mxu0 0
      %1122 = vmatpush1.bf16.msra.mxu0 %v977
      %1123 = vmatprep.subr.bf16.mxu0 0
      %1124 = vmatpush1.bf16.msra.mxu0 %v978
      %1125 = vmatprep.subr.bf16.mxu0 0
      %1126 = vmatpush1.bf16.msra.mxu0 %v979
      %1127 = vmatprep.subr.bf16.mxu0 0
      %1128 = vmatpush1.bf16.msra.mxu0 %v980
      %1129 = vmatprep.subr.bf16.mxu0 0
      %1130 = vmatpush1.bf16.msra.mxu0 %v981
      %1131 = vmatprep.subr.bf16.mxu0 0
      %1132 = vmatpush1.bf16.msra.mxu0 %v982
      %1133 = vmatprep.subr.bf16.mxu0 0
      %1134 = vmatpush1.bf16.msra.mxu0 %v983
      %1135 = vmatprep.subr.bf16.mxu0 0
      %1136 = vmatpush1.bf16.msra.mxu0 %v984
      %1137 = vmatprep.subr.bf16.mxu0 0
      %1138 = vmatpush1.bf16.msra.mxu0 %v985
      %1139 = vmatprep.subr.bf16.mxu0 0
      %1140 = vmatpush1.bf16.msra.mxu0 %v986
      %1141 = vmatprep.subr.bf16.mxu0 0
      %1142 = vmatpush1.bf16.msra.mxu0 %v987
      %1143 = vmatprep.subr.bf16.mxu0 0
      %1144 = vmatpush1.bf16.msra.mxu0 %v988
      %1145 = vmatprep.subr.bf16.mxu0 0
      %1146 = vmatpush1.bf16.msra.mxu0 %v989
      %1147 = vmatprep.subr.bf16.mxu0 0
      %1148 = vmatpush1.bf16.msra.mxu0 %v990
      %1149 = vmatprep.subr.bf16.mxu0 0
      %1150 = vmatpush1.bf16.msra.mxu0 %v991
      %1151 = vmatprep.subr.bf16.mxu0 0
      %1152 = vmatpush1.bf16.msra.mxu0 %v992
      %1153 = vmatprep.mubr.bf16.mxu0 %v672
      %1154 = vmatmul.mubr.bf16.gmra.mrb[0].mxu0 %v671
      %v1155 = vpop.f32.mrb[0].mxu0
      %v1156 = vadd.f32 %v655, %v1155
      %v1157 = vpop.f32.mrb[0].mxu0
      %v1158 = vpop.f32.mrb[0].mxu0
      %v1159 = vpop.f32.mrb[0].mxu0
      %1160 = vdwg.mxu0
      %1161 = vmatprep.subr.bf16.mxu0 0
      %1162 = vmatpush1.bf16.msra.mxu0 %v993
      %1163 = vmatprep.subr.bf16.mxu0 0
      %1164 = vmatpush1.bf16.msra.mxu0 %v994
      %1165 = vmatprep.subr.bf16.mxu0 0
      %1166 = vmatpush1.bf16.msra.mxu0 %v995
      %1167 = vmatprep.subr.bf16.mxu0 0
      %1168 = vmatpush1.bf16.msra.mxu0 %v996
      %1169 = vmatprep.subr.bf16.mxu0 0
      %1170 = vmatpush1.bf16.msra.mxu0 %v997
      %1171 = vmatprep.subr.bf16.mxu0 0
      %1172 = vmatpush1.bf16.msra.mxu0 %v998
      %1173 = vmatprep.subr.bf16.mxu0 0
      %1174 = vmatpush1.bf16.msra.mxu0 %v999
      %1175 = vmatprep.subr.bf16.mxu0 0
      %1176 = vmatpush1.bf16.msra.mxu0 %v1000
      %1177 = vmatprep.subr.bf16.mxu0 0
      %1178 = vmatpush1.bf16.msra.mxu0 %v1001
      %1179 = vmatprep.subr.bf16.mxu0 0
      %1180 = vmatpush1.bf16.msra.mxu0 %v1002
      %1181 = vmatprep.subr.bf16.mxu0 0
      %1182 = vmatpush1.bf16.msra.mxu0 %v1003
      %1183 = vmatprep.subr.bf16.mxu0 0
      %1184 = vmatpush1.bf16.msra.mxu0 %v1004
      %1185 = vmatprep.subr.bf16.mxu0 0
      %1186 = vmatpush1.bf16.msra.mxu0 %v1005
      %1187 = vmatprep.subr.bf16.mxu0 0
      %1188 = vmatpush1.bf16.msra.mxu0 %v1006
      %1189 = vmatprep.subr.bf16.mxu0 0
      %1190 = vmatpush1.bf16.msra.mxu0 %v1007
      %1191 = vmatprep.subr.bf16.mxu0 0
      %1192 = vmatpush1.bf16.msra.mxu0 %v1008
      %1193 = vmatprep.mubr.bf16.mxu0 %v674
      %1194 = vmatmul.mubr.bf16.gmra.mrb[0].mxu0 %v673
      %v1195 = vpop.f32.mrb[0].mxu0
      %v1196 = vadd.f32 %v1156, %v1195
      %v1197 = vpop.f32.mrb[0].mxu0
      %v1198 = vpop.f32.mrb[0].mxu0
      %v1199 = vpop.f32.mrb[0].mxu0
      %1200 = vdwg.mxu0
      %1201 = vmatprep.subr.bf16.mxu0 0
      %1202 = vmatpush1.bf16.msra.mxu0 %v1009
      %1203 = vmatprep.subr.bf16.mxu0 0
      %1204 = vmatpush1.bf16.msra.mxu0 %v1010
      %1205 = vmatprep.subr.bf16.mxu0 0
      %1206 = vmatpush1.bf16.msra.mxu0 %v1011
      %1207 = vmatprep.subr.bf16.mxu0 0
      %1208 = vmatpush1.bf16.msra.mxu0 %v1012
      %1209 = vmatprep.subr.bf16.mxu0 0
      %1210 = vmatpush1.bf16.msra.mxu0 %v1013
      %1211 = vmatprep.subr.bf16.mxu0 0
      %1212 = vmatpush1.bf16.msra.mxu0 %v1014
      %1213 = vmatprep.subr.bf16.mxu0 0
      %1214 = vmatpush1.bf16.msra.mxu0 %v1015
      %1215 = vmatprep.subr.bf16.mxu0 0
      %1216 = vmatpush1.bf16.msra.mxu0 %v1016
      %1217 = vmatprep.subr.bf16.mxu0 0
      %1218 = vmatpush1.bf16.msra.mxu0 %v1017
      %1219 = vmatprep.subr.bf16.mxu0 0
      %1220 = vmatpush1.bf16.msra.mxu0 %v1018
      %1221 = vmatprep.subr.bf16.mxu0 0
      %1222 = vmatpush1.bf16.msra.mxu0 %v1019
      %1223 = vmatprep.subr.bf16.mxu0 0
      %1224 = vmatpush1.bf16.msra.mxu0 %v1020
      %1225 = vmatprep.subr.bf16.mxu0 0
      %1226 = vmatpush1.bf16.msra.mxu0 %v1021
      %1227 = vmatprep.subr.bf16.mxu0 0
      %1228 = vmatpush1.bf16.msra.mxu0 %v1022
      %1229 = vmatprep.subr.bf16.mxu0 0
      %1230 = vmatpush1.bf16.msra.mxu0 %v1023
      %1231 = vmatprep.subr.bf16.mxu0 0
      %1232 = vmatpush1.bf16.msra.mxu0 %v1024
      %1233 = vmatprep.mubr.bf16.mxu0 %v676
      %1234 = vmatmul.mubr.bf16.gmra.mrb[0].mxu0 %v675
      %v1235 = vpop.f32.mrb[0].mxu0
      %v1236 = vadd.f32 %v1196, %v1235
      %v1237 = vpop.f32.mrb[0].mxu0
      %v1238 = vpop.f32.mrb[0].mxu0
      %v1239 = vpop.f32.mrb[0].mxu0
      %1240 = vdwg.mxu0
      %1241 = vmatprep.subr.bf16.mxu0 0
      %1242 = vmatpush1.bf16.msra.mxu0 %v1025
      %1243 = vmatprep.subr.bf16.mxu0 0
      %1244 = vmatpush1.bf16.msra.mxu0 %v1026
      %1245 = vmatprep.subr.bf16.mxu0 0
      %1246 = vmatpush1.bf16.msra.mxu0 %v1027
      %1247 = vmatprep.subr.bf16.mxu0 0
      %1248 = vmatpush1.bf16.msra.mxu0 %v1028
      %1249 = vmatprep.subr.bf16.mxu0 0
      %1250 = vmatpush1.bf16.msra.mxu0 %v1029
      %1251 = vmatprep.subr.bf16.mxu0 0
      %1252 = vmatpush1.bf16.msra.mxu0 %v1030
      %1253 = vmatprep.subr.bf16.mxu0 0
      %1254 = vmatpush1.bf16.msra.mxu0 %v1031
      %1255 = vmatprep.subr.bf16.mxu0 0
      %1256 = vmatpush1.bf16.msra.mxu0 %v1032
      %1257 = vmatprep.subr.bf16.mxu0 0
      %1258 = vmatpush1.bf16.msra.mxu0 %v1033
      %1259 = vmatprep.subr.bf16.mxu0 0
      %1260 = vmatpush1.bf16.msra.mxu0 %v1034
      %1261 = vmatprep.subr.bf16.mxu0 0
      %1262 = vmatpush1.bf16.msra.mxu0 %v1035
      %1263 = vmatprep.subr.bf16.mxu0 0
      %1264 = vmatpush1.bf16.msra.mxu0 %v1036
      %1265 = vmatprep.subr.bf16.mxu0 0
      %1266 = vmatpush1.bf16.msra.mxu0 %v1037
      %1267 = vmatprep.subr.bf16.mxu0 0
      %1268 = vmatpush1.bf16.msra.mxu0 %v1038
      %1269 = vmatprep.subr.bf16.mxu0 0
      %1270 = vmatpush1.bf16.msra.mxu0 %v1039
      %1271 = vmatprep.subr.bf16.mxu0 0
      %1272 = vmatpush1.bf16.msra.mxu0 %v1040
      %1273 = vmatprep.mubr.bf16.mxu0 %v678
      %1274 = vmatmul.mubr.bf16.gmra.mrb[0].mxu0 %v677
      %v1275 = vpop.f32.mrb[0].mxu0
      %v1276 = vadd.f32 %v1236, %v1275
      %v1277 = vpop.f32.mrb[0].mxu0
      %v1278 = vpop.f32.mrb[0].mxu0
      %v1279 = vpop.f32.mrb[0].mxu0
      %1280 = vdwg.mxu0
      %1281 = vmatprep.subr.bf16.mxu0 0
      %1282 = vmatpush1.bf16.msra.mxu0 %v1041
      %1283 = vmatprep.subr.bf16.mxu0 0
      %1284 = vmatpush1.bf16.msra.mxu0 %v1042
      %1285 = vmatprep.subr.bf16.mxu0 0
      %1286 = vmatpush1.bf16.msra.mxu0 %v1043
      %1287 = vmatprep.subr.bf16.mxu0 0
      %1288 = vmatpush1.bf16.msra.mxu0 %v1044
      %1289 = vmatprep.subr.bf16.mxu0 0
      %1290 = vmatpush1.bf16.msra.mxu0 %v1045
      %1291 = vmatprep.subr.bf16.mxu0 0
      %1292 = vmatpush1.bf16.msra.mxu0 %v1046
      %1293 = vmatprep.subr.bf16.mxu0 0
      %1294 = vmatpush1.bf16.msra.mxu0 %v1047
      %1295 = vmatprep.subr.bf16.mxu0 0
      %1296 = vmatpush1.bf16.msra.mxu0 %v1048
      %1297 = vmatprep.subr.bf16.mxu0 0
      %1298 = vmatpush1.bf16.msra.mxu0 0
      %1299 = vmatprep.subr.bf16.mxu0 0
      %1300 = vmatpush1.bf16.msra.mxu0 0
      %1301 = vmatprep.subr.bf16.mxu0 0
      %1302 = vmatpush1.bf16.msra.mxu0 0
      %1303 = vmatprep.subr.bf16.mxu0 0
      %1304 = vmatpush1.bf16.msra.mxu0 0
      %1305 = vmatprep.subr.bf16.mxu0 0
      %1306 = vmatpush1.bf16.msra.mxu0 0
      %1307 = vmatprep.subr.bf16.mxu0 0
      %1308 = vmatpush1.bf16.msra.mxu0 0
      %1309 = vmatprep.subr.bf16.mxu0 0
      %1310 = vmatpush1.bf16.msra.mxu0 0
      %1311 = vmatprep.subr.bf16.mxu0 0
      %1312 = vmatpush1.bf16.msra.mxu0 0
      %1313 = vmatprep.mubr.bf16.mxu0 0
      %1314 = vmatmul.mubr.bf16.gmra.mrb[0].mxu0 %v679
      %v1315 = vpop.f32.mrb[0].mxu0
      %v1316 = vadd.f32 %v1276, %v1315
      %v1317 = vpop.f32.mrb[0].mxu0
      %v1318 = vpop.f32.mrb[0].mxu0
      %v1319 = vpop.f32.mrb[0].mxu0
      %1320 = vdwg.mxu0
      %vm1321 = vcmp.ge.f32.partialorder %v1316, 0.0
      %v1322 = vmul.f32 %v1316, 0.01
      %v1323 = vsel %vm1321, %v1316, %v1322
      %v1324 = vpack.c.bf16 %v1323, %v1323
      %v1325 = vld [vmem:[%s468] sm:$0xff]
      %v1326 = vld [vmem:[%s468 + $0x8] sm:$0xff]
      %v1327 = vld [vmem:[%s468 + $0x10] sm:$0xff]
      %v1328 = vld [vmem:[%s468 + $0x18] sm:$0xff]
      %v1329 = vld [vmem:[%s468 + $0x20] sm:$0xff]
      %v1330 = vld [vmem:[%s468 + $0x28] sm:$0xff]
      %v1331 = vld [vmem:[%s468 + $0x30] sm:$0xff]
      %v1332 = vld [vmem:[%s468 + $0x38] sm:$0xff]
      %v1333 = vld [vmem:[%s468 + $0x40] sm:$0xff]
      %v1334 = vld [vmem:[%s468 + $0x48] sm:$0xff]
      %v1335 = vld [vmem:[%s468 + $0x50] sm:$0xff]
      %v1336 = vld [vmem:[%s468 + $0x58] sm:$0xff]
      %v1337 = vld [vmem:[%s468 + $0x60] sm:$0xff]
      %v1338 = vld [vmem:[%s468 + $0x68] sm:$0xff]
      %v1339 = vld [vmem:[%s468 + $0x70] sm:$0xff]
      %v1340 = vld [vmem:[%s468 + $0x78] sm:$0xff]
      %v1341 = vld [vmem:[%s468 + $0x80] sm:$0xff]
      %v1342 = vld [vmem:[%s468 + $0x88] sm:$0xff]
      %v1343 = vld [vmem:[%s468 + $0x90] sm:$0xff]
      %v1344 = vld [vmem:[%s468 + $0x98] sm:$0xff]
      %v1345 = vld [vmem:[%s468 + $0xa0] sm:$0xff]
      %v1346 = vld [vmem:[%s468 + $0xa8] sm:$0xff]
      %v1347 = vld [vmem:[%s468 + $0xb0] sm:$0xff]
      %v1348 = vld [vmem:[%s468 + $0xb8] sm:$0xff]
      %v1349 = vld [vmem:[%s468 + $0xc0] sm:$0xff]
      %v1350 = vld [vmem:[%s468 + $0xc8] sm:$0xff]
      %v1351 = vld [vmem:[%s468 + $0xd0] sm:$0xff]
      %v1352 = vld [vmem:[%s468 + $0xd8] sm:$0xff]
      %v1353 = vld [vmem:[%s468 + $0xe0] sm:$0xff]
      %v1354 = vld [vmem:[%s468 + $0xe8] sm:$0xff]
      %v1355 = vld [vmem:[%s468 + $0xf0] sm:$0xff]
      %v1356 = vld [vmem:[%s468 + $0xf8] sm:$0xff]
      %v1357 = vld [vmem:[%s472] sm:$0xf]
      %v1359 = vlaneseq
      %v1360 = vshrl.u32 %v1359, 7
      %v1361 = vsub.s32 0, %v1360
      %v1362 = vrot.slane %v1357, %v1361
      %v1363 = vlaneseq
      %v1364 = vshrl.u32 %v1363, 7
      %v1365 = vsub.s32 1, %v1364
      %v1366 = vrot.slane %v1357, %v1365
      %v1367 = vlaneseq
      %v1368 = vshrl.u32 %v1367, 7
      %v1369 = vsub.s32 2, %v1368
      %v1370 = vrot.slane %v1357, %v1369
      %v1371 = vlaneseq
      %v1372 = vshrl.u32 %v1371, 7
      %v1373 = vsub.s32 3, %v1372
      %v1374 = vrot.slane %v1357, %v1373
      %v1411 = vunpack.c.l.b16 %v1325
      %v1412 = vunpack.c.h.b16 %v1325
      %v1413 = vunpack.c.l.b16 %v1326
      %v1414 = vunpack.c.h.b16 %v1326
      %v1415 = vunpack.c.l.b16 %v1327
      %v1416 = vunpack.c.h.b16 %v1327
      %v1417 = vunpack.c.l.b16 %v1328
      %v1418 = vunpack.c.h.b16 %v1328
      %v1419 = vunpack.c.l.b16 %v1329
      %v1420 = vunpack.c.h.b16 %v1329
      %v1421 = vunpack.c.l.b16 %v1330
      %v1422 = vunpack.c.h.b16 %v1330
      %v1423 = vunpack.c.l.b16 %v1331
      %v1424 = vunpack.c.h.b16 %v1331
      %v1425 = vunpack.c.l.b16 %v1332
      %v1426 = vunpack.c.h.b16 %v1332
      %v1427 = vunpack.c.l.b16 %v1333
      %v1428 = vunpack.c.h.b16 %v1333
      %v1429 = vunpack.c.l.b16 %v1334
      %v1430 = vunpack.c.h.b16 %v1334
      %v1431 = vunpack.c.l.b16 %v1335
      %v1432 = vunpack.c.h.b16 %v1335
      %v1433 = vunpack.c.l.b16 %v1336
      %v1434 = vunpack.c.h.b16 %v1336
      %v1435 = vunpack.c.l.b16 %v1337
      %v1436 = vunpack.c.h.b16 %v1337
      %v1437 = vunpack.c.l.b16 %v1338
      %v1438 = vunpack.c.h.b16 %v1338
      %v1439 = vunpack.c.l.b16 %v1339
      %v1440 = vunpack.c.h.b16 %v1339
      %v1441 = vunpack.c.l.b16 %v1340
      %v1442 = vunpack.c.h.b16 %v1340
      %v1443 = vunpack.c.l.b16 %v1341
      %v1444 = vunpack.c.h.b16 %v1341
      %v1445 = vunpack.c.l.b16 %v1342
      %v1446 = vunpack.c.h.b16 %v1342
      %v1447 = vunpack.c.l.b16 %v1343
      %v1448 = vunpack.c.h.b16 %v1343
      %v1449 = vunpack.c.l.b16 %v1344
      %v1450 = vunpack.c.h.b16 %v1344
      %v1451 = vunpack.c.l.b16 %v1345
      %v1452 = vunpack.c.h.b16 %v1345
      %v1453 = vunpack.c.l.b16 %v1346
      %v1454 = vunpack.c.h.b16 %v1346
      %v1455 = vunpack.c.l.b16 %v1347
      %v1456 = vunpack.c.h.b16 %v1347
      %v1457 = vunpack.c.l.b16 %v1348
      %v1458 = vunpack.c.h.b16 %v1348
      %v1459 = vunpack.c.l.b16 %v1349
      %v1460 = vunpack.c.h.b16 %v1349
      %v1461 = vunpack.c.l.b16 %v1350
      %v1462 = vunpack.c.h.b16 %v1350
      %v1463 = vunpack.c.l.b16 %v1351
      %v1464 = vunpack.c.h.b16 %v1351
      %v1465 = vunpack.c.l.b16 %v1352
      %v1466 = vunpack.c.h.b16 %v1352
      %v1467 = vunpack.c.l.b16 %v1353
      %v1468 = vunpack.c.h.b16 %v1353
      %v1469 = vunpack.c.l.b16 %v1354
      %v1470 = vunpack.c.h.b16 %v1354
      %v1471 = vunpack.c.l.b16 %v1355
      %v1472 = vunpack.c.h.b16 %v1355
      %v1473 = vunpack.c.l.b16 %v1356
      %v1474 = vunpack.c.h.b16 %v1356
      %v1475 = vpack.c.b16 %v1415, %v1411
      %v1476 = vpack.c.b16 %v1416, %v1412
      %v1477 = vpack.c.b16 %v1417, %v1413
      %v1478 = vpack.c.b16 %v1418, %v1414
      %v1479 = vpack.c.b16 %v1423, %v1419
      %v1480 = vpack.c.b16 %v1424, %v1420
      %v1481 = vpack.c.b16 %v1425, %v1421
      %v1482 = vpack.c.b16 %v1426, %v1422
      %v1483 = vpack.c.b16 %v1431, %v1427
      %v1484 = vpack.c.b16 %v1432, %v1428
      %v1485 = vpack.c.b16 %v1433, %v1429
      %v1486 = vpack.c.b16 %v1434, %v1430
      %v1487 = vpack.c.b16 %v1439, %v1435
      %v1488 = vpack.c.b16 %v1440, %v1436
      %v1489 = vpack.c.b16 %v1441, %v1437
      %v1490 = vpack.c.b16 %v1442, %v1438
      %v1491 = vpack.c.b16 %v1447, %v1443
      %v1492 = vpack.c.b16 %v1448, %v1444
      %v1493 = vpack.c.b16 %v1449, %v1445
      %v1494 = vpack.c.b16 %v1450, %v1446
      %v1495 = vpack.c.b16 %v1455, %v1451
      %v1496 = vpack.c.b16 %v1456, %v1452
      %v1497 = vpack.c.b16 %v1457, %v1453
      %v1498 = vpack.c.b16 %v1458, %v1454
      %v1499 = vpack.c.b16 %v1463, %v1459
      %v1500 = vpack.c.b16 %v1464, %v1460
      %v1501 = vpack.c.b16 %v1465, %v1461
      %v1502 = vpack.c.b16 %v1466, %v1462
      %v1503 = vpack.c.b16 %v1471, %v1467
      %v1504 = vpack.c.b16 %v1472, %v1468
      %v1505 = vpack.c.b16 %v1473, %v1469
      %v1506 = vpack.c.b16 %v1474, %v1470
      %1539 = vmatprep.subr.bf16.mxu0 %v1476
      %1540 = vmatpush1.bf16.msra.mxu0 %v1475
      %1541 = vmatprep.subr.bf16.mxu0 %v1480
      %1542 = vmatpush1.bf16.msra.mxu0 %v1479
      %1543 = vmatprep.subr.bf16.mxu0 %v1484
      %1544 = vmatpush1.bf16.msra.mxu0 %v1483
      %1545 = vmatprep.subr.bf16.mxu0 %v1488
      %1546 = vmatpush1.bf16.msra.mxu0 %v1487
      %1547 = vmatprep.subr.bf16.mxu0 %v1492
      %1548 = vmatpush1.bf16.msra.mxu0 %v1491
      %1549 = vmatprep.subr.bf16.mxu0 %v1496
      %1550 = vmatpush1.bf16.msra.mxu0 %v1495
      %1551 = vmatprep.subr.bf16.mxu0 %v1500
      %1552 = vmatpush1.bf16.msra.mxu0 %v1499
      %1553 = vmatprep.subr.bf16.mxu0 %v1504
      %1554 = vmatpush1.bf16.msra.mxu0 %v1503
      %1555 = vmatprep.subr.bf16.mxu0 0
      %1556 = vmatpush1.bf16.msra.mxu0 0
      %1557 = vmatprep.subr.bf16.mxu0 0
      %1558 = vmatpush1.bf16.msra.mxu0 0
      %1559 = vmatprep.subr.bf16.mxu0 0
      %1560 = vmatpush1.bf16.msra.mxu0 0
      %1561 = vmatprep.subr.bf16.mxu0 0
      %1562 = vmatpush1.bf16.msra.mxu0 0
      %1563 = vmatprep.subr.bf16.mxu0 0
      %1564 = vmatpush1.bf16.msra.mxu0 0
      %1565 = vmatprep.subr.bf16.mxu0 0
      %1566 = vmatpush1.bf16.msra.mxu0 0
      %1567 = vmatprep.subr.bf16.mxu0 0
      %1568 = vmatpush1.bf16.msra.mxu0 0
      %1569 = vmatprep.subr.bf16.mxu0 0
      %1570 = vmatpush1.bf16.msra.mxu0 0
      %1571 = vmatprep.mubr.bf16.mxu0 0
      %1572 = vmatmul.mubr.bf16.gmra.mrb[0].mxu0 %v1324
      %v1573 = vpop.f32.mrb[0].mxu0
      %v1574 = vadd.f32 %v1362, %v1573
      %v1575 = vpop.f32.mrb[0].mxu0
      %v1576 = vadd.f32 %v1366, %v1575
      %v1577 = vpop.f32.mrb[0].mxu0
      %v1578 = vpop.f32.mrb[0].mxu0
      %1579 = vdwg.mxu0
      %1580 = vmatprep.subr.bf16.mxu0 %v1478
      %1581 = vmatpush1.bf16.msra.mxu0 %v1477
      %1582 = vmatprep.subr.bf16.mxu0 %v1482
      %1583 = vmatpush1.bf16.msra.mxu0 %v1481
      %1584 = vmatprep.subr.bf16.mxu0 %v1486
      %1585 = vmatpush1.bf16.msra.mxu0 %v1485
      %1586 = vmatprep.subr.bf16.mxu0 %v1490
      %1587 = vmatpush1.bf16.msra.mxu0 %v1489
      %1588 = vmatprep.subr.bf16.mxu0 %v1494
      %1589 = vmatpush1.bf16.msra.mxu0 %v1493
      %1590 = vmatprep.subr.bf16.mxu0 %v1498
      %1591 = vmatpush1.bf16.msra.mxu0 %v1497
      %1592 = vmatprep.subr.bf16.mxu0 %v1502
      %1593 = vmatpush1.bf16.msra.mxu0 %v1501
      %1594 = vmatprep.subr.bf16.mxu0 %v1506
      %1595 = vmatpush1.bf16.msra.mxu0 %v1505
      %1596 = vmatprep.subr.bf16.mxu0 0
      %1597 = vmatpush1.bf16.msra.mxu0 0
      %1598 = vmatprep.subr.bf16.mxu0 0
      %1599 = vmatpush1.bf16.msra.mxu0 0
      %1600 = vmatprep.subr.bf16.mxu0 0
      %1601 = vmatpush1.bf16.msra.mxu0 0
      %1602 = vmatprep.subr.bf16.mxu0 0
      %1603 = vmatpush1.bf16.msra.mxu0 0
      %1604 = vmatprep.subr.bf16.mxu0 0
      %1605 = vmatpush1.bf16.msra.mxu0 0
      %1606 = vmatprep.subr.bf16.mxu0 0
      %1607 = vmatpush1.bf16.msra.mxu0 0
      %1608 = vmatprep.subr.bf16.mxu0 0
      %1609 = vmatpush1.bf16.msra.mxu0 0
      %1610 = vmatprep.subr.bf16.mxu0 0
      %1611 = vmatpush1.bf16.msra.mxu0 0
      %1612 = vmatprep.mubr.bf16.mxu0 0
      %1613 = vmatmul.mubr.bf16.gmra.mrb[0].mxu0 %v1324
      %v1614 = vpop.f32.mrb[0].mxu0
      %v1615 = vadd.f32 %v1370, %v1614
      %v1616 = vpop.f32.mrb[0].mxu0
      %v1617 = vadd.f32 %v1374, %v1616
      %v1618 = vpop.f32.mrb[0].mxu0
      %v1619 = vpop.f32.mrb[0].mxu0
      %1620 = vdwg.mxu0
      %v1621 = vmax.f32 %v1574, 0.0
      %v1622 = vmax.f32 %v1576, 0.0
      %v1623 = vmax.f32 %v1615, 0.0
      %v1624 = vmax.f32 %v1617, 0.0
      %v1625 = vpack.c.bf16 %v1621, %v1621
      %v1626 = vpack.c.bf16 %v1622, %v1622
      %v1627 = vpack.c.bf16 %v1623, %v1623
      %v1628 = vpack.c.bf16 %v1624, %v1624
      %v1629 = vld [vmem:[%s477] sm:$0xff]
      %v1630 = vld [vmem:[%s477 + $0x8] sm:$0xff]
      %v1631 = vld [vmem:[%s477 + $0x10] sm:$0xff]
      %v1632 = vld [vmem:[%s477 + $0x18] sm:$0xff]
      %v1633 = vld [vmem:[%s477 + $0x20] sm:$0xff]
      %v1634 = vld [vmem:[%s477 + $0x28] sm:$0xff]
      %v1635 = vld [vmem:[%s477 + $0x30] sm:$0xff]
      %v1636 = vld [vmem:[%s477 + $0x38] sm:$0xff]
      %v1637 = vld [vmem:[%s477 + $0x40] sm:$0xff]
      %v1638 = vld [vmem:[%s477 + $0x48] sm:$0xff]
      %v1639 = vld [vmem:[%s477 + $0x50] sm:$0xff]
      %v1640 = vld [vmem:[%s477 + $0x58] sm:$0xff]
      %v1641 = vld [vmem:[%s477 + $0x60] sm:$0xff]
      %v1642 = vld [vmem:[%s477 + $0x68] sm:$0xff]
      %v1643 = vld [vmem:[%s477 + $0x70] sm:$0xff]
      %v1644 = vld [vmem:[%s477 + $0x78] sm:$0xff]
      %v1645 = vld [vmem:[%s477 + $0x80] sm:$0xff]
      %v1646 = vld [vmem:[%s477 + $0x88] sm:$0xff]
      %v1647 = vld [vmem:[%s477 + $0x90] sm:$0xff]
      %v1648 = vld [vmem:[%s477 + $0x98] sm:$0xff]
      %v1649 = vld [vmem:[%s477 + $0xa0] sm:$0xff]
      %v1650 = vld [vmem:[%s477 + $0xa8] sm:$0xff]
      %v1651 = vld [vmem:[%s477 + $0xb0] sm:$0xff]
      %v1652 = vld [vmem:[%s477 + $0xb8] sm:$0xff]
      %v1653 = vld [vmem:[%s477 + $0xc0] sm:$0xff]
      %v1654 = vld [vmem:[%s477 + $0xc8] sm:$0xff]
      %v1655 = vld [vmem:[%s477 + $0xd0] sm:$0xff]
      %v1656 = vld [vmem:[%s477 + $0xd8] sm:$0xff]
      %v1657 = vld [vmem:[%s477 + $0xe0] sm:$0xff]
      %v1658 = vld [vmem:[%s477 + $0xe8] sm:$0xff]
      %v1659 = vld [vmem:[%s477 + $0xf0] sm:$0xff]
      %v1660 = vld [vmem:[%s477 + $0xf8] sm:$0xff]
      %v1661 = vld [vmem:[%s477 + $0x100] sm:$0xff]
      %v1662 = vld [vmem:[%s477 + $0x108] sm:$0xff]
      %v1663 = vld [vmem:[%s477 + $0x110] sm:$0xff]
      %v1664 = vld [vmem:[%s477 + $0x118] sm:$0xff]
      %v1665 = vld [vmem:[%s477 + $0x120] sm:$0xff]
      %v1666 = vld [vmem:[%s477 + $0x128] sm:$0xff]
      %v1667 = vld [vmem:[%s477 + $0x130] sm:$0xff]
      %v1668 = vld [vmem:[%s477 + $0x138] sm:$0xff]
      %v1669 = vld [vmem:[%s477 + $0x140] sm:$0xff]
      %v1670 = vld [vmem:[%s477 + $0x148] sm:$0xff]
      %v1671 = vld [vmem:[%s477 + $0x150] sm:$0xff]
      %v1672 = vld [vmem:[%s477 + $0x158] sm:$0xff]
      %v1673 = vld [vmem:[%s477 + $0x160] sm:$0xff]
      %v1674 = vld [vmem:[%s477 + $0x168] sm:$0xff]
      %v1675 = vld [vmem:[%s477 + $0x170] sm:$0xff]
      %v1676 = vld [vmem:[%s477 + $0x178] sm:$0xff]
      %v1677 = vld [vmem:[%s477 + $0x180] sm:$0xff]
      %v1678 = vld [vmem:[%s477 + $0x188] sm:$0xff]
      %v1679 = vld [vmem:[%s477 + $0x190] sm:$0xff]
      %v1680 = vld [vmem:[%s477 + $0x198] sm:$0xff]
      %v1681 = vld [vmem:[%s477 + $0x1a0] sm:$0xff]
      %v1682 = vld [vmem:[%s477 + $0x1a8] sm:$0xff]
      %v1683 = vld [vmem:[%s477 + $0x1b0] sm:$0xff]
      %v1684 = vld [vmem:[%s477 + $0x1b8] sm:$0xff]
      %v1685 = vld [vmem:[%s477 + $0x1c0] sm:$0xff]
      %v1686 = vld [vmem:[%s477 + $0x1c8] sm:$0xff]
      %v1687 = vld [vmem:[%s477 + $0x1d0] sm:$0xff]
      %v1688 = vld [vmem:[%s477 + $0x1d8] sm:$0xff]
      %v1689 = vld [vmem:[%s477 + $0x1e0] sm:$0xff]
      %v1690 = vld [vmem:[%s477 + $0x1e8] sm:$0xff]
      %v1691 = vld [vmem:[%s477 + $0x1f0] sm:$0xff]
      %v1692 = vld [vmem:[%s477 + $0x1f8] sm:$0xff]
      %v1693 = vld [vmem:[%s477 + $0x200] sm:$0xff]
      %v1694 = vld [vmem:[%s477 + $0x208] sm:$0xff]
      %v1695 = vld [vmem:[%s477 + $0x210] sm:$0xff]
      %v1696 = vld [vmem:[%s477 + $0x218] sm:$0xff]
      %v1697 = vld [vmem:[%s477 + $0x220] sm:$0xff]
      %v1698 = vld [vmem:[%s477 + $0x228] sm:$0xff]
      %v1699 = vld [vmem:[%s477 + $0x230] sm:$0xff]
      %v1700 = vld [vmem:[%s477 + $0x238] sm:$0xff]
      %v1701 = vld [vmem:[%s477 + $0x240] sm:$0xff]
      %v1702 = vld [vmem:[%s477 + $0x248] sm:$0xff]
      %v1703 = vld [vmem:[%s477 + $0x250] sm:$0xff]
      %v1704 = vld [vmem:[%s477 + $0x258] sm:$0xff]
      %v1705 = vld [vmem:[%s477 + $0x260] sm:$0xff]
      %v1706 = vld [vmem:[%s477 + $0x268] sm:$0xff]
      %v1707 = vld [vmem:[%s477 + $0x270] sm:$0xff]
      %v1708 = vld [vmem:[%s477 + $0x278] sm:$0xff]
      %v1709 = vld [vmem:[%s477 + $0x280] sm:$0xff]
      %v1710 = vld [vmem:[%s477 + $0x288] sm:$0xff]
      %v1711 = vld [vmem:[%s477 + $0x290] sm:$0xff]
      %v1712 = vld [vmem:[%s477 + $0x298] sm:$0xff]
      %v1713 = vld [vmem:[%s477 + $0x2a0] sm:$0xff]
      %v1714 = vld [vmem:[%s477 + $0x2a8] sm:$0xff]
      %v1715 = vld [vmem:[%s477 + $0x2b0] sm:$0xff]
      %v1716 = vld [vmem:[%s477 + $0x2b8] sm:$0xff]
      %v1717 = vld [vmem:[%s477 + $0x2c0] sm:$0xff]
      %v1718 = vld [vmem:[%s477 + $0x2c8] sm:$0xff]
      %v1719 = vld [vmem:[%s477 + $0x2d0] sm:$0xff]
      %v1720 = vld [vmem:[%s477 + $0x2d8] sm:$0xff]
      %v1721 = vld [vmem:[%s477 + $0x2e0] sm:$0xff]
      %v1722 = vld [vmem:[%s477 + $0x2e8] sm:$0xff]
      %v1723 = vld [vmem:[%s477 + $0x2f0] sm:$0xff]
      %v1724 = vld [vmem:[%s477 + $0x2f8] sm:$0xff]
      %v1725 = vld [vmem:[%s477 + $0x300] sm:$0xff]
      %v1726 = vld [vmem:[%s477 + $0x308] sm:$0xff]
      %v1727 = vld [vmem:[%s477 + $0x310] sm:$0xff]
      %v1728 = vld [vmem:[%s477 + $0x318] sm:$0xff]
      %v1729 = vld [vmem:[%s477 + $0x320] sm:$0xff]
      %v1730 = vld [vmem:[%s477 + $0x328] sm:$0xff]
      %v1731 = vld [vmem:[%s477 + $0x330] sm:$0xff]
      %v1732 = vld [vmem:[%s477 + $0x338] sm:$0xff]
      %v1733 = vld [vmem:[%s477 + $0x340] sm:$0xff]
      %v1734 = vld [vmem:[%s477 + $0x348] sm:$0xff]
      %v1735 = vld [vmem:[%s477 + $0x350] sm:$0xff]
      %v1736 = vld [vmem:[%s477 + $0x358] sm:$0xff]
      %v1737 = vld [vmem:[%s477 + $0x360] sm:$0xff]
      %v1738 = vld [vmem:[%s477 + $0x368] sm:$0xff]
      %v1739 = vld [vmem:[%s477 + $0x370] sm:$0xff]
      %v1740 = vld [vmem:[%s477 + $0x378] sm:$0xff]
      %v1741 = vld [vmem:[%s477 + $0x380] sm:$0xff]
      %v1742 = vld [vmem:[%s477 + $0x388] sm:$0xff]
      %v1743 = vld [vmem:[%s477 + $0x390] sm:$0xff]
      %v1744 = vld [vmem:[%s477 + $0x398] sm:$0xff]
      %v1745 = vld [vmem:[%s477 + $0x3a0] sm:$0xff]
      %v1746 = vld [vmem:[%s477 + $0x3a8] sm:$0xff]
      %v1747 = vld [vmem:[%s477 + $0x3b0] sm:$0xff]
      %v1748 = vld [vmem:[%s477 + $0x3b8] sm:$0xff]
      %v1749 = vld [vmem:[%s477 + $0x3c0] sm:$0xff]
      %v1750 = vld [vmem:[%s477 + $0x3c8] sm:$0xff]
      %v1751 = vld [vmem:[%s477 + $0x3d0] sm:$0xff]
      %v1752 = vld [vmem:[%s477 + $0x3d8] sm:$0xff]
      %v1753 = vld [vmem:[%s477 + $0x3e0] sm:$0xff]
      %v1754 = vld [vmem:[%s477 + $0x3e8] sm:$0xff]
      %v1755 = vld [vmem:[%s477 + $0x3f0] sm:$0xff]
      %v1756 = vld [vmem:[%s477 + $0x3f8] sm:$0xff]
      %v1757 = vld [vmem:[%s481] sm:$0xf]
      %v1759 = vlaneseq
      %v1760 = vshrl.u32 %v1759, 7
      %v1761 = vsub.s32 0, %v1760
      %v1762 = vrot.slane %v1757, %v1761
      %v1763 = vlaneseq
      %v1764 = vshrl.u32 %v1763, 7
      %v1765 = vsub.s32 1, %v1764
      %v1766 = vrot.slane %v1757, %v1765
      %v1767 = vlaneseq
      %v1768 = vshrl.u32 %v1767, 7
      %v1769 = vsub.s32 2, %v1768
      %v1770 = vrot.slane %v1757, %v1769
      %v1771 = vlaneseq
      %v1772 = vshrl.u32 %v1771, 7
      %v1773 = vsub.s32 3, %v1772
      %v1774 = vrot.slane %v1757, %v1773
      %v1907 = vunpack.c.l.b16 %v1629
      %v1908 = vunpack.c.h.b16 %v1629
      %v1909 = vunpack.c.l.b16 %v1630
      %v1910 = vunpack.c.h.b16 %v1630
      %v1911 = vunpack.c.l.b16 %v1631
      %v1912 = vunpack.c.h.b16 %v1631
      %v1913 = vunpack.c.l.b16 %v1632
      %v1914 = vunpack.c.h.b16 %v1632
      %v1915 = vunpack.c.l.b16 %v1633
      %v1916 = vunpack.c.h.b16 %v1633
      %v1917 = vunpack.c.l.b16 %v1634
      %v1918 = vunpack.c.h.b16 %v1634
      %v1919 = vunpack.c.l.b16 %v1635
      %v1920 = vunpack.c.h.b16 %v1635
      %v1921 = vunpack.c.l.b16 %v1636
      %v1922 = vunpack.c.h.b16 %v1636
      %v1923 = vunpack.c.l.b16 %v1637
      %v1924 = vunpack.c.h.b16 %v1637
      %v1925 = vunpack.c.l.b16 %v1638
      %v1926 = vunpack.c.h.b16 %v1638
      %v1927 = vunpack.c.l.b16 %v1639
      %v1928 = vunpack.c.h.b16 %v1639
      %v1929 = vunpack.c.l.b16 %v1640
      %v1930 = vunpack.c.h.b16 %v1640
      %v1931 = vunpack.c.l.b16 %v1641
      %v1932 = vunpack.c.h.b16 %v1641
      %v1933 = vunpack.c.l.b16 %v1642
      %v1934 = vunpack.c.h.b16 %v1642
      %v1935 = vunpack.c.l.b16 %v1643
      %v1936 = vunpack.c.h.b16 %v1643
      %v1937 = vunpack.c.l.b16 %v1644
      %v1938 = vunpack.c.h.b16 %v1644
      %v1939 = vunpack.c.l.b16 %v1645
      %v1940 = vunpack.c.h.b16 %v1645
      %v1941 = vunpack.c.l.b16 %v1646
      %v1942 = vunpack.c.h.b16 %v1646
      %v1943 = vunpack.c.l.b16 %v1647
      %v1944 = vunpack.c.h.b16 %v1647
      %v1945 = vunpack.c.l.b16 %v1648
      %v1946 = vunpack.c.h.b16 %v1648
      %v1947 = vunpack.c.l.b16 %v1649
      %v1948 = vunpack.c.h.b16 %v1649
      %v1949 = vunpack.c.l.b16 %v1650
      %v1950 = vunpack.c.h.b16 %v1650
      %v1951 = vunpack.c.l.b16 %v1651
      %v1952 = vunpack.c.h.b16 %v1651
      %v1953 = vunpack.c.l.b16 %v1652
      %v1954 = vunpack.c.h.b16 %v1652
      %v1955 = vunpack.c.l.b16 %v1653
      %v1956 = vunpack.c.h.b16 %v1653
      %v1957 = vunpack.c.l.b16 %v1654
      %v1958 = vunpack.c.h.b16 %v1654
      %v1959 = vunpack.c.l.b16 %v1655
      %v1960 = vunpack.c.h.b16 %v1655
      %v1961 = vunpack.c.l.b16 %v1656
      %v1962 = vunpack.c.h.b16 %v1656
      %v1963 = vunpack.c.l.b16 %v1657
      %v1964 = vunpack.c.h.b16 %v1657
      %v1965 = vunpack.c.l.b16 %v1658
      %v1966 = vunpack.c.h.b16 %v1658
      %v1967 = vunpack.c.l.b16 %v1659
      %v1968 = vunpack.c.h.b16 %v1659
      %v1969 = vunpack.c.l.b16 %v1660
      %v1970 = vunpack.c.h.b16 %v1660
      %v1971 = vunpack.c.l.b16 %v1661
      %v1972 = vunpack.c.h.b16 %v1661
      %v1973 = vunpack.c.l.b16 %v1662
      %v1974 = vunpack.c.h.b16 %v1662
      %v1975 = vunpack.c.l.b16 %v1663
      %v1976 = vunpack.c.h.b16 %v1663
      %v1977 = vunpack.c.l.b16 %v1664
      %v1978 = vunpack.c.h.b16 %v1664
      %v1979 = vunpack.c.l.b16 %v1665
      %v1980 = vunpack.c.h.b16 %v1665
      %v1981 = vunpack.c.l.b16 %v1666
      %v1982 = vunpack.c.h.b16 %v1666
      %v1983 = vunpack.c.l.b16 %v1667
      %v1984 = vunpack.c.h.b16 %v1667
      %v1985 = vunpack.c.l.b16 %v1668
      %v1986 = vunpack.c.h.b16 %v1668
      %v1987 = vunpack.c.l.b16 %v1669
      %v1988 = vunpack.c.h.b16 %v1669
      %v1989 = vunpack.c.l.b16 %v1670
      %v1990 = vunpack.c.h.b16 %v1670
      %v1991 = vunpack.c.l.b16 %v1671
      %v1992 = vunpack.c.h.b16 %v1671
      %v1993 = vunpack.c.l.b16 %v1672
      %v1994 = vunpack.c.h.b16 %v1672
      %v1995 = vunpack.c.l.b16 %v1673
      %v1996 = vunpack.c.h.b16 %v1673
      %v1997 = vunpack.c.l.b16 %v1674
      %v1998 = vunpack.c.h.b16 %v1674
      %v1999 = vunpack.c.l.b16 %v1675
      %v2000 = vunpack.c.h.b16 %v1675
      %v2001 = vunpack.c.l.b16 %v1676
      %v2002 = vunpack.c.h.b16 %v1676
      %v2003 = vunpack.c.l.b16 %v1677
      %v2004 = vunpack.c.h.b16 %v1677
      %v2005 = vunpack.c.l.b16 %v1678
      %v2006 = vunpack.c.h.b16 %v1678
      %v2007 = vunpack.c.l.b16 %v1679
      %v2008 = vunpack.c.h.b16 %v1679
      %v2009 = vunpack.c.l.b16 %v1680
      %v2010 = vunpack.c.h.b16 %v1680
      %v2011 = vunpack.c.l.b16 %v1681
      %v2012 = vunpack.c.h.b16 %v1681
      %v2013 = vunpack.c.l.b16 %v1682
      %v2014 = vunpack.c.h.b16 %v1682
      %v2015 = vunpack.c.l.b16 %v1683
      %v2016 = vunpack.c.h.b16 %v1683
      %v2017 = vunpack.c.l.b16 %v1684
      %v2018 = vunpack.c.h.b16 %v1684
      %v2019 = vunpack.c.l.b16 %v1685
      %v2020 = vunpack.c.h.b16 %v1685
      %v2021 = vunpack.c.l.b16 %v1686
      %v2022 = vunpack.c.h.b16 %v1686
      %v2023 = vunpack.c.l.b16 %v1687
      %v2024 = vunpack.c.h.b16 %v1687
      %v2025 = vunpack.c.l.b16 %v1688
      %v2026 = vunpack.c.h.b16 %v1688
      %v2027 = vunpack.c.l.b16 %v1689
      %v2028 = vunpack.c.h.b16 %v1689
      %v2029 = vunpack.c.l.b16 %v1690
      %v2030 = vunpack.c.h.b16 %v1690
      %v2031 = vunpack.c.l.b16 %v1691
      %v2032 = vunpack.c.h.b16 %v1691
      %v2033 = vunpack.c.l.b16 %v1692
      %v2034 = vunpack.c.h.b16 %v1692
      %v2035 = vunpack.c.l.b16 %v1693
      %v2036 = vunpack.c.h.b16 %v1693
      %v2037 = vunpack.c.l.b16 %v1694
      %v2038 = vunpack.c.h.b16 %v1694
      %v2039 = vunpack.c.l.b16 %v1695
      %v2040 = vunpack.c.h.b16 %v1695
      %v2041 = vunpack.c.l.b16 %v1696
      %v2042 = vunpack.c.h.b16 %v1696
      %v2043 = vunpack.c.l.b16 %v1697
      %v2044 = vunpack.c.h.b16 %v1697
      %v2045 = vunpack.c.l.b16 %v1698
      %v2046 = vunpack.c.h.b16 %v1698
      %v2047 = vunpack.c.l.b16 %v1699
      %v2048 = vunpack.c.h.b16 %v1699
      %v2049 = vunpack.c.l.b16 %v1700
      %v2050 = vunpack.c.h.b16 %v1700
      %v2051 = vunpack.c.l.b16 %v1701
      %v2052 = vunpack.c.h.b16 %v1701
      %v2053 = vunpack.c.l.b16 %v1702
      %v2054 = vunpack.c.h.b16 %v1702
      %v2055 = vunpack.c.l.b16 %v1703
      %v2056 = vunpack.c.h.b16 %v1703
      %v2057 = vunpack.c.l.b16 %v1704
      %v2058 = vunpack.c.h.b16 %v1704
      %v2059 = vunpack.c.l.b16 %v1705
      %v2060 = vunpack.c.h.b16 %v1705
      %v2061 = vunpack.c.l.b16 %v1706
      %v2062 = vunpack.c.h.b16 %v1706
      %v2063 = vunpack.c.l.b16 %v1707
      %v2064 = vunpack.c.h.b16 %v1707
      %v2065 = vunpack.c.l.b16 %v1708
      %v2066 = vunpack.c.h.b16 %v1708
      %v2067 = vunpack.c.l.b16 %v1709
      %v2068 = vunpack.c.h.b16 %v1709
      %v2069 = vunpack.c.l.b16 %v1710
      %v2070 = vunpack.c.h.b16 %v1710
      %v2071 = vunpack.c.l.b16 %v1711
      %v2072 = vunpack.c.h.b16 %v1711
      %v2073 = vunpack.c.l.b16 %v1712
      %v2074 = vunpack.c.h.b16 %v1712
      %v2075 = vunpack.c.l.b16 %v1713
      %v2076 = vunpack.c.h.b16 %v1713
      %v2077 = vunpack.c.l.b16 %v1714
      %v2078 = vunpack.c.h.b16 %v1714
      %v2079 = vunpack.c.l.b16 %v1715
      %v2080 = vunpack.c.h.b16 %v1715
      %v2081 = vunpack.c.l.b16 %v1716
      %v2082 = vunpack.c.h.b16 %v1716
      %v2083 = vunpack.c.l.b16 %v1717
      %v2084 = vunpack.c.h.b16 %v1717
      %v2085 = vunpack.c.l.b16 %v1718
      %v2086 = vunpack.c.h.b16 %v1718
      %v2087 = vunpack.c.l.b16 %v1719
      %v2088 = vunpack.c.h.b16 %v1719
      %v2089 = vunpack.c.l.b16 %v1720
      %v2090 = vunpack.c.h.b16 %v1720
      %v2091 = vunpack.c.l.b16 %v1721
      %v2092 = vunpack.c.h.b16 %v1721
      %v2093 = vunpack.c.l.b16 %v1722
      %v2094 = vunpack.c.h.b16 %v1722
      %v2095 = vunpack.c.l.b16 %v1723
      %v2096 = vunpack.c.h.b16 %v1723
      %v2097 = vunpack.c.l.b16 %v1724
      %v2098 = vunpack.c.h.b16 %v1724
      %v2099 = vunpack.c.l.b16 %v1725
      %v2100 = vunpack.c.h.b16 %v1725
      %v2101 = vunpack.c.l.b16 %v1726
      %v2102 = vunpack.c.h.b16 %v1726
      %v2103 = vunpack.c.l.b16 %v1727
      %v2104 = vunpack.c.h.b16 %v1727
      %v2105 = vunpack.c.l.b16 %v1728
      %v2106 = vunpack.c.h.b16 %v1728
      %v2107 = vunpack.c.l.b16 %v1729
      %v2108 = vunpack.c.h.b16 %v1729
      %v2109 = vunpack.c.l.b16 %v1730
      %v2110 = vunpack.c.h.b16 %v1730
      %v2111 = vunpack.c.l.b16 %v1731
      %v2112 = vunpack.c.h.b16 %v1731
      %v2113 = vunpack.c.l.b16 %v1732
      %v2114 = vunpack.c.h.b16 %v1732
      %v2115 = vunpack.c.l.b16 %v1733
      %v2116 = vunpack.c.h.b16 %v1733
      %v2117 = vunpack.c.l.b16 %v1734
      %v2118 = vunpack.c.h.b16 %v1734
      %v2119 = vunpack.c.l.b16 %v1735
      %v2120 = vunpack.c.h.b16 %v1735
      %v2121 = vunpack.c.l.b16 %v1736
      %v2122 = vunpack.c.h.b16 %v1736
      %v2123 = vunpack.c.l.b16 %v1737
      %v2124 = vunpack.c.h.b16 %v1737
      %v2125 = vunpack.c.l.b16 %v1738
      %v2126 = vunpack.c.h.b16 %v1738
      %v2127 = vunpack.c.l.b16 %v1739
      %v2128 = vunpack.c.h.b16 %v1739
      %v2129 = vunpack.c.l.b16 %v1740
      %v2130 = vunpack.c.h.b16 %v1740
      %v2131 = vunpack.c.l.b16 %v1741
      %v2132 = vunpack.c.h.b16 %v1741
      %v2133 = vunpack.c.l.b16 %v1742
      %v2134 = vunpack.c.h.b16 %v1742
      %v2135 = vunpack.c.l.b16 %v1743
      %v2136 = vunpack.c.h.b16 %v1743
      %v2137 = vunpack.c.l.b16 %v1744
      %v2138 = vunpack.c.h.b16 %v1744
      %v2139 = vunpack.c.l.b16 %v1745
      %v2140 = vunpack.c.h.b16 %v1745
      %v2141 = vunpack.c.l.b16 %v1746
      %v2142 = vunpack.c.h.b16 %v1746
      %v2143 = vunpack.c.l.b16 %v1747
      %v2144 = vunpack.c.h.b16 %v1747
      %v2145 = vunpack.c.l.b16 %v1748
      %v2146 = vunpack.c.h.b16 %v1748
      %v2147 = vunpack.c.l.b16 %v1749
      %v2148 = vunpack.c.h.b16 %v1749
      %v2149 = vunpack.c.l.b16 %v1750
      %v2150 = vunpack.c.h.b16 %v1750
      %v2151 = vunpack.c.l.b16 %v1751
      %v2152 = vunpack.c.h.b16 %v1751
      %v2153 = vunpack.c.l.b16 %v1752
      %v2154 = vunpack.c.h.b16 %v1752
      %v2155 = vunpack.c.l.b16 %v1753
      %v2156 = vunpack.c.h.b16 %v1753
      %v2157 = vunpack.c.l.b16 %v1754
      %v2158 = vunpack.c.h.b16 %v1754
      %v2159 = vunpack.c.l.b16 %v1755
      %v2160 = vunpack.c.h.b16 %v1755
      %v2161 = vunpack.c.l.b16 %v1756
      %v2162 = vunpack.c.h.b16 %v1756
      %v2163 = vpack.c.b16 %v1911, %v1907
      %v2164 = vpack.c.b16 %v1912, %v1908
      %v2165 = vpack.c.b16 %v1913, %v1909
      %v2166 = vpack.c.b16 %v1914, %v1910
      %v2167 = vpack.c.b16 %v1919, %v1915
      %v2168 = vpack.c.b16 %v1920, %v1916
      %v2169 = vpack.c.b16 %v1921, %v1917
      %v2170 = vpack.c.b16 %v1922, %v1918
      %v2171 = vpack.c.b16 %v1927, %v1923
      %v2172 = vpack.c.b16 %v1928, %v1924
      %v2173 = vpack.c.b16 %v1929, %v1925
      %v2174 = vpack.c.b16 %v1930, %v1926
      %v2175 = vpack.c.b16 %v1935, %v1931
      %v2176 = vpack.c.b16 %v1936, %v1932
      %v2177 = vpack.c.b16 %v1937, %v1933
      %v2178 = vpack.c.b16 %v1938, %v1934
      %v2179 = vpack.c.b16 %v1943, %v1939
      %v2180 = vpack.c.b16 %v1944, %v1940
      %v2181 = vpack.c.b16 %v1945, %v1941
      %v2182 = vpack.c.b16 %v1946, %v1942
      %v2183 = vpack.c.b16 %v1951, %v1947
      %v2184 = vpack.c.b16 %v1952, %v1948
      %v2185 = vpack.c.b16 %v1953, %v1949
      %v2186 = vpack.c.b16 %v1954, %v1950
      %v2187 = vpack.c.b16 %v1959, %v1955
      %v2188 = vpack.c.b16 %v1960, %v1956
      %v2189 = vpack.c.b16 %v1961, %v1957
      %v2190 = vpack.c.b16 %v1962, %v1958
      %v2191 = vpack.c.b16 %v1967, %v1963
      %v2192 = vpack.c.b16 %v1968, %v1964
      %v2193 = vpack.c.b16 %v1969, %v1965
      %v2194 = vpack.c.b16 %v1970, %v1966
      %v2195 = vpack.c.b16 %v1975, %v1971
      %v2196 = vpack.c.b16 %v1976, %v1972
      %v2197 = vpack.c.b16 %v1977, %v1973
      %v2198 = vpack.c.b16 %v1978, %v1974
      %v2199 = vpack.c.b16 %v1983, %v1979
      %v2200 = vpack.c.b16 %v1984, %v1980
      %v2201 = vpack.c.b16 %v1985, %v1981
      %v2202 = vpack.c.b16 %v1986, %v1982
      %v2203 = vpack.c.b16 %v1991, %v1987
      %v2204 = vpack.c.b16 %v1992, %v1988
      %v2205 = vpack.c.b16 %v1993, %v1989
      %v2206 = vpack.c.b16 %v1994, %v1990
      %v2207 = vpack.c.b16 %v1999, %v1995
      %v2208 = vpack.c.b16 %v2000, %v1996
      %v2209 = vpack.c.b16 %v2001, %v1997
      %v2210 = vpack.c.b16 %v2002, %v1998
      %v2211 = vpack.c.b16 %v2007, %v2003
      %v2212 = vpack.c.b16 %v2008, %v2004
      %v2213 = vpack.c.b16 %v2009, %v2005
      %v2214 = vpack.c.b16 %v2010, %v2006
      %v2215 = vpack.c.b16 %v2015, %v2011
      %v2216 = vpack.c.b16 %v2016, %v2012
      %v2217 = vpack.c.b16 %v2017, %v2013
      %v2218 = vpack.c.b16 %v2018, %v2014
      %v2219 = vpack.c.b16 %v2023, %v2019
      %v2220 = vpack.c.b16 %v2024, %v2020
      %v2221 = vpack.c.b16 %v2025, %v2021
      %v2222 = vpack.c.b16 %v2026, %v2022
      %v2223 = vpack.c.b16 %v2031, %v2027
      %v2224 = vpack.c.b16 %v2032, %v2028
      %v2225 = vpack.c.b16 %v2033, %v2029
      %v2226 = vpack.c.b16 %v2034, %v2030
      %v2227 = vpack.c.b16 %v2039, %v2035
      %v2228 = vpack.c.b16 %v2040, %v2036
      %v2229 = vpack.c.b16 %v2041, %v2037
      %v2230 = vpack.c.b16 %v2042, %v2038
      %v2231 = vpack.c.b16 %v2047, %v2043
      %v2232 = vpack.c.b16 %v2048, %v2044
      %v2233 = vpack.c.b16 %v2049, %v2045
      %v2234 = vpack.c.b16 %v2050, %v2046
      %v2235 = vpack.c.b16 %v2055, %v2051
      %v2236 = vpack.c.b16 %v2056, %v2052
      %v2237 = vpack.c.b16 %v2057, %v2053
      %v2238 = vpack.c.b16 %v2058, %v2054
      %v2239 = vpack.c.b16 %v2063, %v2059
      %v2240 = vpack.c.b16 %v2064, %v2060
      %v2241 = vpack.c.b16 %v2065, %v2061
      %v2242 = vpack.c.b16 %v2066, %v2062
      %v2243 = vpack.c.b16 %v2071, %v2067
      %v2244 = vpack.c.b16 %v2072, %v2068
      %v2245 = vpack.c.b16 %v2073, %v2069
      %v2246 = vpack.c.b16 %v2074, %v2070
      %v2247 = vpack.c.b16 %v2079, %v2075
      %v2248 = vpack.c.b16 %v2080, %v2076
      %v2249 = vpack.c.b16 %v2081, %v2077
      %v2250 = vpack.c.b16 %v2082, %v2078
      %v2251 = vpack.c.b16 %v2087, %v2083
      %v2252 = vpack.c.b16 %v2088, %v2084
      %v2253 = vpack.c.b16 %v2089, %v2085
      %v2254 = vpack.c.b16 %v2090, %v2086
      %v2255 = vpack.c.b16 %v2095, %v2091
      %v2256 = vpack.c.b16 %v2096, %v2092
      %v2257 = vpack.c.b16 %v2097, %v2093
      %v2258 = vpack.c.b16 %v2098, %v2094
      %v2259 = vpack.c.b16 %v2103, %v2099
      %v2260 = vpack.c.b16 %v2104, %v2100
      %v2261 = vpack.c.b16 %v2105, %v2101
      %v2262 = vpack.c.b16 %v2106, %v2102
      %v2263 = vpack.c.b16 %v2111, %v2107
      %v2264 = vpack.c.b16 %v2112, %v2108
      %v2265 = vpack.c.b16 %v2113, %v2109
      %v2266 = vpack.c.b16 %v2114, %v2110
      %v2267 = vpack.c.b16 %v2119, %v2115
      %v2268 = vpack.c.b16 %v2120, %v2116
      %v2269 = vpack.c.b16 %v2121, %v2117
      %v2270 = vpack.c.b16 %v2122, %v2118
      %v2271 = vpack.c.b16 %v2127, %v2123
      %v2272 = vpack.c.b16 %v2128, %v2124
      %v2273 = vpack.c.b16 %v2129, %v2125
      %v2274 = vpack.c.b16 %v2130, %v2126
      %v2275 = vpack.c.b16 %v2135, %v2131
      %v2276 = vpack.c.b16 %v2136, %v2132
      %v2277 = vpack.c.b16 %v2137, %v2133
      %v2278 = vpack.c.b16 %v2138, %v2134
      %v2279 = vpack.c.b16 %v2143, %v2139
      %v2280 = vpack.c.b16 %v2144, %v2140
      %v2281 = vpack.c.b16 %v2145, %v2141
      %v2282 = vpack.c.b16 %v2146, %v2142
      %v2283 = vpack.c.b16 %v2151, %v2147
      %v2284 = vpack.c.b16 %v2152, %v2148
      %v2285 = vpack.c.b16 %v2153, %v2149
      %v2286 = vpack.c.b16 %v2154, %v2150
      %v2287 = vpack.c.b16 %v2159, %v2155
      %v2288 = vpack.c.b16 %v2160, %v2156
      %v2289 = vpack.c.b16 %v2161, %v2157
      %v2290 = vpack.c.b16 %v2162, %v2158
      %2419 = vmatprep.subr.bf16.mxu0 %v2164
      %2420 = vmatpush1.bf16.msra.mxu0 %v2163
      %2421 = vmatprep.subr.bf16.mxu0 %v2168
      %2422 = vmatpush1.bf16.msra.mxu0 %v2167
      %2423 = vmatprep.subr.bf16.mxu0 %v2172
      %2424 = vmatpush1.bf16.msra.mxu0 %v2171
      %2425 = vmatprep.subr.bf16.mxu0 %v2176
      %2426 = vmatpush1.bf16.msra.mxu0 %v2175
      %2427 = vmatprep.subr.bf16.mxu0 %v2180
      %2428 = vmatpush1.bf16.msra.mxu0 %v2179
      %2429 = vmatprep.subr.bf16.mxu0 %v2184
      %2430 = vmatpush1.bf16.msra.mxu0 %v2183
      %2431 = vmatprep.subr.bf16.mxu0 %v2188
      %2432 = vmatpush1.bf16.msra.mxu0 %v2187
      %2433 = vmatprep.subr.bf16.mxu0 %v2192
      %2434 = vmatpush1.bf16.msra.mxu0 %v2191
      %2435 = vmatprep.subr.bf16.mxu0 %v2196
      %2436 = vmatpush1.bf16.msra.mxu0 %v2195
      %2437 = vmatprep.subr.bf16.mxu0 %v2200
      %2438 = vmatpush1.bf16.msra.mxu0 %v2199
      %2439 = vmatprep.subr.bf16.mxu0 %v2204
      %2440 = vmatpush1.bf16.msra.mxu0 %v2203
      %2441 = vmatprep.subr.bf16.mxu0 %v2208
      %2442 = vmatpush1.bf16.msra.mxu0 %v2207
      %2443 = vmatprep.subr.bf16.mxu0 %v2212
      %2444 = vmatpush1.bf16.msra.mxu0 %v2211
      %2445 = vmatprep.subr.bf16.mxu0 %v2216
      %2446 = vmatpush1.bf16.msra.mxu0 %v2215
      %2447 = vmatprep.subr.bf16.mxu0 %v2220
      %2448 = vmatpush1.bf16.msra.mxu0 %v2219
      %2449 = vmatprep.subr.bf16.mxu0 %v2224
      %2450 = vmatpush1.bf16.msra.mxu0 %v2223
      %2451 = vmatprep.mubr.bf16.mxu0 %v1626
      %2452 = vmatmul.mubr.bf16.gmra.mrb[0].mxu0 %v1625
      %v2453 = vpop.f32.mrb[0].mxu0
      %v2454 = vadd.f32 %v1762, %v2453
      %v2455 = vpop.f32.mrb[0].mxu0
      %v2456 = vadd.f32 %v1766, %v2455
      %v2457 = vpop.f32.mrb[0].mxu0
      %v2458 = vpop.f32.mrb[0].mxu0
      %2459 = vdwg.mxu0
      %2460 = vmatprep.subr.bf16.mxu0 %v2228
      %2461 = vmatpush1.bf16.msra.mxu0 %v2227
      %2462 = vmatprep.subr.bf16.mxu0 %v2232
      %2463 = vmatpush1.bf16.msra.mxu0 %v2231
      %2464 = vmatprep.subr.bf16.mxu0 %v2236
      %2465 = vmatpush1.bf16.msra.mxu0 %v2235
      %2466 = vmatprep.subr.bf16.mxu0 %v2240
      %2467 = vmatpush1.bf16.msra.mxu0 %v2239
      %2468 = vmatprep.subr.bf16.mxu0 %v2244
      %2469 = vmatpush1.bf16.msra.mxu0 %v2243
      %2470 = vmatprep.subr.bf16.mxu0 %v2248
      %2471 = vmatpush1.bf16.msra.mxu0 %v2247
      %2472 = vmatprep.subr.bf16.mxu0 %v2252
      %2473 = vmatpush1.bf16.msra.mxu0 %v2251
      %2474 = vmatprep.subr.bf16.mxu0 %v2256
      %2475 = vmatpush1.bf16.msra.mxu0 %v2255
      %2476 = vmatprep.subr.bf16.mxu0 %v2260
      %2477 = vmatpush1.bf16.msra.mxu0 %v2259
      %2478 = vmatprep.subr.bf16.mxu0 %v2264
      %2479 = vmatpush1.bf16.msra.mxu0 %v2263
      %2480 = vmatprep.subr.bf16.mxu0 %v2268
      %2481 = vmatpush1.bf16.msra.mxu0 %v2267
      %2482 = vmatprep.subr.bf16.mxu0 %v2272
      %2483 = vmatpush1.bf16.msra.mxu0 %v2271
      %2484 = vmatprep.subr.bf16.mxu0 %v2276
      %2485 = vmatpush1.bf16.msra.mxu0 %v2275
      %2486 = vmatprep.subr.bf16.mxu0 %v2280
      %2487 = vmatpush1.bf16.msra.mxu0 %v2279
      %2488 = vmatprep.subr.bf16.mxu0 %v2284
      %2489 = vmatpush1.bf16.msra.mxu0 %v2283
      %2490 = vmatprep.subr.bf16.mxu0 %v2288
      %2491 = vmatpush1.bf16.msra.mxu0 %v2287
      %2492 = vmatprep.mubr.bf16.mxu0 %v1628
      %2493 = vmatmul.mubr.bf16.gmra.mrb[0].mxu0 %v1627
      %v2494 = vpop.f32.mrb[0].mxu0
      %v2495 = vadd.f32 %v2454, %v2494
      %v2496 = vpop.f32.mrb[0].mxu0
      %v2497 = vadd.f32 %v2456, %v2496
      %v2498 = vpop.f32.mrb[0].mxu0
      %v2499 = vpop.f32.mrb[0].mxu0
      %2500 = vdwg.mxu0
      %2501 = vmatprep.subr.bf16.mxu0 %v2166
      %2502 = vmatpush1.bf16.msra.mxu0 %v2165
      %2503 = vmatprep.subr.bf16.mxu0 %v2170
      %2504 = vmatpush1.bf16.msra.mxu0 %v2169
      %2505 = vmatprep.subr.bf16.mxu0 %v2174
      %2506 = vmatpush1.bf16.msra.mxu0 %v2173
      %2507 = vmatprep.subr.bf16.mxu0 %v2178
      %2508 = vmatpush1.bf16.msra.mxu0 %v2177
      %2509 = vmatprep.subr.bf16.mxu0 %v2182
      %2510 = vmatpush1.bf16.msra.mxu0 %v2181
      %2511 = vmatprep.subr.bf16.mxu0 %v2186
      %2512 = vmatpush1.bf16.msra.mxu0 %v2185
      %2513 = vmatprep.subr.bf16.mxu0 %v2190
      %2514 = vmatpush1.bf16.msra.mxu0 %v2189
      %2515 = vmatprep.subr.bf16.mxu0 %v2194
      %2516 = vmatpush1.bf16.msra.mxu0 %v2193
      %2517 = vmatprep.subr.bf16.mxu0 %v2198
      %2518 = vmatpush1.bf16.msra.mxu0 %v2197
      %2519 = vmatprep.subr.bf16.mxu0 %v2202
      %2520 = vmatpush1.bf16.msra.mxu0 %v2201
      %2521 = vmatprep.subr.bf16.mxu0 %v2206
      %2522 = vmatpush1.bf16.msra.mxu0 %v2205
      %2523 = vmatprep.subr.bf16.mxu0 %v2210
      %2524 = vmatpush1.bf16.msra.mxu0 %v2209
      %2525 = vmatprep.subr.bf16.mxu0 %v2214
      %2526 = vmatpush1.bf16.msra.mxu0 %v2213
      %2527 = vmatprep.subr.bf16.mxu0 %v2218
      %2528 = vmatpush1.bf16.msra.mxu0 %v2217
      %2529 = vmatprep.subr.bf16.mxu0 %v2222
      %2530 = vmatpush1.bf16.msra.mxu0 %v2221
      %2531 = vmatprep.subr.bf16.mxu0 %v2226
      %2532 = vmatpush1.bf16.msra.mxu0 %v2225
      %2533 = vmatprep.mubr.bf16.mxu0 %v1626
      %2534 = vmatmul.mubr.bf16.gmra.mrb[0].mxu0 %v1625
      %v2535 = vpop.f32.mrb[0].mxu0
      %v2536 = vadd.f32 %v1770, %v2535
      %v2537 = vpop.f32.mrb[0].mxu0
      %v2538 = vadd.f32 %v1774, %v2537
      %v2539 = vpop.f32.mrb[0].mxu0
      %v2540 = vpop.f32.mrb[0].mxu0
      %2541 = vdwg.mxu0
      %2542 = vmatprep.subr.bf16.mxu0 %v2230
      %2543 = vmatpush1.bf16.msra.mxu0 %v2229
      %2544 = vmatprep.subr.bf16.mxu0 %v2234
      %2545 = vmatpush1.bf16.msra.mxu0 %v2233
      %2546 = vmatprep.subr.bf16.mxu0 %v2238
      %2547 = vmatpush1.bf16.msra.mxu0 %v2237
      %2548 = vmatprep.subr.bf16.mxu0 %v2242
      %2549 = vmatpush1.bf16.msra.mxu0 %v2241
      %2550 = vmatprep.subr.bf16.mxu0 %v2246
      %2551 = vmatpush1.bf16.msra.mxu0 %v2245
      %2552 = vmatprep.subr.bf16.mxu0 %v2250
      %2553 = vmatpush1.bf16.msra.mxu0 %v2249
      %2554 = vmatprep.subr.bf16.mxu0 %v2254
      %2555 = vmatpush1.bf16.msra.mxu0 %v2253
      %2556 = vmatprep.subr.bf16.mxu0 %v2258
      %2557 = vmatpush1.bf16.msra.mxu0 %v2257
      %2558 = vmatprep.subr.bf16.mxu0 %v2262
      %2559 = vmatpush1.bf16.msra.mxu0 %v2261
      %2560 = vmatprep.subr.bf16.mxu0 %v2266
      %2561 = vmatpush1.bf16.msra.mxu0 %v2265
      %2562 = vmatprep.subr.bf16.mxu0 %v2270
      %2563 = vmatpush1.bf16.msra.mxu0 %v2269
      %2564 = vmatprep.subr.bf16.mxu0 %v2274
      %2565 = vmatpush1.bf16.msra.mxu0 %v2273
      %2566 = vmatprep.subr.bf16.mxu0 %v2278
      %2567 = vmatpush1.bf16.msra.mxu0 %v2277
      %2568 = vmatprep.subr.bf16.mxu0 %v2282
      %2569 = vmatpush1.bf16.msra.mxu0 %v2281
      %2570 = vmatprep.subr.bf16.mxu0 %v2286
      %2571 = vmatpush1.bf16.msra.mxu0 %v2285
      %2572 = vmatprep.subr.bf16.mxu0 %v2290
      %2573 = vmatpush1.bf16.msra.mxu0 %v2289
      %2574 = vmatprep.mubr.bf16.mxu0 %v1628
      %2575 = vmatmul.mubr.bf16.gmra.mrb[0].mxu0 %v1627
      %v2576 = vpop.f32.mrb[0].mxu0
      %v2577 = vadd.f32 %v2536, %v2576
      %v2578 = vpop.f32.mrb[0].mxu0
      %v2579 = vadd.f32 %v2538, %v2578
      %v2580 = vpop.f32.mrb[0].mxu0
      %v2581 = vpop.f32.mrb[0].mxu0
      %2582 = vdwg.mxu0
      %v2583 = vmax.f32 %v2495, 0.0
      %v2584 = vmax.f32 %v2497, 0.0
      %v2585 = vmax.f32 %v2577, 0.0
      %v2586 = vmax.f32 %v2579, 0.0
      %v2587 = vpack.c.bf16 %v2583, %v2583
      %v2588 = vpack.c.bf16 %v2584, %v2584
      %v2589 = vpack.c.bf16 %v2585, %v2585
      %v2590 = vpack.c.bf16 %v2586, %v2586
      %v2591 = vld [vmem:[%s486] sm:$0xff]
      %v2592 = vld [vmem:[%s486 + $0x8] sm:$0xff]
      %v2593 = vld [vmem:[%s486 + $0x10] sm:$0xff]
      %v2594 = vld [vmem:[%s486 + $0x18] sm:$0xff]
      %v2595 = vld [vmem:[%s486 + $0x20] sm:$0xff]
      %v2596 = vld [vmem:[%s486 + $0x28] sm:$0xff]
      %v2597 = vld [vmem:[%s486 + $0x30] sm:$0xff]
      %v2598 = vld [vmem:[%s486 + $0x38] sm:$0xff]
      %v2599 = vld [vmem:[%s486 + $0x40] sm:$0xff]
      %v2600 = vld [vmem:[%s486 + $0x48] sm:$0xff]
      %v2601 = vld [vmem:[%s486 + $0x50] sm:$0xff]
      %v2602 = vld [vmem:[%s486 + $0x58] sm:$0xff]
      %v2603 = vld [vmem:[%s486 + $0x60] sm:$0xff]
      %v2604 = vld [vmem:[%s486 + $0x68] sm:$0xff]
      %v2605 = vld [vmem:[%s486 + $0x70] sm:$0xff]
      %v2606 = vld [vmem:[%s486 + $0x78] sm:$0xff]
      %v2607 = vld [vmem:[%s486 + $0x80] sm:$0xff]
      %v2608 = vld [vmem:[%s486 + $0x88] sm:$0xff]
      %v2609 = vld [vmem:[%s486 + $0x90] sm:$0xff]
      %v2610 = vld [vmem:[%s486 + $0x98] sm:$0xff]
      %v2611 = vld [vmem:[%s486 + $0xa0] sm:$0xff]
      %v2612 = vld [vmem:[%s486 + $0xa8] sm:$0xff]
      %v2613 = vld [vmem:[%s486 + $0xb0] sm:$0xff]
      %v2614 = vld [vmem:[%s486 + $0xb8] sm:$0xff]
      %v2615 = vld [vmem:[%s486 + $0xc0] sm:$0xff]
      %v2616 = vld [vmem:[%s486 + $0xc8] sm:$0xff]
      %v2617 = vld [vmem:[%s486 + $0xd0] sm:$0xff]
      %v2618 = vld [vmem:[%s486 + $0xd8] sm:$0xff]
      %v2619 = vld [vmem:[%s486 + $0xe0] sm:$0xff]
      %v2620 = vld [vmem:[%s486 + $0xe8] sm:$0xff]
      %v2621 = vld [vmem:[%s486 + $0xf0] sm:$0xff]
      %v2622 = vld [vmem:[%s486 + $0xf8] sm:$0xff]
      %v2623 = vld [vmem:[%s486 + $0x100] sm:$0xff]
      %v2624 = vld [vmem:[%s486 + $0x108] sm:$0xff]
      %v2625 = vld [vmem:[%s486 + $0x110] sm:$0xff]
      %v2626 = vld [vmem:[%s486 + $0x118] sm:$0xff]
      %v2627 = vld [vmem:[%s486 + $0x120] sm:$0xff]
      %v2628 = vld [vmem:[%s486 + $0x128] sm:$0xff]
      %v2629 = vld [vmem:[%s486 + $0x130] sm:$0xff]
      %v2630 = vld [vmem:[%s486 + $0x138] sm:$0xff]
      %v2631 = vld [vmem:[%s486 + $0x140] sm:$0xff]
      %v2632 = vld [vmem:[%s486 + $0x148] sm:$0xff]
      %v2633 = vld [vmem:[%s486 + $0x150] sm:$0xff]
      %v2634 = vld [vmem:[%s486 + $0x158] sm:$0xff]
      %v2635 = vld [vmem:[%s486 + $0x160] sm:$0xff]
      %v2636 = vld [vmem:[%s486 + $0x168] sm:$0xff]
      %v2637 = vld [vmem:[%s486 + $0x170] sm:$0xff]
      %v2638 = vld [vmem:[%s486 + $0x178] sm:$0xff]
      %v2639 = vld [vmem:[%s486 + $0x180] sm:$0xff]
      %v2640 = vld [vmem:[%s486 + $0x188] sm:$0xff]
      %v2641 = vld [vmem:[%s486 + $0x190] sm:$0xff]
      %v2642 = vld [vmem:[%s486 + $0x198] sm:$0xff]
      %v2643 = vld [vmem:[%s486 + $0x1a0] sm:$0xff]
      %v2644 = vld [vmem:[%s486 + $0x1a8] sm:$0xff]
      %v2645 = vld [vmem:[%s486 + $0x1b0] sm:$0xff]
      %v2646 = vld [vmem:[%s486 + $0x1b8] sm:$0xff]
      %v2647 = vld [vmem:[%s486 + $0x1c0] sm:$0xff]
      %v2648 = vld [vmem:[%s486 + $0x1c8] sm:$0xff]
      %v2649 = vld [vmem:[%s486 + $0x1d0] sm:$0xff]
      %v2650 = vld [vmem:[%s486 + $0x1d8] sm:$0xff]
      %v2651 = vld [vmem:[%s486 + $0x1e0] sm:$0xff]
      %v2652 = vld [vmem:[%s486 + $0x1e8] sm:$0xff]
      %v2653 = vld [vmem:[%s486 + $0x1f0] sm:$0xff]
      %v2654 = vld [vmem:[%s486 + $0x1f8] sm:$0xff]
      %v2655 = vld [vmem:[%s486 + $0x200] sm:$0xff]
      %v2656 = vld [vmem:[%s486 + $0x208] sm:$0xff]
      %v2657 = vld [vmem:[%s486 + $0x210] sm:$0xff]
      %v2658 = vld [vmem:[%s486 + $0x218] sm:$0xff]
      %v2659 = vld [vmem:[%s486 + $0x220] sm:$0xff]
      %v2660 = vld [vmem:[%s486 + $0x228] sm:$0xff]
      %v2661 = vld [vmem:[%s486 + $0x230] sm:$0xff]
      %v2662 = vld [vmem:[%s486 + $0x238] sm:$0xff]
      %v2663 = vld [vmem:[%s486 + $0x240] sm:$0xff]
      %v2664 = vld [vmem:[%s486 + $0x248] sm:$0xff]
      %v2665 = vld [vmem:[%s486 + $0x250] sm:$0xff]
      %v2666 = vld [vmem:[%s486 + $0x258] sm:$0xff]
      %v2667 = vld [vmem:[%s486 + $0x260] sm:$0xff]
      %v2668 = vld [vmem:[%s486 + $0x268] sm:$0xff]
      %v2669 = vld [vmem:[%s486 + $0x270] sm:$0xff]
      %v2670 = vld [vmem:[%s486 + $0x278] sm:$0xff]
      %v2671 = vld [vmem:[%s486 + $0x280] sm:$0xff]
      %v2672 = vld [vmem:[%s486 + $0x288] sm:$0xff]
      %v2673 = vld [vmem:[%s486 + $0x290] sm:$0xff]
      %v2674 = vld [vmem:[%s486 + $0x298] sm:$0xff]
      %v2675 = vld [vmem:[%s486 + $0x2a0] sm:$0xff]
      %v2676 = vld [vmem:[%s486 + $0x2a8] sm:$0xff]
      %v2677 = vld [vmem:[%s486 + $0x2b0] sm:$0xff]
      %v2678 = vld [vmem:[%s486 + $0x2b8] sm:$0xff]
      %v2679 = vld [vmem:[%s486 + $0x2c0] sm:$0xff]
      %v2680 = vld [vmem:[%s486 + $0x2c8] sm:$0xff]
      %v2681 = vld [vmem:[%s486 + $0x2d0] sm:$0xff]
      %v2682 = vld [vmem:[%s486 + $0x2d8] sm:$0xff]
      %v2683 = vld [vmem:[%s486 + $0x2e0] sm:$0xff]
      %v2684 = vld [vmem:[%s486 + $0x2e8] sm:$0xff]
      %v2685 = vld [vmem:[%s486 + $0x2f0] sm:$0xff]
      %v2686 = vld [vmem:[%s486 + $0x2f8] sm:$0xff]
      %v2687 = vld [vmem:[%s486 + $0x300] sm:$0xff]
      %v2688 = vld [vmem:[%s486 + $0x308] sm:$0xff]
      %v2689 = vld [vmem:[%s486 + $0x310] sm:$0xff]
      %v2690 = vld [vmem:[%s486 + $0x318] sm:$0xff]
      %v2691 = vld [vmem:[%s486 + $0x320] sm:$0xff]
      %v2692 = vld [vmem:[%s486 + $0x328] sm:$0xff]
      %v2693 = vld [vmem:[%s486 + $0x330] sm:$0xff]
      %v2694 = vld [vmem:[%s486 + $0x338] sm:$0xff]
      %v2695 = vld [vmem:[%s486 + $0x340] sm:$0xff]
      %v2696 = vld [vmem:[%s486 + $0x348] sm:$0xff]
      %v2697 = vld [vmem:[%s486 + $0x350] sm:$0xff]
      %v2698 = vld [vmem:[%s486 + $0x358] sm:$0xff]
      %v2699 = vld [vmem:[%s486 + $0x360] sm:$0xff]
      %v2700 = vld [vmem:[%s486 + $0x368] sm:$0xff]
      %v2701 = vld [vmem:[%s486 + $0x370] sm:$0xff]
      %v2702 = vld [vmem:[%s486 + $0x378] sm:$0xff]
      %v2703 = vld [vmem:[%s486 + $0x380] sm:$0xff]
      %v2704 = vld [vmem:[%s486 + $0x388] sm:$0xff]
      %v2705 = vld [vmem:[%s486 + $0x390] sm:$0xff]
      %v2706 = vld [vmem:[%s486 + $0x398] sm:$0xff]
      %v2707 = vld [vmem:[%s486 + $0x3a0] sm:$0xff]
      %v2708 = vld [vmem:[%s486 + $0x3a8] sm:$0xff]
      %v2709 = vld [vmem:[%s486 + $0x3b0] sm:$0xff]
      %v2710 = vld [vmem:[%s486 + $0x3b8] sm:$0xff]
      %v2711 = vld [vmem:[%s486 + $0x3c0] sm:$0xff]
      %v2712 = vld [vmem:[%s486 + $0x3c8] sm:$0xff]
      %v2713 = vld [vmem:[%s486 + $0x3d0] sm:$0xff]
      %v2714 = vld [vmem:[%s486 + $0x3d8] sm:$0xff]
      %v2715 = vld [vmem:[%s486 + $0x3e0] sm:$0xff]
      %v2716 = vld [vmem:[%s486 + $0x3e8] sm:$0xff]
      %v2717 = vld [vmem:[%s486 + $0x3f0] sm:$0xff]
      %v2718 = vld [vmem:[%s486 + $0x3f8] sm:$0xff]
      %v2719 = vld [vmem:[%s490] sm:$0xf]
      %v2721 = vlaneseq
      %v2722 = vshrl.u32 %v2721, 7
      %v2723 = vsub.s32 0, %v2722
      %v2724 = vrot.slane %v2719, %v2723
      %v2725 = vlaneseq
      %v2726 = vshrl.u32 %v2725, 7
      %v2727 = vsub.s32 1, %v2726
      %v2728 = vrot.slane %v2719, %v2727
      %v2729 = vlaneseq
      %v2730 = vshrl.u32 %v2729, 7
      %v2731 = vsub.s32 2, %v2730
      %v2732 = vrot.slane %v2719, %v2731
      %v2733 = vlaneseq
      %v2734 = vshrl.u32 %v2733, 7
      %v2735 = vsub.s32 3, %v2734
      %v2736 = vrot.slane %v2719, %v2735
      %v2869 = vunpack.c.l.b16 %v2591
      %v2870 = vunpack.c.h.b16 %v2591
      %v2871 = vunpack.c.l.b16 %v2592
      %v2872 = vunpack.c.h.b16 %v2592
      %v2873 = vunpack.c.l.b16 %v2593
      %v2874 = vunpack.c.h.b16 %v2593
      %v2875 = vunpack.c.l.b16 %v2594
      %v2876 = vunpack.c.h.b16 %v2594
      %v2877 = vunpack.c.l.b16 %v2595
      %v2878 = vunpack.c.h.b16 %v2595
      %v2879 = vunpack.c.l.b16 %v2596
      %v2880 = vunpack.c.h.b16 %v2596
      %v2881 = vunpack.c.l.b16 %v2597
      %v2882 = vunpack.c.h.b16 %v2597
      %v2883 = vunpack.c.l.b16 %v2598
      %v2884 = vunpack.c.h.b16 %v2598
      %v2885 = vunpack.c.l.b16 %v2599
      %v2886 = vunpack.c.h.b16 %v2599
      %v2887 = vunpack.c.l.b16 %v2600
      %v2888 = vunpack.c.h.b16 %v2600
      %v2889 = vunpack.c.l.b16 %v2601
      %v2890 = vunpack.c.h.b16 %v2601
      %v2891 = vunpack.c.l.b16 %v2602
      %v2892 = vunpack.c.h.b16 %v2602
      %v2893 = vunpack.c.l.b16 %v2603
      %v2894 = vunpack.c.h.b16 %v2603
      %v2895 = vunpack.c.l.b16 %v2604
      %v2896 = vunpack.c.h.b16 %v2604
      %v2897 = vunpack.c.l.b16 %v2605
      %v2898 = vunpack.c.h.b16 %v2605
      %v2899 = vunpack.c.l.b16 %v2606
      %v2900 = vunpack.c.h.b16 %v2606
      %v2901 = vunpack.c.l.b16 %v2607
      %v2902 = vunpack.c.h.b16 %v2607
      %v2903 = vunpack.c.l.b16 %v2608
      %v2904 = vunpack.c.h.b16 %v2608
      %v2905 = vunpack.c.l.b16 %v2609
      %v2906 = vunpack.c.h.b16 %v2609
      %v2907 = vunpack.c.l.b16 %v2610
      %v2908 = vunpack.c.h.b16 %v2610
      %v2909 = vunpack.c.l.b16 %v2611
      %v2910 = vunpack.c.h.b16 %v2611
      %v2911 = vunpack.c.l.b16 %v2612
      %v2912 = vunpack.c.h.b16 %v2612
      %v2913 = vunpack.c.l.b16 %v2613
      %v2914 = vunpack.c.h.b16 %v2613
      %v2915 = vunpack.c.l.b16 %v2614
      %v2916 = vunpack.c.h.b16 %v2614
      %v2917 = vunpack.c.l.b16 %v2615
      %v2918 = vunpack.c.h.b16 %v2615
      %v2919 = vunpack.c.l.b16 %v2616
      %v2920 = vunpack.c.h.b16 %v2616
      %v2921 = vunpack.c.l.b16 %v2617
      %v2922 = vunpack.c.h.b16 %v2617
      %v2923 = vunpack.c.l.b16 %v2618
      %v2924 = vunpack.c.h.b16 %v2618
      %v2925 = vunpack.c.l.b16 %v2619
      %v2926 = vunpack.c.h.b16 %v2619
      %v2927 = vunpack.c.l.b16 %v2620
      %v2928 = vunpack.c.h.b16 %v2620
      %v2929 = vunpack.c.l.b16 %v2621
      %v2930 = vunpack.c.h.b16 %v2621
      %v2931 = vunpack.c.l.b16 %v2622
      %v2932 = vunpack.c.h.b16 %v2622
      %v2933 = vunpack.c.l.b16 %v2623
      %v2934 = vunpack.c.h.b16 %v2623
      %v2935 = vunpack.c.l.b16 %v2624
      %v2936 = vunpack.c.h.b16 %v2624
      %v2937 = vunpack.c.l.b16 %v2625
      %v2938 = vunpack.c.h.b16 %v2625
      %v2939 = vunpack.c.l.b16 %v2626
      %v2940 = vunpack.c.h.b16 %v2626
      %v2941 = vunpack.c.l.b16 %v2627
      %v2942 = vunpack.c.h.b16 %v2627
      %v2943 = vunpack.c.l.b16 %v2628
      %v2944 = vunpack.c.h.b16 %v2628
      %v2945 = vunpack.c.l.b16 %v2629
      %v2946 = vunpack.c.h.b16 %v2629
      %v2947 = vunpack.c.l.b16 %v2630
      %v2948 = vunpack.c.h.b16 %v2630
      %v2949 = vunpack.c.l.b16 %v2631
      %v2950 = vunpack.c.h.b16 %v2631
      %v2951 = vunpack.c.l.b16 %v2632
      %v2952 = vunpack.c.h.b16 %v2632
      %v2953 = vunpack.c.l.b16 %v2633
      %v2954 = vunpack.c.h.b16 %v2633
      %v2955 = vunpack.c.l.b16 %v2634
      %v2956 = vunpack.c.h.b16 %v2634
      %v2957 = vunpack.c.l.b16 %v2635
      %v2958 = vunpack.c.h.b16 %v2635
      %v2959 = vunpack.c.l.b16 %v2636
      %v2960 = vunpack.c.h.b16 %v2636
      %v2961 = vunpack.c.l.b16 %v2637
      %v2962 = vunpack.c.h.b16 %v2637
      %v2963 = vunpack.c.l.b16 %v2638
      %v2964 = vunpack.c.h.b16 %v2638
      %v2965 = vunpack.c.l.b16 %v2639
      %v2966 = vunpack.c.h.b16 %v2639
      %v2967 = vunpack.c.l.b16 %v2640
      %v2968 = vunpack.c.h.b16 %v2640
      %v2969 = vunpack.c.l.b16 %v2641
      %v2970 = vunpack.c.h.b16 %v2641
      %v2971 = vunpack.c.l.b16 %v2642
      %v2972 = vunpack.c.h.b16 %v2642
      %v2973 = vunpack.c.l.b16 %v2643
      %v2974 = vunpack.c.h.b16 %v2643
      %v2975 = vunpack.c.l.b16 %v2644
      %v2976 = vunpack.c.h.b16 %v2644
      %v2977 = vunpack.c.l.b16 %v2645
      %v2978 = vunpack.c.h.b16 %v2645
      %v2979 = vunpack.c.l.b16 %v2646
      %v2980 = vunpack.c.h.b16 %v2646
      %v2981 = vunpack.c.l.b16 %v2647
      %v2982 = vunpack.c.h.b16 %v2647
      %v2983 = vunpack.c.l.b16 %v2648
      %v2984 = vunpack.c.h.b16 %v2648
      %v2985 = vunpack.c.l.b16 %v2649
      %v2986 = vunpack.c.h.b16 %v2649
      %v2987 = vunpack.c.l.b16 %v2650
      %v2988 = vunpack.c.h.b16 %v2650
      %v2989 = vunpack.c.l.b16 %v2651
      %v2990 = vunpack.c.h.b16 %v2651
      %v2991 = vunpack.c.l.b16 %v2652
      %v2992 = vunpack.c.h.b16 %v2652
      %v2993 = vunpack.c.l.b16 %v2653
      %v2994 = vunpack.c.h.b16 %v2653
      %v2995 = vunpack.c.l.b16 %v2654
      %v2996 = vunpack.c.h.b16 %v2654
      %v2997 = vunpack.c.l.b16 %v2655
      %v2998 = vunpack.c.h.b16 %v2655
      %v2999 = vunpack.c.l.b16 %v2656
      %v3000 = vunpack.c.h.b16 %v2656
      %v3001 = vunpack.c.l.b16 %v2657
      %v3002 = vunpack.c.h.b16 %v2657
      %v3003 = vunpack.c.l.b16 %v2658
      %v3004 = vunpack.c.h.b16 %v2658
      %v3005 = vunpack.c.l.b16 %v2659
      %v3006 = vunpack.c.h.b16 %v2659
      %v3007 = vunpack.c.l.b16 %v2660
      %v3008 = vunpack.c.h.b16 %v2660
      %v3009 = vunpack.c.l.b16 %v2661
      %v3010 = vunpack.c.h.b16 %v2661
      %v3011 = vunpack.c.l.b16 %v2662
      %v3012 = vunpack.c.h.b16 %v2662
      %v3013 = vunpack.c.l.b16 %v2663
      %v3014 = vunpack.c.h.b16 %v2663
      %v3015 = vunpack.c.l.b16 %v2664
      %v3016 = vunpack.c.h.b16 %v2664
      %v3017 = vunpack.c.l.b16 %v2665
      %v3018 = vunpack.c.h.b16 %v2665
      %v3019 = vunpack.c.l.b16 %v2666
      %v3020 = vunpack.c.h.b16 %v2666
      %v3021 = vunpack.c.l.b16 %v2667
      %v3022 = vunpack.c.h.b16 %v2667
      %v3023 = vunpack.c.l.b16 %v2668
      %v3024 = vunpack.c.h.b16 %v2668
      %v3025 = vunpack.c.l.b16 %v2669
      %v3026 = vunpack.c.h.b16 %v2669
      %v3027 = vunpack.c.l.b16 %v2670
      %v3028 = vunpack.c.h.b16 %v2670
      %v3029 = vunpack.c.l.b16 %v2671
      %v3030 = vunpack.c.h.b16 %v2671
      %v3031 = vunpack.c.l.b16 %v2672
      %v3032 = vunpack.c.h.b16 %v2672
      %v3033 = vunpack.c.l.b16 %v2673
      %v3034 = vunpack.c.h.b16 %v2673
      %v3035 = vunpack.c.l.b16 %v2674
      %v3036 = vunpack.c.h.b16 %v2674
      %v3037 = vunpack.c.l.b16 %v2675
      %v3038 = vunpack.c.h.b16 %v2675
      %v3039 = vunpack.c.l.b16 %v2676
      %v3040 = vunpack.c.h.b16 %v2676
      %v3041 = vunpack.c.l.b16 %v2677
      %v3042 = vunpack.c.h.b16 %v2677
      %v3043 = vunpack.c.l.b16 %v2678
      %v3044 = vunpack.c.h.b16 %v2678
      %v3045 = vunpack.c.l.b16 %v2679
      %v3046 = vunpack.c.h.b16 %v2679
      %v3047 = vunpack.c.l.b16 %v2680
      %v3048 = vunpack.c.h.b16 %v2680
      %v3049 = vunpack.c.l.b16 %v2681
      %v3050 = vunpack.c.h.b16 %v2681
      %v3051 = vunpack.c.l.b16 %v2682
      %v3052 = vunpack.c.h.b16 %v2682
      %v3053 = vunpack.c.l.b16 %v2683
      %v3054 = vunpack.c.h.b16 %v2683
      %v3055 = vunpack.c.l.b16 %v2684
      %v3056 = vunpack.c.h.b16 %v2684
      %v3057 = vunpack.c.l.b16 %v2685
      %v3058 = vunpack.c.h.b16 %v2685
      %v3059 = vunpack.c.l.b16 %v2686
      %v3060 = vunpack.c.h.b16 %v2686
      %v3061 = vunpack.c.l.b16 %v2687
      %v3062 = vunpack.c.h.b16 %v2687
      %v3063 = vunpack.c.l.b16 %v2688
      %v3064 = vunpack.c.h.b16 %v2688
      %v3065 = vunpack.c.l.b16 %v2689
      %v3066 = vunpack.c.h.b16 %v2689
      %v3067 = vunpack.c.l.b16 %v2690
      %v3068 = vunpack.c.h.b16 %v2690
      %v3069 = vunpack.c.l.b16 %v2691
      %v3070 = vunpack.c.h.b16 %v2691
      %v3071 = vunpack.c.l.b16 %v2692
      %v3072 = vunpack.c.h.b16 %v2692
      %v3073 = vunpack.c.l.b16 %v2693
      %v3074 = vunpack.c.h.b16 %v2693
      %v3075 = vunpack.c.l.b16 %v2694
      %v3076 = vunpack.c.h.b16 %v2694
      %v3077 = vunpack.c.l.b16 %v2695
      %v3078 = vunpack.c.h.b16 %v2695
      %v3079 = vunpack.c.l.b16 %v2696
      %v3080 = vunpack.c.h.b16 %v2696
      %v3081 = vunpack.c.l.b16 %v2697
      %v3082 = vunpack.c.h.b16 %v2697
      %v3083 = vunpack.c.l.b16 %v2698
      %v3084 = vunpack.c.h.b16 %v2698
      %v3085 = vunpack.c.l.b16 %v2699
      %v3086 = vunpack.c.h.b16 %v2699
      %v3087 = vunpack.c.l.b16 %v2700
      %v3088 = vunpack.c.h.b16 %v2700
      %v3089 = vunpack.c.l.b16 %v2701
      %v3090 = vunpack.c.h.b16 %v2701
      %v3091 = vunpack.c.l.b16 %v2702
      %v3092 = vunpack.c.h.b16 %v2702
      %v3093 = vunpack.c.l.b16 %v2703
      %v3094 = vunpack.c.h.b16 %v2703
      %v3095 = vunpack.c.l.b16 %v2704
      %v3096 = vunpack.c.h.b16 %v2704
      %v3097 = vunpack.c.l.b16 %v2705
      %v3098 = vunpack.c.h.b16 %v2705
      %v3099 = vunpack.c.l.b16 %v2706
      %v3100 = vunpack.c.h.b16 %v2706
      %v3101 = vunpack.c.l.b16 %v2707
      %v3102 = vunpack.c.h.b16 %v2707
      %v3103 = vunpack.c.l.b16 %v2708
      %v3104 = vunpack.c.h.b16 %v2708
      %v3105 = vunpack.c.l.b16 %v2709
      %v3106 = vunpack.c.h.b16 %v2709
      %v3107 = vunpack.c.l.b16 %v2710
      %v3108 = vunpack.c.h.b16 %v2710
      %v3109 = vunpack.c.l.b16 %v2711
      %v3110 = vunpack.c.h.b16 %v2711
      %v3111 = vunpack.c.l.b16 %v2712
      %v3112 = vunpack.c.h.b16 %v2712
      %v3113 = vunpack.c.l.b16 %v2713
      %v3114 = vunpack.c.h.b16 %v2713
      %v3115 = vunpack.c.l.b16 %v2714
      %v3116 = vunpack.c.h.b16 %v2714
      %v3117 = vunpack.c.l.b16 %v2715
      %v3118 = vunpack.c.h.b16 %v2715
      %v3119 = vunpack.c.l.b16 %v2716
      %v3120 = vunpack.c.h.b16 %v2716
      %v3121 = vunpack.c.l.b16 %v2717
      %v3122 = vunpack.c.h.b16 %v2717
      %v3123 = vunpack.c.l.b16 %v2718
      %v3124 = vunpack.c.h.b16 %v2718
      %v3125 = vpack.c.b16 %v2873, %v2869
      %v3126 = vpack.c.b16 %v2874, %v2870
      %v3127 = vpack.c.b16 %v2875, %v2871
      %v3128 = vpack.c.b16 %v2876, %v2872
      %v3129 = vpack.c.b16 %v2881, %v2877
      %v3130 = vpack.c.b16 %v2882, %v2878
      %v3131 = vpack.c.b16 %v2883, %v2879
      %v3132 = vpack.c.b16 %v2884, %v2880
      %v3133 = vpack.c.b16 %v2889, %v2885
      %v3134 = vpack.c.b16 %v2890, %v2886
      %v3135 = vpack.c.b16 %v2891, %v2887
      %v3136 = vpack.c.b16 %v2892, %v2888
      %v3137 = vpack.c.b16 %v2897, %v2893
      %v3138 = vpack.c.b16 %v2898, %v2894
      %v3139 = vpack.c.b16 %v2899, %v2895
      %v3140 = vpack.c.b16 %v2900, %v2896
      %v3141 = vpack.c.b16 %v2905, %v2901
      %v3142 = vpack.c.b16 %v2906, %v2902
      %v3143 = vpack.c.b16 %v2907, %v2903
      %v3144 = vpack.c.b16 %v2908, %v2904
      %v3145 = vpack.c.b16 %v2913, %v2909
      %v3146 = vpack.c.b16 %v2914, %v2910
      %v3147 = vpack.c.b16 %v2915, %v2911
      %v3148 = vpack.c.b16 %v2916, %v2912
      %v3149 = vpack.c.b16 %v2921, %v2917
      %v3150 = vpack.c.b16 %v2922, %v2918
      %v3151 = vpack.c.b16 %v2923, %v2919
      %v3152 = vpack.c.b16 %v2924, %v2920
      %v3153 = vpack.c.b16 %v2929, %v2925
      %v3154 = vpack.c.b16 %v2930, %v2926
      %v3155 = vpack.c.b16 %v2931, %v2927
      %v3156 = vpack.c.b16 %v2932, %v2928
      %v3157 = vpack.c.b16 %v2937, %v2933
      %v3158 = vpack.c.b16 %v2938, %v2934
      %v3159 = vpack.c.b16 %v2939, %v2935
      %v3160 = vpack.c.b16 %v2940, %v2936
      %v3161 = vpack.c.b16 %v2945, %v2941
      %v3162 = vpack.c.b16 %v2946, %v2942
      %v3163 = vpack.c.b16 %v2947, %v2943
      %v3164 = vpack.c.b16 %v2948, %v2944
      %v3165 = vpack.c.b16 %v2953, %v2949
      %v3166 = vpack.c.b16 %v2954, %v2950
      %v3167 = vpack.c.b16 %v2955, %v2951
      %v3168 = vpack.c.b16 %v2956, %v2952
      %v3169 = vpack.c.b16 %v2961, %v2957
      %v3170 = vpack.c.b16 %v2962, %v2958
      %v3171 = vpack.c.b16 %v2963, %v2959
      %v3172 = vpack.c.b16 %v2964, %v2960
      %v3173 = vpack.c.b16 %v2969, %v2965
      %v3174 = vpack.c.b16 %v2970, %v2966
      %v3175 = vpack.c.b16 %v2971, %v2967
      %v3176 = vpack.c.b16 %v2972, %v2968
      %v3177 = vpack.c.b16 %v2977, %v2973
      %v3178 = vpack.c.b16 %v2978, %v2974
      %v3179 = vpack.c.b16 %v2979, %v2975
      %v3180 = vpack.c.b16 %v2980, %v2976
      %v3181 = vpack.c.b16 %v2985, %v2981
      %v3182 = vpack.c.b16 %v2986, %v2982
      %v3183 = vpack.c.b16 %v2987, %v2983
      %v3184 = vpack.c.b16 %v2988, %v2984
      %v3185 = vpack.c.b16 %v2993, %v2989
      %v3186 = vpack.c.b16 %v2994, %v2990
      %v3187 = vpack.c.b16 %v2995, %v2991
      %v3188 = vpack.c.b16 %v2996, %v2992
      %v3189 = vpack.c.b16 %v3001, %v2997
      %v3190 = vpack.c.b16 %v3002, %v2998
      %v3191 = vpack.c.b16 %v3003, %v2999
      %v3192 = vpack.c.b16 %v3004, %v3000
      %v3193 = vpack.c.b16 %v3009, %v3005
      %v3194 = vpack.c.b16 %v3010, %v3006
      %v3195 = vpack.c.b16 %v3011, %v3007
      %v3196 = vpack.c.b16 %v3012, %v3008
      %v3197 = vpack.c.b16 %v3017, %v3013
      %v3198 = vpack.c.b16 %v3018, %v3014
      %v3199 = vpack.c.b16 %v3019, %v3015
      %v3200 = vpack.c.b16 %v3020, %v3016
      %v3201 = vpack.c.b16 %v3025, %v3021
      %v3202 = vpack.c.b16 %v3026, %v3022
      %v3203 = vpack.c.b16 %v3027, %v3023
      %v3204 = vpack.c.b16 %v3028, %v3024
      %v3205 = vpack.c.b16 %v3033, %v3029
      %v3206 = vpack.c.b16 %v3034, %v3030
      %v3207 = vpack.c.b16 %v3035, %v3031
      %v3208 = vpack.c.b16 %v3036, %v3032
      %v3209 = vpack.c.b16 %v3041, %v3037
      %v3210 = vpack.c.b16 %v3042, %v3038
      %v3211 = vpack.c.b16 %v3043, %v3039
      %v3212 = vpack.c.b16 %v3044, %v3040
      %v3213 = vpack.c.b16 %v3049, %v3045
      %v3214 = vpack.c.b16 %v3050, %v3046
      %v3215 = vpack.c.b16 %v3051, %v3047
      %v3216 = vpack.c.b16 %v3052, %v3048
      %v3217 = vpack.c.b16 %v3057, %v3053
      %v3218 = vpack.c.b16 %v3058, %v3054
      %v3219 = vpack.c.b16 %v3059, %v3055
      %v3220 = vpack.c.b16 %v3060, %v3056
      %v3221 = vpack.c.b16 %v3065, %v3061
      %v3222 = vpack.c.b16 %v3066, %v3062
      %v3223 = vpack.c.b16 %v3067, %v3063
      %v3224 = vpack.c.b16 %v3068, %v3064
      %v3225 = vpack.c.b16 %v3073, %v3069
      %v3226 = vpack.c.b16 %v3074, %v3070
      %v3227 = vpack.c.b16 %v3075, %v3071
      %v3228 = vpack.c.b16 %v3076, %v3072
      %v3229 = vpack.c.b16 %v3081, %v3077
      %v3230 = vpack.c.b16 %v3082, %v3078
      %v3231 = vpack.c.b16 %v3083, %v3079
      %v3232 = vpack.c.b16 %v3084, %v3080
      %v3233 = vpack.c.b16 %v3089, %v3085
      %v3234 = vpack.c.b16 %v3090, %v3086
      %v3235 = vpack.c.b16 %v3091, %v3087
      %v3236 = vpack.c.b16 %v3092, %v3088
      %v3237 = vpack.c.b16 %v3097, %v3093
      %v3238 = vpack.c.b16 %v3098, %v3094
      %v3239 = vpack.c.b16 %v3099, %v3095
      %v3240 = vpack.c.b16 %v3100, %v3096
      %v3241 = vpack.c.b16 %v3105, %v3101
      %v3242 = vpack.c.b16 %v3106, %v3102
      %v3243 = vpack.c.b16 %v3107, %v3103
      %v3244 = vpack.c.b16 %v3108, %v3104
      %v3245 = vpack.c.b16 %v3113, %v3109
      %v3246 = vpack.c.b16 %v3114, %v3110
      %v3247 = vpack.c.b16 %v3115, %v3111
      %v3248 = vpack.c.b16 %v3116, %v3112
      %v3249 = vpack.c.b16 %v3121, %v3117
      %v3250 = vpack.c.b16 %v3122, %v3118
      %v3251 = vpack.c.b16 %v3123, %v3119
      %v3252 = vpack.c.b16 %v3124, %v3120
      %3381 = vmatprep.subr.bf16.mxu0 %v3126
      %3382 = vmatpush1.bf16.msra.mxu0 %v3125
      %3383 = vmatprep.subr.bf16.mxu0 %v3130
      %3384 = vmatpush1.bf16.msra.mxu0 %v3129
      %3385 = vmatprep.subr.bf16.mxu0 %v3134
      %3386 = vmatpush1.bf16.msra.mxu0 %v3133
      %3387 = vmatprep.subr.bf16.mxu0 %v3138
      %3388 = vmatpush1.bf16.msra.mxu0 %v3137
      %3389 = vmatprep.subr.bf16.mxu0 %v3142
      %3390 = vmatpush1.bf16.msra.mxu0 %v3141
      %3391 = vmatprep.subr.bf16.mxu0 %v3146
      %3392 = vmatpush1.bf16.msra.mxu0 %v3145
      %3393 = vmatprep.subr.bf16.mxu0 %v3150
      %3394 = vmatpush1.bf16.msra.mxu0 %v3149
      %3395 = vmatprep.subr.bf16.mxu0 %v3154
      %3396 = vmatpush1.bf16.msra.mxu0 %v3153
      %3397 = vmatprep.subr.bf16.mxu0 %v3158
      %3398 = vmatpush1.bf16.msra.mxu0 %v3157
      %3399 = vmatprep.subr.bf16.mxu0 %v3162
      %3400 = vmatpush1.bf16.msra.mxu0 %v3161
      %3401 = vmatprep.subr.bf16.mxu0 %v3166
      %3402 = vmatpush1.bf16.msra.mxu0 %v3165
      %3403 = vmatprep.subr.bf16.mxu0 %v3170
      %3404 = vmatpush1.bf16.msra.mxu0 %v3169
      %3405 = vmatprep.subr.bf16.mxu0 %v3174
      %3406 = vmatpush1.bf16.msra.mxu0 %v3173
      %3407 = vmatprep.subr.bf16.mxu0 %v3178
      %3408 = vmatpush1.bf16.msra.mxu0 %v3177
      %3409 = vmatprep.subr.bf16.mxu0 %v3182
      %3410 = vmatpush1.bf16.msra.mxu0 %v3181
      %3411 = vmatprep.subr.bf16.mxu0 %v3186
      %3412 = vmatpush1.bf16.msra.mxu0 %v3185
      %3413 = vmatprep.mubr.bf16.mxu0 %v2588
      %3414 = vmatmul.mubr.bf16.gmra.mrb[0].mxu0 %v2587
      %v3415 = vpop.f32.mrb[0].mxu0
      %v3416 = vadd.f32 %v2724, %v3415
      %v3417 = vpop.f32.mrb[0].mxu0
      %v3418 = vadd.f32 %v2728, %v3417
      %v3419 = vpop.f32.mrb[0].mxu0
      %v3420 = vpop.f32.mrb[0].mxu0
      %3421 = vdwg.mxu0
      %3422 = vmatprep.subr.bf16.mxu0 %v3190
      %3423 = vmatpush1.bf16.msra.mxu0 %v3189
      %3424 = vmatprep.subr.bf16.mxu0 %v3194
      %3425 = vmatpush1.bf16.msra.mxu0 %v3193
      %3426 = vmatprep.subr.bf16.mxu0 %v3198
      %3427 = vmatpush1.bf16.msra.mxu0 %v3197
      %3428 = vmatprep.subr.bf16.mxu0 %v3202
      %3429 = vmatpush1.bf16.msra.mxu0 %v3201
      %3430 = vmatprep.subr.bf16.mxu0 %v3206
      %3431 = vmatpush1.bf16.msra.mxu0 %v3205
      %3432 = vmatprep.subr.bf16.mxu0 %v3210
      %3433 = vmatpush1.bf16.msra.mxu0 %v3209
      %3434 = vmatprep.subr.bf16.mxu0 %v3214
      %3435 = vmatpush1.bf16.msra.mxu0 %v3213
      %3436 = vmatprep.subr.bf16.mxu0 %v3218
      %3437 = vmatpush1.bf16.msra.mxu0 %v3217
      %3438 = vmatprep.subr.bf16.mxu0 %v3222
      %3439 = vmatpush1.bf16.msra.mxu0 %v3221
      %3440 = vmatprep.subr.bf16.mxu0 %v3226
      %3441 = vmatpush1.bf16.msra.mxu0 %v3225
      %3442 = vmatprep.subr.bf16.mxu0 %v3230
      %3443 = vmatpush1.bf16.msra.mxu0 %v3229
      %3444 = vmatprep.subr.bf16.mxu0 %v3234
      %3445 = vmatpush1.bf16.msra.mxu0 %v3233
      %3446 = vmatprep.subr.bf16.mxu0 %v3238
      %3447 = vmatpush1.bf16.msra.mxu0 %v3237
      %3448 = vmatprep.subr.bf16.mxu0 %v3242
      %3449 = vmatpush1.bf16.msra.mxu0 %v3241
      %3450 = vmatprep.subr.bf16.mxu0 %v3246
      %3451 = vmatpush1.bf16.msra.mxu0 %v3245
      %3452 = vmatprep.subr.bf16.mxu0 %v3250
      %3453 = vmatpush1.bf16.msra.mxu0 %v3249
      %3454 = vmatprep.mubr.bf16.mxu0 %v2590
      %3455 = vmatmul.mubr.bf16.gmra.mrb[0].mxu0 %v2589
      %v3456 = vpop.f32.mrb[0].mxu0
      %v3457 = vadd.f32 %v3416, %v3456
      %v3458 = vpop.f32.mrb[0].mxu0
      %v3459 = vadd.f32 %v3418, %v3458
      %v3460 = vpop.f32.mrb[0].mxu0
      %v3461 = vpop.f32.mrb[0].mxu0
      %3462 = vdwg.mxu0
      %3463 = vmatprep.subr.bf16.mxu0 %v3128
      %3464 = vmatpush1.bf16.msra.mxu0 %v3127
      %3465 = vmatprep.subr.bf16.mxu0 %v3132
      %3466 = vmatpush1.bf16.msra.mxu0 %v3131
      %3467 = vmatprep.subr.bf16.mxu0 %v3136
      %3468 = vmatpush1.bf16.msra.mxu0 %v3135
      %3469 = vmatprep.subr.bf16.mxu0 %v3140
      %3470 = vmatpush1.bf16.msra.mxu0 %v3139
      %3471 = vmatprep.subr.bf16.mxu0 %v3144
      %3472 = vmatpush1.bf16.msra.mxu0 %v3143
      %3473 = vmatprep.subr.bf16.mxu0 %v3148
      %3474 = vmatpush1.bf16.msra.mxu0 %v3147
      %3475 = vmatprep.subr.bf16.mxu0 %v3152
      %3476 = vmatpush1.bf16.msra.mxu0 %v3151
      %3477 = vmatprep.subr.bf16.mxu0 %v3156
      %3478 = vmatpush1.bf16.msra.mxu0 %v3155
      %3479 = vmatprep.subr.bf16.mxu0 %v3160
      %3480 = vmatpush1.bf16.msra.mxu0 %v3159
      %3481 = vmatprep.subr.bf16.mxu0 %v3164
      %3482 = vmatpush1.bf16.msra.mxu0 %v3163
      %3483 = vmatprep.subr.bf16.mxu0 %v3168
      %3484 = vmatpush1.bf16.msra.mxu0 %v3167
      %3485 = vmatprep.subr.bf16.mxu0 %v3172
      %3486 = vmatpush1.bf16.msra.mxu0 %v3171
      %3487 = vmatprep.subr.bf16.mxu0 %v3176
      %3488 = vmatpush1.bf16.msra.mxu0 %v3175
      %3489 = vmatprep.subr.bf16.mxu0 %v3180
      %3490 = vmatpush1.bf16.msra.mxu0 %v3179
      %3491 = vmatprep.subr.bf16.mxu0 %v3184
      %3492 = vmatpush1.bf16.msra.mxu0 %v3183
      %3493 = vmatprep.subr.bf16.mxu0 %v3188
      %3494 = vmatpush1.bf16.msra.mxu0 %v3187
      %3495 = vmatprep.mubr.bf16.mxu0 %v2588
      %3496 = vmatmul.mubr.bf16.gmra.mrb[0].mxu0 %v2587
      %v3497 = vpop.f32.mrb[0].mxu0
      %v3498 = vadd.f32 %v2732, %v3497
      %v3499 = vpop.f32.mrb[0].mxu0
      %v3500 = vadd.f32 %v2736, %v3499
      %v3501 = vpop.f32.mrb[0].mxu0
      %v3502 = vpop.f32.mrb[0].mxu0
      %3503 = vdwg.mxu0
      %3504 = vmatprep.subr.bf16.mxu0 %v3192
      %3505 = vmatpush1.bf16.msra.mxu0 %v3191
      %3506 = vmatprep.subr.bf16.mxu0 %v3196
      %3507 = vmatpush1.bf16.msra.mxu0 %v3195
      %3508 = vmatprep.subr.bf16.mxu0 %v3200
      %3509 = vmatpush1.bf16.msra.mxu0 %v3199
      %3510 = vmatprep.subr.bf16.mxu0 %v3204
      %3511 = vmatpush1.bf16.msra.mxu0 %v3203
      %3512 = vmatprep.subr.bf16.mxu0 %v3208
      %3513 = vmatpush1.bf16.msra.mxu0 %v3207
      %3514 = vmatprep.subr.bf16.mxu0 %v3212
      %3515 = vmatpush1.bf16.msra.mxu0 %v3211
      %3516 = vmatprep.subr.bf16.mxu0 %v3216
      %3517 = vmatpush1.bf16.msra.mxu0 %v3215
      %3518 = vmatprep.subr.bf16.mxu0 %v3220
      %3519 = vmatpush1.bf16.msra.mxu0 %v3219
      %3520 = vmatprep.subr.bf16.mxu0 %v3224
      %3521 = vmatpush1.bf16.msra.mxu0 %v3223
      %3522 = vmatprep.subr.bf16.mxu0 %v3228
      %3523 = vmatpush1.bf16.msra.mxu0 %v3227
      %3524 = vmatprep.subr.bf16.mxu0 %v3232
      %3525 = vmatpush1.bf16.msra.mxu0 %v3231
      %3526 = vmatprep.subr.bf16.mxu0 %v3236
      %3527 = vmatpush1.bf16.msra.mxu0 %v3235
      %3528 = vmatprep.subr.bf16.mxu0 %v3240
      %3529 = vmatpush1.bf16.msra.mxu0 %v3239
      %3530 = vmatprep.subr.bf16.mxu0 %v3244
      %3531 = vmatpush1.bf16.msra.mxu0 %v3243
      %3532 = vmatprep.subr.bf16.mxu0 %v3248
      %3533 = vmatpush1.bf16.msra.mxu0 %v3247
      %3534 = vmatprep.subr.bf16.mxu0 %v3252
      %3535 = vmatpush1.bf16.msra.mxu0 %v3251
      %3536 = vmatprep.mubr.bf16.mxu0 %v2590
      %3537 = vmatmul.mubr.bf16.gmra.mrb[0].mxu0 %v2589
      %v3538 = vpop.f32.mrb[0].mxu0
      %v3539 = vadd.f32 %v3498, %v3538
      %v3540 = vpop.f32.mrb[0].mxu0
      %v3541 = vadd.f32 %v3500, %v3540
      %v3542 = vpop.f32.mrb[0].mxu0
      %v3543 = vpop.f32.mrb[0].mxu0
      %3544 = vdwg.mxu0
      %3545 = vst [vmem:[%s499] sm:$0xff] %v3457
      %3546 = vst [vmem:[%s499 + $0x8] sm:$0xff] %v3459
      %3547 = vst [vmem:[%s499 + $0x10] sm:$0xff] %v3539
      %3548 = vst [vmem:[%s499 + $0x18] sm:$0xff] %v3541
      %p3549 = scmp.lt.s32.totalorder %s24, 1
      %s3550 = scalar_select %p3549, %s24, 1
      %p3551 = scmp.lt.s32.totalorder %s25, 0
      %s3552 = scalar_select %p3551, %s25, 0
      %s3553 = smul.addr %s3552, 4
      %s3554 = smul.addr %s3550, 4
      %s3555 = sadd.s32 %s3553, %s3554
      %s3556 = smul.addr %s3555, 8
      %s3557 = scalar_lea.vmem %s9, %s3556
      // Predicated region
      $region57: #{rnd_forward.7} parent=55 // pred_check
        %p3558 = pneg %p286
      $region58: #{rnd_forward.7} parent=55 // pred_check_branch
        %3560 = sbr.rel (%p3558) target = $region60
      $region59: #{rnd_forward.7} parent=55 // pred_region
        _
      $region60: #{rnd_forward.7} parent=55 // pred_fallthru
        _
    $region56: #{rnd_forward.7} parent=5 // pred_fallthru
      _
    %p3561 = scmp.le.s32.totalorder 2, %s15
    // Predicated region
    $region61: #{rnd_forward.7} parent=5 // pred_check
      %p3562 = pneg %p3561
    $region62: #{rnd_forward.7} parent=5 // pred_check_branch
      %3564 = sbr.rel (%p3562) target = $region64
    $region63: #{rnd_forward.7} parent=5 // pred_region
      %s3565 = ssub.s32 %s15, 2
      // Predicated region
      $region65: #{rnd_forward.7} parent=63 // pred_check
        %p3566 = pneg %p292
      $region66: #{rnd_forward.7} parent=63 // pred_check_branch
        %3568 = sbr.rel (%p3566) target = $region68
      $region67: #{rnd_forward.7} parent=63 // pred_region
        %p3569 = scmp.lt.s32.totalorder %s26, 1
        %s3570 = scalar_select %p3569, %s26, 1
        %p3571 = scmp.lt.s32.totalorder %s27, 0
        %s3572 = scalar_select %p3571, %s27, 0
        %s3573 = smul.addr %s3572, 4
        %s3574 = smul.addr %s3570, 4
        %s3575 = sadd.s32 %s3573, %s3574
        %s3576 = smul.addr %s3575, 8
        %s3577 = scalar_lea.vmem %s9, %s3576
      $region68: #{rnd_forward.7} parent=63 // pred_fallthru
        _
    $region64: #{rnd_forward.7} parent=5 // pred_fallthru
      _
  $region6: #{rnd_forward.7} parent=0 // loop_footer
    %s19 = sadd.s32 1, %s15
  $region7: #{rnd_forward.7} parent=0 // loop_footer_branch
    %14 = sbr.rel target = $region3
  $region8: #{rnd_forward.7} parent=0 // loop_exit
    _

</llo_original>
